<compile_context>
chip_gen: v5e
topology: v5e:2x2
jax: 0.10.0
libtpu: 0.0.40
codegen_flags: <defaults>
</compile_context>

<pallas_src>
import math
import functools

import jax
import jax.numpy as jnp
from jax.experimental import pallas as pl
from jax.experimental.pallas import tpu as pltpu

# ----- small DistilBERT-style config (synthetic, deterministic init) -----
VOCAB = 100
MAX_POS = 32
HIDDEN = 64
N_HEADS = 4
HEAD_DIM = HIDDEN // N_HEADS
FFN = 128
N_LAYERS = 2
NUM_LABELS = 5
CLS_PAD = 128          # classifier output padded to a full 128-lane slab
LN_EPS = 1e-12

_VMEM = pl.BlockSpec(memory_space=pltpu.MemorySpace.VMEM)


# --------------------------- fused kernel ---------------------------

def _layernorm(h, g, b):
    mu = jnp.mean(h, axis=-1, keepdims=True)
    var = jnp.mean(jnp.square(h - mu), axis=-1, keepdims=True)
    inv = jax.lax.rsqrt(var + jnp.float32(LN_EPS))
    return (h - mu) * inv * g + b


def _fused_forward_kernel(
        emb_ref, mask_ref, labels_ref,
        emb_ln_g_ref, emb_ln_b_ref,
        qkv_w_ref, qkv_b_ref,
        o_w_ref, o_b_ref,
        ln1_g_ref, ln1_b_ref,
        ff1_w_ref, ff1_b_ref,
        ff2_w_ref, ff2_b_ref,
        ln2_g_ref, ln2_b_ref,
        cls_w_ref, cls_b_ref,
        logits_ref, loss_ref,
        *, B, S):
    M = B * S
    neg = jnp.float32(jnp.finfo(jnp.float32).min)
    scale = jnp.float32(1.0 / math.sqrt(HEAD_DIM))
    inv_sqrt2 = jnp.float32(0.7071067811865476)

    mask3 = mask_ref[...]                                   # (B, 1, S) f32; 1 keep / 0 drop

    # ---- embeddings: LayerNorm(word + position) ----
    x = _layernorm(emb_ref[...].astype(jnp.float32),
                   emb_ln_g_ref[...], emb_ln_b_ref[...])    # (M, H) f32

    # ---- transformer layers (fully unrolled; weights resident in VMEM) ----
    for l in range(N_LAYERS):
        # fused QKV projection: bf16 MXU matmul, f32 accumulate
        qkv = jnp.dot(x.astype(jnp.bfloat16), qkv_w_ref[l],
                      preferred_element_type=jnp.float32) + qkv_b_ref[l]   # (M, 3H) f32
        qkv3 = qkv.reshape(B, S, 3 * HIDDEN)
        o_w_l = o_w_ref[l]                                                 # (H, H) bf16

        attn = jnp.zeros((M, HIDDEN), jnp.float32)
        for h in range(N_HEADS):
            lo = h * HEAD_DIM
            qh = qkv3[:, :, lo:lo + HEAD_DIM] * scale                      # (B, S, Dh) f32
            kh = qkv3[:, :, HIDDEN + lo:HIDDEN + lo + HEAD_DIM]
            vh = qkv3[:, :, 2 * HIDDEN + lo:2 * HIDDEN + lo + HEAD_DIM]

            s = jnp.einsum('bqd,bkd->bqk', qh, kh,
                           preferred_element_type=jnp.float32)             # (B, S, S)
            s = jnp.where(mask3 == 0.0, neg, s)
            m = jnp.max(s, axis=-1, keepdims=True)
            e = jnp.exp(s - m)
            p = e * pl.reciprocal(jnp.sum(e, axis=-1, keepdims=True), approx=True)
            ctx = jnp.einsum('bqk,bkd->bqd', p, vh,
                             preferred_element_type=jnp.float32)           # (B, S, Dh)

            # per-head slice of the output projection -> concat-free head merge
            attn = attn + jnp.dot(ctx.reshape(M, HEAD_DIM).astype(jnp.bfloat16),
                                  o_w_l[lo:lo + HEAD_DIM, :],
                                  preferred_element_type=jnp.float32)
        attn = attn + o_b_ref[l]
        x = _layernorm(attn + x, ln1_g_ref[l], ln1_b_ref[l])               # sa_layer_norm

        # FFN with exact-erf GELU (matches HF distilbert), bf16 matmuls / f32 acc
        hdn = jnp.dot(x.astype(jnp.bfloat16), ff1_w_ref[l],
                      preferred_element_type=jnp.float32) + ff1_b_ref[l]   # (M, FFN)
        hdn = 0.5 * hdn * (1.0 + jax.lax.erf(hdn * inv_sqrt2))
        ff = jnp.dot(hdn.astype(jnp.bfloat16), ff2_w_ref[l],
                     preferred_element_type=jnp.float32) + ff2_b_ref[l]    # (M, H)
        x = _layernorm(ff + x, ln2_g_ref[l], ln2_b_ref[l])                 # output_layer_norm

    # ---- classifier (lane-padded to 128-wide output) ----
    logits = jnp.dot(x.astype(jnp.bfloat16), cls_w_ref[...],
                     preferred_element_type=jnp.float32) + cls_b_ref[...]  # (M, 128)
    logits_ref[...] = logits

    # ---- mean cross-entropy over labels != -100 (fused; reuses logits in vregs) ----
    labels = labels_ref[...]                                               # (M, 1) int32
    col = jax.lax.broadcasted_iota(jnp.int32, logits.shape, 1)
    lm = jnp.where(col < NUM_LABELS, logits, neg)                          # mask pad cols
    mx = jnp.max(lm, axis=-1, keepdims=True)
    lse = jnp.log(jnp.sum(jnp.exp(lm - mx), axis=-1, keepdims=True)) + mx
    logp = lm - lse
    onehot = (col == labels).astype(jnp.float32)
    nll = -jnp.sum(onehot * logp, axis=-1, keepdims=True)                  # (M, 1)
    valid = (labels != -100).astype(jnp.float32)                           # (M, 1)
    num = jnp.sum(nll * valid, axis=(0, 1), keepdims=True)                 # (1, 1)
    den = jnp.maximum(jnp.sum(valid, axis=(0, 1), keepdims=True), 1.0)
    loss_ref[...] = num / den


# --------------------------- parameters ---------------------------

def init_params(key):
    ks = iter(jax.random.split(key, 16))

    def w(shape):
        return jax.random.normal(next(ks), shape, jnp.float32) * 0.02

    cls_w = jnp.pad(w((HIDDEN, NUM_LABELS)), ((0, 0), (0, CLS_PAD - NUM_LABELS)))
    return {
        'word_emb': w((VOCAB, HIDDEN)),
        'pos_emb': w((MAX_POS, HIDDEN)),
        'emb_ln_g': jnp.ones((1, HIDDEN), jnp.float32),
        'emb_ln_b': jnp.zeros((1, HIDDEN), jnp.float32),
        # fused QKV weights; bf16 storage for the MXU path (f32 accumulation in-kernel)
        'qkv_w': w((N_LAYERS, HIDDEN, 3 * HIDDEN)).astype(jnp.bfloat16),
        'qkv_b': jnp.zeros((N_LAYERS, 1, 3 * HIDDEN), jnp.float32),
        'o_w': w((N_LAYERS, HIDDEN, HIDDEN)).astype(jnp.bfloat16),
        'o_b': jnp.zeros((N_LAYERS, 1, HIDDEN), jnp.float32),
        'ln1_g': jnp.ones((N_LAYERS, 1, HIDDEN), jnp.float32),
        'ln1_b': jnp.zeros((N_LAYERS, 1, HIDDEN), jnp.float32),
        'ff1_w': w((N_LAYERS, HIDDEN, FFN)).astype(jnp.bfloat16),
        'ff1_b': jnp.zeros((N_LAYERS, 1, FFN), jnp.float32),
        'ff2_w': w((N_LAYERS, FFN, HIDDEN)).astype(jnp.bfloat16),
        'ff2_b': jnp.zeros((N_LAYERS, 1, HIDDEN), jnp.float32),
        'ln2_g': jnp.ones((N_LAYERS, 1, HIDDEN), jnp.float32),
        'ln2_b': jnp.zeros((N_LAYERS, 1, HIDDEN), jnp.float32),
        'cls_w': cls_w.astype(jnp.bfloat16),          # padded cols are zero
        'cls_b': jnp.zeros((1, CLS_PAD), jnp.float32),
    }


# --------------------------- forward wrapper ---------------------------

def distilbert_forward(params, input_ids, attention_mask, labels):
    """Returns (loss, logits) like HF DistilBertForTokenClassification(return_dict=False)."""
    B, S = input_ids.shape
    M = B * S

    # embedding gather stays in XLA (data-dependent gather); everything else is fused.
    word = jnp.take(params['word_emb'], input_ids, axis=0)        # (B, S, H)
    pos = params['pos_emb'][:S]                                   # (S, H)
    emb = (word + pos[None, :, :]).reshape(M, HIDDEN)
    mask3 = attention_mask.astype(jnp.float32).reshape(B, 1, S)
    labels2 = labels.reshape(M, 1).astype(jnp.int32)

    inputs = (emb, mask3, labels2,
              params['emb_ln_g'], params['emb_ln_b'],
              params['qkv_w'], params['qkv_b'],
              params['o_w'], params['o_b'],
              params['ln1_g'], params['ln1_b'],
              params['ff1_w'], params['ff1_b'],
              params['ff2_w'], params['ff2_b'],
              params['ln2_g'], params['ln2_b'],
              params['cls_w'], params['cls_b'])

    # rough cost hint for XLA's scheduler
    matmul_flops = N_LAYERS * (2 * M * HIDDEN * 3 * HIDDEN                    # qkv
                               + 2 * 2 * B * N_HEADS * S * S * HEAD_DIM       # scores + ctx
                               + 2 * M * HIDDEN * HIDDEN                      # out proj
                               + 2 * 2 * M * HIDDEN * FFN)                    # ffn
    matmul_flops += 2 * M * HIDDEN * CLS_PAD                                  # classifier
    transcendentals = N_LAYERS * (B * N_HEADS * S * S + M * FFN) + M * CLS_PAD
    bytes_accessed = sum(int(a.size) * a.dtype.itemsize for a in inputs)
    bytes_accessed += M * CLS_PAD * 4 + 4

    logits_pad, loss = pl.pallas_call(
        functools.partial(_fused_forward_kernel, B=B, S=S),
        out_shape=(jax.ShapeDtypeStruct((M, CLS_PAD), jnp.float32),
                   jax.ShapeDtypeStruct((1, 1), jnp.float32)),
        in_specs=[_VMEM] * len(inputs),
        out_specs=(_VMEM, _VMEM),
        cost_estimate=pl.CostEstimate(flops=matmul_flops,
                                      transcendentals=transcendentals,
                                      bytes_accessed=bytes_accessed),
    )(*inputs)

    logits = logits_pad[:, :NUM_LABELS].reshape(B, S, NUM_LABELS)
    return loss[0, 0], logits


# --------------------------- main ---------------------------

if __name__ == "__main__":
    key = jax.random.PRNGKey(0)
    pkey, ikey, lkey = jax.random.split(key, 3)
    params = init_params(pkey)

    B, S = 2, 8
    input_ids = jax.random.randint(ikey, (B, S), 0, VOCAB, dtype=jnp.int32)
    attention_mask = jnp.ones((B, S), jnp.int32).at[1, -2:].set(0)   # padding in batch 1
    labels = jax.random.randint(lkey, (B, S), 0, NUM_LABELS, dtype=jnp.int32)
    labels = jnp.where(attention_mask == 1, labels, -100)            # ignore padded tokens

    fwd = jax.jit(distilbert_forward)
    loss, logits = fwd(params, input_ids, attention_mask, labels)
    jax.block_until_ready((loss, logits))

    assert logits.shape == (B, S, NUM_LABELS)
    assert loss.shape == ()
    assert bool(jnp.isfinite(loss))
    print("KERNEL_OK")
</pallas_src>

<mosaic_0001>
module attributes {stable_mosaic.version = 11 : i64} {
  func.func @_fused_forward_kernel(%arg0: memref<16x64xf32, #tpu.memory_space<vmem>>, %arg1: memref<2x1x8xf32, #tpu.memory_space<vmem>>, %arg2: memref<16x1xi32, #tpu.memory_space<vmem>>, %arg3: memref<1x64xf32, #tpu.memory_space<vmem>>, %arg4: memref<1x64xf32, #tpu.memory_space<vmem>>, %arg5: memref<2x64x192xbf16, #tpu.memory_space<vmem>>, %arg6: memref<2x1x192xf32, #tpu.memory_space<vmem>>, %arg7: memref<2x64x64xbf16, #tpu.memory_space<vmem>>, %arg8: memref<2x1x64xf32, #tpu.memory_space<vmem>>, %arg9: memref<2x1x64xf32, #tpu.memory_space<vmem>>, %arg10: memref<2x1x64xf32, #tpu.memory_space<vmem>>, %arg11: memref<2x64x128xbf16, #tpu.memory_space<vmem>>, %arg12: memref<2x1x128xf32, #tpu.memory_space<vmem>>, %arg13: memref<2x128x64xbf16, #tpu.memory_space<vmem>>, %arg14: memref<2x1x64xf32, #tpu.memory_space<vmem>>, %arg15: memref<2x1x64xf32, #tpu.memory_space<vmem>>, %arg16: memref<2x1x64xf32, #tpu.memory_space<vmem>>, %arg17: memref<64x128xbf16, #tpu.memory_space<vmem>>, %arg18: memref<1x128xf32, #tpu.memory_space<vmem>>, %arg19: memref<16x128xf32, #tpu.memory_space<vmem>>, %arg20: memref<1x1xf32, #tpu.memory_space<vmem>>) attributes {dimension_semantics = [], scalar_prefetch = 0 : i64, scratch_operands = 0 : i64, tpu.core_type = #tpu.core_type<tc>} {
    %c0 = arith.constant 0 : index
    %c0_0 = arith.constant 0 : index
    %c0_1 = arith.constant 0 : index
    %0 = vector.load %arg1[%c0, %c0_0, %c0_1] : memref<2x1x8xf32, #tpu.memory_space<vmem>>, vector<2x1x8xf32>
    %c0_2 = arith.constant 0 : index
    %c0_3 = arith.constant 0 : index
    %1 = vector.load %arg0[%c0_2, %c0_3] : memref<16x64xf32, #tpu.memory_space<vmem>>, vector<16x64xf32>
    %c0_4 = arith.constant 0 : index
    %c0_5 = arith.constant 0 : index
    %2 = vector.load %arg3[%c0_4, %c0_5] : memref<1x64xf32, #tpu.memory_space<vmem>>, vector<1x64xf32>
    %c0_6 = arith.constant 0 : index
    %c0_7 = arith.constant 0 : index
    %3 = vector.load %arg4[%c0_6, %c0_7] : memref<1x64xf32, #tpu.memory_space<vmem>>, vector<1x64xf32>
    %cst = arith.constant dense<0.000000e+00> : vector<16xf32>
    %4 = vector.multi_reduction <add>, %1, %cst [1] : vector<16x64xf32> to vector<16xf32>
    %5 = vector.shape_cast %4 : vector<16xf32> to vector<16x1xf32>
    %cst_8 = arith.constant 6.400000e+01 : f32
    %6 = vector.broadcast %cst_8 : f32 to vector<16x1xf32>
    %7 = arith.divf %5, %6 : vector<16x1xf32>
    %8 = vector.broadcast %7 : vector<16x1xf32> to vector<16x64xf32>
    %9 = arith.subf %1, %8 : vector<16x64xf32>
    %10 = arith.mulf %9, %9 : vector<16x64xf32>
    %cst_9 = arith.constant dense<0.000000e+00> : vector<16xf32>
    %11 = vector.multi_reduction <add>, %10, %cst_9 [1] : vector<16x64xf32> to vector<16xf32>
    %12 = vector.shape_cast %11 : vector<16xf32> to vector<16x1xf32>
    %cst_10 = arith.constant 6.400000e+01 : f32
    %13 = vector.broadcast %cst_10 : f32 to vector<16x1xf32>
    %14 = arith.divf %12, %13 : vector<16x1xf32>
    %cst_11 = arith.constant 9.99999996E-13 : f32
    %15 = vector.broadcast %cst_11 : f32 to vector<16x1xf32>
    %16 = arith.addf %14, %15 : vector<16x1xf32>
    %17 = math.rsqrt %16 : vector<16x1xf32>
    %18 = vector.broadcast %7 : vector<16x1xf32> to vector<16x64xf32>
    %19 = arith.subf %1, %18 : vector<16x64xf32>
    %20 = vector.broadcast %17 : vector<16x1xf32> to vector<16x64xf32>
    %21 = arith.mulf %19, %20 : vector<16x64xf32>
    %22 = vector.broadcast %2 : vector<1x64xf32> to vector<16x64xf32>
    %23 = arith.mulf %21, %22 : vector<16x64xf32>
    %24 = vector.broadcast %3 : vector<1x64xf32> to vector<16x64xf32>
    %25 = arith.addf %23, %24 : vector<16x64xf32>
    %26 = arith.truncf %25 : vector<16x64xf32> to vector<16x64xbf16>
    %c0_12 = arith.constant 0 : index
    %c0_13 = arith.constant 0 : index
    %c0_14 = arith.constant 0 : index
    %27 = vector.load %arg5[%c0_12, %c0_13, %c0_14] : memref<2x64x192xbf16, #tpu.memory_space<vmem>>, vector<1x64x192xbf16>
    %28 = vector.shape_cast %27 : vector<1x64x192xbf16> to vector<64x192xbf16>
    %cst_15 = arith.constant dense<0.000000e+00> : vector<16x192xf32>
    %29 = tpu.matmul %26, %28, %cst_15 {dimension_numbers = #tpu.dot_dimension_numbers<[1], [0], [0], [1], [0, 0, 1, 1], [], []>} : vector<16x64xbf16>, vector<64x192xbf16>, vector<16x192xf32> -> vector<16x192xf32>
    %c0_16 = arith.constant 0 : index
    %c0_17 = arith.constant 0 : index
    %c0_18 = arith.constant 0 : index
    %30 = vector.load %arg6[%c0_16, %c0_17, %c0_18] : memref<2x1x192xf32, #tpu.memory_space<vmem>>, vector<1x1x192xf32>
    %31 = vector.shape_cast %30 : vector<1x1x192xf32> to vector<1x192xf32>
    %32 = vector.broadcast %31 : vector<1x192xf32> to vector<16x192xf32>
    %33 = arith.addf %29, %32 : vector<16x192xf32>
    %34 = vector.shape_cast %33 : vector<16x192xf32> to vector<2x8x192xf32>
    %c0_19 = arith.constant 0 : index
    %c0_20 = arith.constant 0 : index
    %c0_21 = arith.constant 0 : index
    %35 = vector.load %arg7[%c0_19, %c0_20, %c0_21] : memref<2x64x64xbf16, #tpu.memory_space<vmem>>, vector<1x64x64xbf16>
    %36 = vector.shape_cast %35 : vector<1x64x64xbf16> to vector<64x64xbf16>
    %cst_22 = arith.constant 0.000000e+00 : f32
    %37 = vector.broadcast %cst_22 : f32 to vector<16x64xf32>
    %38 = vector.extract_strided_slice %34 {offsets = [0, 0, 0], sizes = [2, 8, 16], strides = [1, 1, 1]} : vector<2x8x192xf32> to vector<2x8x16xf32>
    %cst_23 = arith.constant 2.500000e-01 : f32
    %39 = vector.broadcast %cst_23 : f32 to vector<2x8x16xf32>
    %40 = arith.mulf %38, %39 : vector<2x8x16xf32>
    %41 = vector.extract_strided_slice %34 {offsets = [0, 0, 64], sizes = [2, 8, 16], strides = [1, 1, 1]} : vector<2x8x192xf32> to vector<2x8x16xf32>
    %42 = vector.extract_strided_slice %34 {offsets = [0, 0, 128], sizes = [2, 8, 16], strides = [1, 1, 1]} : vector<2x8x192xf32> to vector<2x8x16xf32>
    "tpu.trace_start"() <{level = 10 : i32, message = "bqd,bkd->bqk"}> : () -> ()
    %cst_24 = arith.constant dense<0.000000e+00> : vector<2x8x8xf32>
    %43 = tpu.matmul %40, %41, %cst_24 {dimension_numbers = #tpu.dot_dimension_numbers<[2], [2], [1], [1], [0, 0, 0, 1, 1, 1], [0], [0]>} : vector<2x8x16xf32>, vector<2x8x16xf32>, vector<2x8x8xf32> -> vector<2x8x8xf32>
    %cst_25 = arith.constant 0.000000e+00 : f32
    "tpu.trace_stop"() : () -> ()
    %44 = vector.broadcast %cst_25 : f32 to vector<2x1x8xf32>
    %45 = arith.cmpf oeq, %0, %44 : vector<2x1x8xf32>
    %cst_26 = arith.constant -3.40282347E+38 : f32
    %46 = vector.shape_cast %45 : vector<2x1x8xi1> to vector<2x1x8xi1>
    %47 = vector.broadcast %46 : vector<2x1x8xi1> to vector<2x8x8xi1>
    %48 = vector.broadcast %cst_26 : f32 to vector<2x8x8xf32>
    %49 = arith.select %47, %48, %43 : vector<2x8x8xi1>, vector<2x8x8xf32>
    %cst_27 = arith.constant dense<0xFF800000> : vector<2x8xf32>
    %50 = vector.multi_reduction <maximumf>, %49, %cst_27 [2] : vector<2x8x8xf32> to vector<2x8xf32>
    %51 = vector.shape_cast %50 : vector<2x8xf32> to vector<2x8x1xf32>
    %52 = vector.broadcast %51 : vector<2x8x1xf32> to vector<2x8x8xf32>
    %53 = arith.subf %49, %52 : vector<2x8x8xf32>
    %54 = math.exp %53 : vector<2x8x8xf32>
    %cst_28 = arith.constant dense<0.000000e+00> : vector<2x8xf32>
    %55 = vector.multi_reduction <add>, %54, %cst_28 [2] : vector<2x8x8xf32> to vector<2x8xf32>
    %56 = vector.shape_cast %55 : vector<2x8xf32> to vector<2x8x1xf32>
    %57 = tpu.reciprocal %56 {approx = true} : vector<2x8x1xf32> -> vector<2x8x1xf32>
    %58 = vector.broadcast %57 : vector<2x8x1xf32> to vector<2x8x8xf32>
    %59 = arith.mulf %54, %58 : vector<2x8x8xf32>
    "tpu.trace_start"() <{level = 10 : i32, message = "bqk,bkd->bqd"}> : () -> ()
    %cst_29 = arith.constant dense<0.000000e+00> : vector<2x8x16xf32>
    %60 = tpu.matmul %59, %42, %cst_29 {dimension_numbers = #tpu.dot_dimension_numbers<[2], [1], [1], [2], [0, 0, 0, 1, 1, 2], [0], [0]>} : vector<2x8x8xf32>, vector<2x8x16xf32>, vector<2x8x16xf32> -> vector<2x8x16xf32>
    "tpu.trace_stop"() : () -> ()
    %61 = vector.shape_cast %60 : vector<2x8x16xf32> to vector<16x16xf32>
    %62 = arith.truncf %61 : vector<16x16xf32> to vector<16x16xbf16>
    %63 = vector.extract_strided_slice %36 {offsets = [0, 0], sizes = [16, 64], strides = [1, 1]} : vector<64x64xbf16> to vector<16x64xbf16>
    %cst_30 = arith.constant dense<0.000000e+00> : vector<16x64xf32>
    %64 = tpu.matmul %62, %63, %cst_30 {dimension_numbers = #tpu.dot_dimension_numbers<[1], [0], [0], [1], [0, 0, 1, 1], [], []>} : vector<16x16xbf16>, vector<16x64xbf16>, vector<16x64xf32> -> vector<16x64xf32>
    %65 = arith.addf %37, %64 : vector<16x64xf32>
    %66 = vector.extract_strided_slice %34 {offsets = [0, 0, 16], sizes = [2, 8, 16], strides = [1, 1, 1]} : vector<2x8x192xf32> to vector<2x8x16xf32>
    %cst_31 = arith.constant 2.500000e-01 : f32
    %67 = vector.broadcast %cst_31 : f32 to vector<2x8x16xf32>
    %68 = arith.mulf %66, %67 : vector<2x8x16xf32>
    %69 = vector.extract_strided_slice %34 {offsets = [0, 0, 80], sizes = [2, 8, 16], strides = [1, 1, 1]} : vector<2x8x192xf32> to vector<2x8x16xf32>
    %70 = vector.extract_strided_slice %34 {offsets = [0, 0, 144], sizes = [2, 8, 16], strides = [1, 1, 1]} : vector<2x8x192xf32> to vector<2x8x16xf32>
    "tpu.trace_start"() <{level = 10 : i32, message = "bqd,bkd->bqk"}> : () -> ()
    %cst_32 = arith.constant dense<0.000000e+00> : vector<2x8x8xf32>
    %71 = tpu.matmul %68, %69, %cst_32 {dimension_numbers = #tpu.dot_dimension_numbers<[2], [2], [1], [1], [0, 0, 0, 1, 1, 1], [0], [0]>} : vector<2x8x16xf32>, vector<2x8x16xf32>, vector<2x8x8xf32> -> vector<2x8x8xf32>
    %cst_33 = arith.constant 0.000000e+00 : f32
    "tpu.trace_stop"() : () -> ()
    %72 = vector.broadcast %cst_33 : f32 to vector<2x1x8xf32>
    %73 = arith.cmpf oeq, %0, %72 : vector<2x1x8xf32>
    %cst_34 = arith.constant -3.40282347E+38 : f32
    %74 = vector.shape_cast %73 : vector<2x1x8xi1> to vector<2x1x8xi1>
    %75 = vector.broadcast %74 : vector<2x1x8xi1> to vector<2x8x8xi1>
    %76 = vector.broadcast %cst_34 : f32 to vector<2x8x8xf32>
    %77 = arith.select %75, %76, %71 : vector<2x8x8xi1>, vector<2x8x8xf32>
    %cst_35 = arith.constant dense<0xFF800000> : vector<2x8xf32>
    %78 = vector.multi_reduction <maximumf>, %77, %cst_35 [2] : vector<2x8x8xf32> to vector<2x8xf32>
    %79 = vector.shape_cast %78 : vector<2x8xf32> to vector<2x8x1xf32>
    %80 = vector.broadcast %79 : vector<2x8x1xf32> to vector<2x8x8xf32>
    %81 = arith.subf %77, %80 : vector<2x8x8xf32>
    %82 = math.exp %81 : vector<2x8x8xf32>
    %cst_36 = arith.constant dense<0.000000e+00> : vector<2x8xf32>
    %83 = vector.multi_reduction <add>, %82, %cst_36 [2] : vector<2x8x8xf32> to vector<2x8xf32>
    %84 = vector.shape_cast %83 : vector<2x8xf32> to vector<2x8x1xf32>
    %85 = tpu.reciprocal %84 {approx = true} : vector<2x8x1xf32> -> vector<2x8x1xf32>
    %86 = vector.broadcast %85 : vector<2x8x1xf32> to vector<2x8x8xf32>
    %87 = arith.mulf %82, %86 : vector<2x8x8xf32>
    "tpu.trace_start"() <{level = 10 : i32, message = "bqk,bkd->bqd"}> : () -> ()
    %cst_37 = arith.constant dense<0.000000e+00> : vector<2x8x16xf32>
    %88 = tpu.matmul %87, %70, %cst_37 {dimension_numbers = #tpu.dot_dimension_numbers<[2], [1], [1], [2], [0, 0, 0, 1, 1, 2], [0], [0]>} : vector<2x8x8xf32>, vector<2x8x16xf32>, vector<2x8x16xf32> -> vector<2x8x16xf32>
    "tpu.trace_stop"() : () -> ()
    %89 = vector.shape_cast %88 : vector<2x8x16xf32> to vector<16x16xf32>
    %90 = arith.truncf %89 : vector<16x16xf32> to vector<16x16xbf16>
    %91 = vector.extract_strided_slice %36 {offsets = [16, 0], sizes = [16, 64], strides = [1, 1]} : vector<64x64xbf16> to vector<16x64xbf16>
    %cst_38 = arith.constant dense<0.000000e+00> : vector<16x64xf32>
    %92 = tpu.matmul %90, %91, %cst_38 {dimension_numbers = #tpu.dot_dimension_numbers<[1], [0], [0], [1], [0, 0, 1, 1], [], []>} : vector<16x16xbf16>, vector<16x64xbf16>, vector<16x64xf32> -> vector<16x64xf32>
    %93 = arith.addf %65, %92 : vector<16x64xf32>
    %94 = vector.extract_strided_slice %34 {offsets = [0, 0, 32], sizes = [2, 8, 16], strides = [1, 1, 1]} : vector<2x8x192xf32> to vector<2x8x16xf32>
    %cst_39 = arith.constant 2.500000e-01 : f32
    %95 = vector.broadcast %cst_39 : f32 to vector<2x8x16xf32>
    %96 = arith.mulf %94, %95 : vector<2x8x16xf32>
    %97 = vector.extract_strided_slice %34 {offsets = [0, 0, 96], sizes = [2, 8, 16], strides = [1, 1, 1]} : vector<2x8x192xf32> to vector<2x8x16xf32>
    %98 = vector.extract_strided_slice %34 {offsets = [0, 0, 160], sizes = [2, 8, 16], strides = [1, 1, 1]} : vector<2x8x192xf32> to vector<2x8x16xf32>
    "tpu.trace_start"() <{level = 10 : i32, message = "bqd,bkd->bqk"}> : () -> ()
    %cst_40 = arith.constant dense<0.000000e+00> : vector<2x8x8xf32>
    %99 = tpu.matmul %96, %97, %cst_40 {dimension_numbers = #tpu.dot_dimension_numbers<[2], [2], [1], [1], [0, 0, 0, 1, 1, 1], [0], [0]>} : vector<2x8x16xf32>, vector<2x8x16xf32>, vector<2x8x8xf32> -> vector<2x8x8xf32>
    %cst_41 = arith.constant 0.000000e+00 : f32
    "tpu.trace_stop"() : () -> ()
    %100 = vector.broadcast %cst_41 : f32 to vector<2x1x8xf32>
    %101 = arith.cmpf oeq, %0, %100 : vector<2x1x8xf32>
    %cst_42 = arith.constant -3.40282347E+38 : f32
    %102 = vector.shape_cast %101 : vector<2x1x8xi1> to vector<2x1x8xi1>
    %103 = vector.broadcast %102 : vector<2x1x8xi1> to vector<2x8x8xi1>
    %104 = vector.broadcast %cst_42 : f32 to vector<2x8x8xf32>
    %105 = arith.select %103, %104, %99 : vector<2x8x8xi1>, vector<2x8x8xf32>
    %cst_43 = arith.constant dense<0xFF800000> : vector<2x8xf32>
    %106 = vector.multi_reduction <maximumf>, %105, %cst_43 [2] : vector<2x8x8xf32> to vector<2x8xf32>
    %107 = vector.shape_cast %106 : vector<2x8xf32> to vector<2x8x1xf32>
    %108 = vector.broadcast %107 : vector<2x8x1xf32> to vector<2x8x8xf32>
    %109 = arith.subf %105, %108 : vector<2x8x8xf32>
    %110 = math.exp %109 : vector<2x8x8xf32>
    %cst_44 = arith.constant dense<0.000000e+00> : vector<2x8xf32>
    %111 = vector.multi_reduction <add>, %110, %cst_44 [2] : vector<2x8x8xf32> to vector<2x8xf32>
    %112 = vector.shape_cast %111 : vector<2x8xf32> to vector<2x8x1xf32>
    %113 = tpu.reciprocal %112 {approx = true} : vector<2x8x1xf32> -> vector<2x8x1xf32>
    %114 = vector.broadcast %113 : vector<2x8x1xf32> to vector<2x8x8xf32>
    %115 = arith.mulf %110, %114 : vector<2x8x8xf32>
    "tpu.trace_start"() <{level = 10 : i32, message = "bqk,bkd->bqd"}> : () -> ()
    %cst_45 = arith.constant dense<0.000000e+00> : vector<2x8x16xf32>
    %116 = tpu.matmul %115, %98, %cst_45 {dimension_numbers = #tpu.dot_dimension_numbers<[2], [1], [1], [2], [0, 0, 0, 1, 1, 2], [0], [0]>} : vector<2x8x8xf32>, vector<2x8x16xf32>, vector<2x8x16xf32> -> vector<2x8x16xf32>
    "tpu.trace_stop"() : () -> ()
    %117 = vector.shape_cast %116 : vector<2x8x16xf32> to vector<16x16xf32>
    %118 = arith.truncf %117 : vector<16x16xf32> to vector<16x16xbf16>
    %119 = vector.extract_strided_slice %36 {offsets = [32, 0], sizes = [16, 64], strides = [1, 1]} : vector<64x64xbf16> to vector<16x64xbf16>
    %cst_46 = arith.constant dense<0.000000e+00> : vector<16x64xf32>
    %120 = tpu.matmul %118, %119, %cst_46 {dimension_numbers = #tpu.dot_dimension_numbers<[1], [0], [0], [1], [0, 0, 1, 1], [], []>} : vector<16x16xbf16>, vector<16x64xbf16>, vector<16x64xf32> -> vector<16x64xf32>
    %121 = arith.addf %93, %120 : vector<16x64xf32>
    %122 = vector.extract_strided_slice %34 {offsets = [0, 0, 48], sizes = [2, 8, 16], strides = [1, 1, 1]} : vector<2x8x192xf32> to vector<2x8x16xf32>
    %cst_47 = arith.constant 2.500000e-01 : f32
    %123 = vector.broadcast %cst_47 : f32 to vector<2x8x16xf32>
    %124 = arith.mulf %122, %123 : vector<2x8x16xf32>
    %125 = vector.extract_strided_slice %34 {offsets = [0, 0, 112], sizes = [2, 8, 16], strides = [1, 1, 1]} : vector<2x8x192xf32> to vector<2x8x16xf32>
    %126 = vector.extract_strided_slice %34 {offsets = [0, 0, 176], sizes = [2, 8, 16], strides = [1, 1, 1]} : vector<2x8x192xf32> to vector<2x8x16xf32>
    "tpu.trace_start"() <{level = 10 : i32, message = "bqd,bkd->bqk"}> : () -> ()
    %cst_48 = arith.constant dense<0.000000e+00> : vector<2x8x8xf32>
    %127 = tpu.matmul %124, %125, %cst_48 {dimension_numbers = #tpu.dot_dimension_numbers<[2], [2], [1], [1], [0, 0, 0, 1, 1, 1], [0], [0]>} : vector<2x8x16xf32>, vector<2x8x16xf32>, vector<2x8x8xf32> -> vector<2x8x8xf32>
    %cst_49 = arith.constant 0.000000e+00 : f32
    "tpu.trace_stop"() : () -> ()
    %128 = vector.broadcast %cst_49 : f32 to vector<2x1x8xf32>
    %129 = arith.cmpf oeq, %0, %128 : vector<2x1x8xf32>
    %cst_50 = arith.constant -3.40282347E+38 : f32
    %130 = vector.shape_cast %129 : vector<2x1x8xi1> to vector<2x1x8xi1>
    %131 = vector.broadcast %130 : vector<2x1x8xi1> to vector<2x8x8xi1>
    %132 = vector.broadcast %cst_50 : f32 to vector<2x8x8xf32>
    %133 = arith.select %131, %132, %127 : vector<2x8x8xi1>, vector<2x8x8xf32>
    %cst_51 = arith.constant dense<0xFF800000> : vector<2x8xf32>
    %134 = vector.multi_reduction <maximumf>, %133, %cst_51 [2] : vector<2x8x8xf32> to vector<2x8xf32>
    %135 = vector.shape_cast %134 : vector<2x8xf32> to vector<2x8x1xf32>
    %136 = vector.broadcast %135 : vector<2x8x1xf32> to vector<2x8x8xf32>
    %137 = arith.subf %133, %136 : vector<2x8x8xf32>
    %138 = math.exp %137 : vector<2x8x8xf32>
    %cst_52 = arith.constant dense<0.000000e+00> : vector<2x8xf32>
    %139 = vector.multi_reduction <add>, %138, %cst_52 [2] : vector<2x8x8xf32> to vector<2x8xf32>
    %140 = vector.shape_cast %139 : vector<2x8xf32> to vector<2x8x1xf32>
    %141 = tpu.reciprocal %140 {approx = true} : vector<2x8x1xf32> -> vector<2x8x1xf32>
    %142 = vector.broadcast %141 : vector<2x8x1xf32> to vector<2x8x8xf32>
    %143 = arith.mulf %138, %142 : vector<2x8x8xf32>
    "tpu.trace_start"() <{level = 10 : i32, message = "bqk,bkd->bqd"}> : () -> ()
    %cst_53 = arith.constant dense<0.000000e+00> : vector<2x8x16xf32>
    %144 = tpu.matmul %143, %126, %cst_53 {dimension_numbers = #tpu.dot_dimension_numbers<[2], [1], [1], [2], [0, 0, 0, 1, 1, 2], [0], [0]>} : vector<2x8x8xf32>, vector<2x8x16xf32>, vector<2x8x16xf32> -> vector<2x8x16xf32>
    "tpu.trace_stop"() : () -> ()
    %145 = vector.shape_cast %144 : vector<2x8x16xf32> to vector<16x16xf32>
    %146 = arith.truncf %145 : vector<16x16xf32> to vector<16x16xbf16>
    %147 = vector.extract_strided_slice %36 {offsets = [48, 0], sizes = [16, 64], strides = [1, 1]} : vector<64x64xbf16> to vector<16x64xbf16>
    %cst_54 = arith.constant dense<0.000000e+00> : vector<16x64xf32>
    %148 = tpu.matmul %146, %147, %cst_54 {dimension_numbers = #tpu.dot_dimension_numbers<[1], [0], [0], [1], [0, 0, 1, 1], [], []>} : vector<16x16xbf16>, vector<16x64xbf16>, vector<16x64xf32> -> vector<16x64xf32>
    %149 = arith.addf %121, %148 : vector<16x64xf32>
    %c0_55 = arith.constant 0 : index
    %c0_56 = arith.constant 0 : index
    %c0_57 = arith.constant 0 : index
    %150 = vector.load %arg8[%c0_55, %c0_56, %c0_57] : memref<2x1x64xf32, #tpu.memory_space<vmem>>, vector<1x1x64xf32>
    %151 = vector.shape_cast %150 : vector<1x1x64xf32> to vector<1x64xf32>
    %152 = vector.broadcast %151 : vector<1x64xf32> to vector<16x64xf32>
    %153 = arith.addf %149, %152 : vector<16x64xf32>
    %154 = arith.addf %153, %25 : vector<16x64xf32>
    %c0_58 = arith.constant 0 : index
    %c0_59 = arith.constant 0 : index
    %c0_60 = arith.constant 0 : index
    %155 = vector.load %arg9[%c0_58, %c0_59, %c0_60] : memref<2x1x64xf32, #tpu.memory_space<vmem>>, vector<1x1x64xf32>
    %156 = vector.shape_cast %155 : vector<1x1x64xf32> to vector<1x64xf32>
    %c0_61 = arith.constant 0 : index
    %c0_62 = arith.constant 0 : index
    %c0_63 = arith.constant 0 : index
    %157 = vector.load %arg10[%c0_61, %c0_62, %c0_63] : memref<2x1x64xf32, #tpu.memory_space<vmem>>, vector<1x1x64xf32>
    %158 = vector.shape_cast %157 : vector<1x1x64xf32> to vector<1x64xf32>
    %cst_64 = arith.constant dense<0.000000e+00> : vector<16xf32>
    %159 = vector.multi_reduction <add>, %154, %cst_64 [1] : vector<16x64xf32> to vector<16xf32>
    %160 = vector.shape_cast %159 : vector<16xf32> to vector<16x1xf32>
    %cst_65 = arith.constant 6.400000e+01 : f32
    %161 = vector.broadcast %cst_65 : f32 to vector<16x1xf32>
    %162 = arith.divf %160, %161 : vector<16x1xf32>
    %163 = vector.broadcast %162 : vector<16x1xf32> to vector<16x64xf32>
    %164 = arith.subf %154, %163 : vector<16x64xf32>
    %165 = arith.mulf %164, %164 : vector<16x64xf32>
    %cst_66 = arith.constant dense<0.000000e+00> : vector<16xf32>
    %166 = vector.multi_reduction <add>, %165, %cst_66 [1] : vector<16x64xf32> to vector<16xf32>
    %167 = vector.shape_cast %166 : vector<16xf32> to vector<16x1xf32>
    %cst_67 = arith.constant 6.400000e+01 : f32
    %168 = vector.broadcast %cst_67 : f32 to vector<16x1xf32>
    %169 = arith.divf %167, %168 : vector<16x1xf32>
    %cst_68 = arith.constant 9.99999996E-13 : f32
    %170 = vector.broadcast %cst_68 : f32 to vector<16x1xf32>
    %171 = arith.addf %169, %170 : vector<16x1xf32>
    %172 = math.rsqrt %171 : vector<16x1xf32>
    %173 = vector.broadcast %162 : vector<16x1xf32> to vector<16x64xf32>
    %174 = arith.subf %154, %173 : vector<16x64xf32>
    %175 = vector.broadcast %172 : vector<16x1xf32> to vector<16x64xf32>
    %176 = arith.mulf %174, %175 : vector<16x64xf32>
    %177 = vector.broadcast %156 : vector<1x64xf32> to vector<16x64xf32>
    %178 = arith.mulf %176, %177 : vector<16x64xf32>
    %179 = vector.broadcast %158 : vector<1x64xf32> to vector<16x64xf32>
    %180 = arith.addf %178, %179 : vector<16x64xf32>
    %181 = arith.truncf %180 : vector<16x64xf32> to vector<16x64xbf16>
    %c0_69 = arith.constant 0 : index
    %c0_70 = arith.constant 0 : index
    %c0_71 = arith.constant 0 : index
    %182 = vector.load %arg11[%c0_69, %c0_70, %c0_71] : memref<2x64x128xbf16, #tpu.memory_space<vmem>>, vector<1x64x128xbf16>
    %183 = vector.shape_cast %182 : vector<1x64x128xbf16> to vector<64x128xbf16>
    %cst_72 = arith.constant dense<0.000000e+00> : vector<16x128xf32>
    %184 = tpu.matmul %181, %183, %cst_72 {dimension_numbers = #tpu.dot_dimension_numbers<[1], [0], [0], [1], [0, 0, 1, 1], [], []>} : vector<16x64xbf16>, vector<64x128xbf16>, vector<16x128xf32> -> vector<16x128xf32>
    %c0_73 = arith.constant 0 : index
    %c0_74 = arith.constant 0 : index
    %c0_75 = arith.constant 0 : index
    %185 = vector.load %arg12[%c0_73, %c0_74, %c0_75] : memref<2x1x128xf32, #tpu.memory_space<vmem>>, vector<1x1x128xf32>
    %186 = vector.shape_cast %185 : vector<1x1x128xf32> to vector<1x128xf32>
    %187 = vector.broadcast %186 : vector<1x128xf32> to vector<16x128xf32>
    %188 = arith.addf %184, %187 : vector<16x128xf32>
    %cst_76 = arith.constant 5.000000e-01 : f32
    %189 = vector.broadcast %cst_76 : f32 to vector<16x128xf32>
    %190 = arith.mulf %189, %188 : vector<16x128xf32>
    %cst_77 = arith.constant 0.707106769 : f32
    %191 = vector.broadcast %cst_77 : f32 to vector<16x128xf32>
    %192 = arith.mulf %188, %191 : vector<16x128xf32>
    %193 = math.erf %192 : vector<16x128xf32>
    %cst_78 = arith.constant 1.000000e+00 : f32
    %194 = vector.broadcast %cst_78 : f32 to vector<16x128xf32>
    %195 = arith.addf %194, %193 : vector<16x128xf32>
    %196 = arith.mulf %190, %195 : vector<16x128xf32>
    %197 = arith.truncf %196 : vector<16x128xf32> to vector<16x128xbf16>
    %c0_79 = arith.constant 0 : index
    %c0_80 = arith.constant 0 : index
    %c0_81 = arith.constant 0 : index
    %198 = vector.load %arg13[%c0_79, %c0_80, %c0_81] : memref<2x128x64xbf16, #tpu.memory_space<vmem>>, vector<1x128x64xbf16>
    %199 = vector.shape_cast %198 : vector<1x128x64xbf16> to vector<128x64xbf16>
    %cst_82 = arith.constant dense<0.000000e+00> : vector<16x64xf32>
    %200 = tpu.matmul %197, %199, %cst_82 {dimension_numbers = #tpu.dot_dimension_numbers<[1], [0], [0], [1], [0, 0, 1, 1], [], []>} : vector<16x128xbf16>, vector<128x64xbf16>, vector<16x64xf32> -> vector<16x64xf32>
    %c0_83 = arith.constant 0 : index
    %c0_84 = arith.constant 0 : index
    %c0_85 = arith.constant 0 : index
    %201 = vector.load %arg14[%c0_83, %c0_84, %c0_85] : memref<2x1x64xf32, #tpu.memory_space<vmem>>, vector<1x1x64xf32>
    %202 = vector.shape_cast %201 : vector<1x1x64xf32> to vector<1x64xf32>
    %203 = vector.broadcast %202 : vector<1x64xf32> to vector<16x64xf32>
    %204 = arith.addf %200, %203 : vector<16x64xf32>
    %205 = arith.addf %204, %180 : vector<16x64xf32>
    %c0_86 = arith.constant 0 : index
    %c0_87 = arith.constant 0 : index
    %c0_88 = arith.constant 0 : index
    %206 = vector.load %arg15[%c0_86, %c0_87, %c0_88] : memref<2x1x64xf32, #tpu.memory_space<vmem>>, vector<1x1x64xf32>
    %207 = vector.shape_cast %206 : vector<1x1x64xf32> to vector<1x64xf32>
    %c0_89 = arith.constant 0 : index
    %c0_90 = arith.constant 0 : index
    %c0_91 = arith.constant 0 : index
    %208 = vector.load %arg16[%c0_89, %c0_90, %c0_91] : memref<2x1x64xf32, #tpu.memory_space<vmem>>, vector<1x1x64xf32>
    %209 = vector.shape_cast %208 : vector<1x1x64xf32> to vector<1x64xf32>
    %cst_92 = arith.constant dense<0.000000e+00> : vector<16xf32>
    %210 = vector.multi_reduction <add>, %205, %cst_92 [1] : vector<16x64xf32> to vector<16xf32>
    %211 = vector.shape_cast %210 : vector<16xf32> to vector<16x1xf32>
    %cst_93 = arith.constant 6.400000e+01 : f32
    %212 = vector.broadcast %cst_93 : f32 to vector<16x1xf32>
    %213 = arith.divf %211, %212 : vector<16x1xf32>
    %214 = vector.broadcast %213 : vector<16x1xf32> to vector<16x64xf32>
    %215 = arith.subf %205, %214 : vector<16x64xf32>
    %216 = arith.mulf %215, %215 : vector<16x64xf32>
    %cst_94 = arith.constant dense<0.000000e+00> : vector<16xf32>
    %217 = vector.multi_reduction <add>, %216, %cst_94 [1] : vector<16x64xf32> to vector<16xf32>
    %218 = vector.shape_cast %217 : vector<16xf32> to vector<16x1xf32>
    %cst_95 = arith.constant 6.400000e+01 : f32
    %219 = vector.broadcast %cst_95 : f32 to vector<16x1xf32>
    %220 = arith.divf %218, %219 : vector<16x1xf32>
    %cst_96 = arith.constant 9.99999996E-13 : f32
    %221 = vector.broadcast %cst_96 : f32 to vector<16x1xf32>
    %222 = arith.addf %220, %221 : vector<16x1xf32>
    %223 = math.rsqrt %222 : vector<16x1xf32>
    %224 = vector.broadcast %213 : vector<16x1xf32> to vector<16x64xf32>
    %225 = arith.subf %205, %224 : vector<16x64xf32>
    %226 = vector.broadcast %223 : vector<16x1xf32> to vector<16x64xf32>
    %227 = arith.mulf %225, %226 : vector<16x64xf32>
    %228 = vector.broadcast %207 : vector<1x64xf32> to vector<16x64xf32>
    %229 = arith.mulf %227, %228 : vector<16x64xf32>
    %230 = vector.broadcast %209 : vector<1x64xf32> to vector<16x64xf32>
    %231 = arith.addf %229, %230 : vector<16x64xf32>
    %232 = arith.truncf %231 : vector<16x64xf32> to vector<16x64xbf16>
    %c1 = arith.constant 1 : index
    %c0_97 = arith.constant 0 : index
    %c0_98 = arith.constant 0 : index
    %233 = vector.load %arg5[%c1, %c0_97, %c0_98] : memref<2x64x192xbf16, #tpu.memory_space<vmem>>, vector<1x64x192xbf16>
    %234 = vector.shape_cast %233 : vector<1x64x192xbf16> to vector<64x192xbf16>
    %cst_99 = arith.constant dense<0.000000e+00> : vector<16x192xf32>
    %235 = tpu.matmul %232, %234, %cst_99 {dimension_numbers = #tpu.dot_dimension_numbers<[1], [0], [0], [1], [0, 0, 1, 1], [], []>} : vector<16x64xbf16>, vector<64x192xbf16>, vector<16x192xf32> -> vector<16x192xf32>
    %c1_100 = arith.constant 1 : index
    %c0_101 = arith.constant 0 : index
    %c0_102 = arith.constant 0 : index
    %236 = vector.load %arg6[%c1_100, %c0_101, %c0_102] : memref<2x1x192xf32, #tpu.memory_space<vmem>>, vector<1x1x192xf32>
    %237 = vector.shape_cast %236 : vector<1x1x192xf32> to vector<1x192xf32>
    %238 = vector.broadcast %237 : vector<1x192xf32> to vector<16x192xf32>
    %239 = arith.addf %235, %238 : vector<16x192xf32>
    %240 = vector.shape_cast %239 : vector<16x192xf32> to vector<2x8x192xf32>
    %c1_103 = arith.constant 1 : index
    %c0_104 = arith.constant 0 : index
    %c0_105 = arith.constant 0 : index
    %241 = vector.load %arg7[%c1_103, %c0_104, %c0_105] : memref<2x64x64xbf16, #tpu.memory_space<vmem>>, vector<1x64x64xbf16>
    %242 = vector.shape_cast %241 : vector<1x64x64xbf16> to vector<64x64xbf16>
    %cst_106 = arith.constant 0.000000e+00 : f32
    %243 = vector.broadcast %cst_106 : f32 to vector<16x64xf32>
    %244 = vector.extract_strided_slice %240 {offsets = [0, 0, 0], sizes = [2, 8, 16], strides = [1, 1, 1]} : vector<2x8x192xf32> to vector<2x8x16xf32>
    %cst_107 = arith.constant 2.500000e-01 : f32
    %245 = vector.broadcast %cst_107 : f32 to vector<2x8x16xf32>
    %246 = arith.mulf %244, %245 : vector<2x8x16xf32>
    %247 = vector.extract_strided_slice %240 {offsets = [0, 0, 64], sizes = [2, 8, 16], strides = [1, 1, 1]} : vector<2x8x192xf32> to vector<2x8x16xf32>
    %248 = vector.extract_strided_slice %240 {offsets = [0, 0, 128], sizes = [2, 8, 16], strides = [1, 1, 1]} : vector<2x8x192xf32> to vector<2x8x16xf32>
    "tpu.trace_start"() <{level = 10 : i32, message = "bqd,bkd->bqk"}> : () -> ()
    %cst_108 = arith.constant dense<0.000000e+00> : vector<2x8x8xf32>
    %249 = tpu.matmul %246, %247, %cst_108 {dimension_numbers = #tpu.dot_dimension_numbers<[2], [2], [1], [1], [0, 0, 0, 1, 1, 1], [0], [0]>} : vector<2x8x16xf32>, vector<2x8x16xf32>, vector<2x8x8xf32> -> vector<2x8x8xf32>
    %cst_109 = arith.constant 0.000000e+00 : f32
    "tpu.trace_stop"() : () -> ()
    %250 = vector.broadcast %cst_109 : f32 to vector<2x1x8xf32>
    %251 = arith.cmpf oeq, %0, %250 : vector<2x1x8xf32>
    %cst_110 = arith.constant -3.40282347E+38 : f32
    %252 = vector.shape_cast %251 : vector<2x1x8xi1> to vector<2x1x8xi1>
    %253 = vector.broadcast %252 : vector<2x1x8xi1> to vector<2x8x8xi1>
    %254 = vector.broadcast %cst_110 : f32 to vector<2x8x8xf32>
    %255 = arith.select %253, %254, %249 : vector<2x8x8xi1>, vector<2x8x8xf32>
    %cst_111 = arith.constant dense<0xFF800000> : vector<2x8xf32>
    %256 = vector.multi_reduction <maximumf>, %255, %cst_111 [2] : vector<2x8x8xf32> to vector<2x8xf32>
    %257 = vector.shape_cast %256 : vector<2x8xf32> to vector<2x8x1xf32>
    %258 = vector.broadcast %257 : vector<2x8x1xf32> to vector<2x8x8xf32>
    %259 = arith.subf %255, %258 : vector<2x8x8xf32>
    %260 = math.exp %259 : vector<2x8x8xf32>
    %cst_112 = arith.constant dense<0.000000e+00> : vector<2x8xf32>
    %261 = vector.multi_reduction <add>, %260, %cst_112 [2] : vector<2x8x8xf32> to vector<2x8xf32>
    %262 = vector.shape_cast %261 : vector<2x8xf32> to vector<2x8x1xf32>
    %263 = tpu.reciprocal %262 {approx = true} : vector<2x8x1xf32> -> vector<2x8x1xf32>
    %264 = vector.broadcast %263 : vector<2x8x1xf32> to vector<2x8x8xf32>
    %265 = arith.mulf %260, %264 : vector<2x8x8xf32>
    "tpu.trace_start"() <{level = 10 : i32, message = "bqk,bkd->bqd"}> : () -> ()
    %cst_113 = arith.constant dense<0.000000e+00> : vector<2x8x16xf32>
    %266 = tpu.matmul %265, %248, %cst_113 {dimension_numbers = #tpu.dot_dimension_numbers<[2], [1], [1], [2], [0, 0, 0, 1, 1, 2], [0], [0]>} : vector<2x8x8xf32>, vector<2x8x16xf32>, vector<2x8x16xf32> -> vector<2x8x16xf32>
    "tpu.trace_stop"() : () -> ()
    %267 = vector.shape_cast %266 : vector<2x8x16xf32> to vector<16x16xf32>
    %268 = arith.truncf %267 : vector<16x16xf32> to vector<16x16xbf16>
    %269 = vector.extract_strided_slice %242 {offsets = [0, 0], sizes = [16, 64], strides = [1, 1]} : vector<64x64xbf16> to vector<16x64xbf16>
    %cst_114 = arith.constant dense<0.000000e+00> : vector<16x64xf32>
    %270 = tpu.matmul %268, %269, %cst_114 {dimension_numbers = #tpu.dot_dimension_numbers<[1], [0], [0], [1], [0, 0, 1, 1], [], []>} : vector<16x16xbf16>, vector<16x64xbf16>, vector<16x64xf32> -> vector<16x64xf32>
    %271 = arith.addf %243, %270 : vector<16x64xf32>
    %272 = vector.extract_strided_slice %240 {offsets = [0, 0, 16], sizes = [2, 8, 16], strides = [1, 1, 1]} : vector<2x8x192xf32> to vector<2x8x16xf32>
    %cst_115 = arith.constant 2.500000e-01 : f32
    %273 = vector.broadcast %cst_115 : f32 to vector<2x8x16xf32>
    %274 = arith.mulf %272, %273 : vector<2x8x16xf32>
    %275 = vector.extract_strided_slice %240 {offsets = [0, 0, 80], sizes = [2, 8, 16], strides = [1, 1, 1]} : vector<2x8x192xf32> to vector<2x8x16xf32>
    %276 = vector.extract_strided_slice %240 {offsets = [0, 0, 144], sizes = [2, 8, 16], strides = [1, 1, 1]} : vector<2x8x192xf32> to vector<2x8x16xf32>
    "tpu.trace_start"() <{level = 10 : i32, message = "bqd,bkd->bqk"}> : () -> ()
    %cst_116 = arith.constant dense<0.000000e+00> : vector<2x8x8xf32>
    %277 = tpu.matmul %274, %275, %cst_116 {dimension_numbers = #tpu.dot_dimension_numbers<[2], [2], [1], [1], [0, 0, 0, 1, 1, 1], [0], [0]>} : vector<2x8x16xf32>, vector<2x8x16xf32>, vector<2x8x8xf32> -> vector<2x8x8xf32>
    %cst_117 = arith.constant 0.000000e+00 : f32
    "tpu.trace_stop"() : () -> ()
    %278 = vector.broadcast %cst_117 : f32 to vector<2x1x8xf32>
    %279 = arith.cmpf oeq, %0, %278 : vector<2x1x8xf32>
    %cst_118 = arith.constant -3.40282347E+38 : f32
    %280 = vector.shape_cast %279 : vector<2x1x8xi1> to vector<2x1x8xi1>
    %281 = vector.broadcast %280 : vector<2x1x8xi1> to vector<2x8x8xi1>
    %282 = vector.broadcast %cst_118 : f32 to vector<2x8x8xf32>
    %283 = arith.select %281, %282, %277 : vector<2x8x8xi1>, vector<2x8x8xf32>
    %cst_119 = arith.constant dense<0xFF800000> : vector<2x8xf32>
    %284 = vector.multi_reduction <maximumf>, %283, %cst_119 [2] : vector<2x8x8xf32> to vector<2x8xf32>
    %285 = vector.shape_cast %284 : vector<2x8xf32> to vector<2x8x1xf32>
    %286 = vector.broadcast %285 : vector<2x8x1xf32> to vector<2x8x8xf32>
    %287 = arith.subf %283, %286 : vector<2x8x8xf32>
    %288 = math.exp %287 : vector<2x8x8xf32>
    %cst_120 = arith.constant dense<0.000000e+00> : vector<2x8xf32>
    %289 = vector.multi_reduction <add>, %288, %cst_120 [2] : vector<2x8x8xf32> to vector<2x8xf32>
    %290 = vector.shape_cast %289 : vector<2x8xf32> to vector<2x8x1xf32>
    %291 = tpu.reciprocal %290 {approx = true} : vector<2x8x1xf32> -> vector<2x8x1xf32>
    %292 = vector.broadcast %291 : vector<2x8x1xf32> to vector<2x8x8xf32>
    %293 = arith.mulf %288, %292 : vector<2x8x8xf32>
    "tpu.trace_start"() <{level = 10 : i32, message = "bqk,bkd->bqd"}> : () -> ()
    %cst_121 = arith.constant dense<0.000000e+00> : vector<2x8x16xf32>
    %294 = tpu.matmul %293, %276, %cst_121 {dimension_numbers = #tpu.dot_dimension_numbers<[2], [1], [1], [2], [0, 0, 0, 1, 1, 2], [0], [0]>} : vector<2x8x8xf32>, vector<2x8x16xf32>, vector<2x8x16xf32> -> vector<2x8x16xf32>
    "tpu.trace_stop"() : () -> ()
    %295 = vector.shape_cast %294 : vector<2x8x16xf32> to vector<16x16xf32>
    %296 = arith.truncf %295 : vector<16x16xf32> to vector<16x16xbf16>
    %297 = vector.extract_strided_slice %242 {offsets = [16, 0], sizes = [16, 64], strides = [1, 1]} : vector<64x64xbf16> to vector<16x64xbf16>
    %cst_122 = arith.constant dense<0.000000e+00> : vector<16x64xf32>
    %298 = tpu.matmul %296, %297, %cst_122 {dimension_numbers = #tpu.dot_dimension_numbers<[1], [0], [0], [1], [0, 0, 1, 1], [], []>} : vector<16x16xbf16>, vector<16x64xbf16>, vector<16x64xf32> -> vector<16x64xf32>
    %299 = arith.addf %271, %298 : vector<16x64xf32>
    %300 = vector.extract_strided_slice %240 {offsets = [0, 0, 32], sizes = [2, 8, 16], strides = [1, 1, 1]} : vector<2x8x192xf32> to vector<2x8x16xf32>
    %cst_123 = arith.constant 2.500000e-01 : f32
    %301 = vector.broadcast %cst_123 : f32 to vector<2x8x16xf32>
    %302 = arith.mulf %300, %301 : vector<2x8x16xf32>
    %303 = vector.extract_strided_slice %240 {offsets = [0, 0, 96], sizes = [2, 8, 16], strides = [1, 1, 1]} : vector<2x8x192xf32> to vector<2x8x16xf32>
    %304 = vector.extract_strided_slice %240 {offsets = [0, 0, 160], sizes = [2, 8, 16], strides = [1, 1, 1]} : vector<2x8x192xf32> to vector<2x8x16xf32>
    "tpu.trace_start"() <{level = 10 : i32, message = "bqd,bkd->bqk"}> : () -> ()
    %cst_124 = arith.constant dense<0.000000e+00> : vector<2x8x8xf32>
    %305 = tpu.matmul %302, %303, %cst_124 {dimension_numbers = #tpu.dot_dimension_numbers<[2], [2], [1], [1], [0, 0, 0, 1, 1, 1], [0], [0]>} : vector<2x8x16xf32>, vector<2x8x16xf32>, vector<2x8x8xf32> -> vector<2x8x8xf32>
    %cst_125 = arith.constant 0.000000e+00 : f32
    "tpu.trace_stop"() : () -> ()
    %306 = vector.broadcast %cst_125 : f32 to vector<2x1x8xf32>
    %307 = arith.cmpf oeq, %0, %306 : vector<2x1x8xf32>
    %cst_126 = arith.constant -3.40282347E+38 : f32
    %308 = vector.shape_cast %307 : vector<2x1x8xi1> to vector<2x1x8xi1>
    %309 = vector.broadcast %308 : vector<2x1x8xi1> to vector<2x8x8xi1>
    %310 = vector.broadcast %cst_126 : f32 to vector<2x8x8xf32>
    %311 = arith.select %309, %310, %305 : vector<2x8x8xi1>, vector<2x8x8xf32>
    %cst_127 = arith.constant dense<0xFF800000> : vector<2x8xf32>
    %312 = vector.multi_reduction <maximumf>, %311, %cst_127 [2] : vector<2x8x8xf32> to vector<2x8xf32>
    %313 = vector.shape_cast %312 : vector<2x8xf32> to vector<2x8x1xf32>
    %314 = vector.broadcast %313 : vector<2x8x1xf32> to vector<2x8x8xf32>
    %315 = arith.subf %311, %314 : vector<2x8x8xf32>
    %316 = math.exp %315 : vector<2x8x8xf32>
    %cst_128 = arith.constant dense<0.000000e+00> : vector<2x8xf32>
    %317 = vector.multi_reduction <add>, %316, %cst_128 [2] : vector<2x8x8xf32> to vector<2x8xf32>
    %318 = vector.shape_cast %317 : vector<2x8xf32> to vector<2x8x1xf32>
    %319 = tpu.reciprocal %318 {approx = true} : vector<2x8x1xf32> -> vector<2x8x1xf32>
    %320 = vector.broadcast %319 : vector<2x8x1xf32> to vector<2x8x8xf32>
    %321 = arith.mulf %316, %320 : vector<2x8x8xf32>
    "tpu.trace_start"() <{level = 10 : i32, message = "bqk,bkd->bqd"}> : () -> ()
    %cst_129 = arith.constant dense<0.000000e+00> : vector<2x8x16xf32>
    %322 = tpu.matmul %321, %304, %cst_129 {dimension_numbers = #tpu.dot_dimension_numbers<[2], [1], [1], [2], [0, 0, 0, 1, 1, 2], [0], [0]>} : vector<2x8x8xf32>, vector<2x8x16xf32>, vector<2x8x16xf32> -> vector<2x8x16xf32>
    "tpu.trace_stop"() : () -> ()
    %323 = vector.shape_cast %322 : vector<2x8x16xf32> to vector<16x16xf32>
    %324 = arith.truncf %323 : vector<16x16xf32> to vector<16x16xbf16>
    %325 = vector.extract_strided_slice %242 {offsets = [32, 0], sizes = [16, 64], strides = [1, 1]} : vector<64x64xbf16> to vector<16x64xbf16>
    %cst_130 = arith.constant dense<0.000000e+00> : vector<16x64xf32>
    %326 = tpu.matmul %324, %325, %cst_130 {dimension_numbers = #tpu.dot_dimension_numbers<[1], [0], [0], [1], [0, 0, 1, 1], [], []>} : vector<16x16xbf16>, vector<16x64xbf16>, vector<16x64xf32> -> vector<16x64xf32>
    %327 = arith.addf %299, %326 : vector<16x64xf32>
    %328 = vector.extract_strided_slice %240 {offsets = [0, 0, 48], sizes = [2, 8, 16], strides = [1, 1, 1]} : vector<2x8x192xf32> to vector<2x8x16xf32>
    %cst_131 = arith.constant 2.500000e-01 : f32
    %329 = vector.broadcast %cst_131 : f32 to vector<2x8x16xf32>
    %330 = arith.mulf %328, %329 : vector<2x8x16xf32>
    %331 = vector.extract_strided_slice %240 {offsets = [0, 0, 112], sizes = [2, 8, 16], strides = [1, 1, 1]} : vector<2x8x192xf32> to vector<2x8x16xf32>
    %332 = vector.extract_strided_slice %240 {offsets = [0, 0, 176], sizes = [2, 8, 16], strides = [1, 1, 1]} : vector<2x8x192xf32> to vector<2x8x16xf32>
    "tpu.trace_start"() <{level = 10 : i32, message = "bqd,bkd->bqk"}> : () -> ()
    %cst_132 = arith.constant dense<0.000000e+00> : vector<2x8x8xf32>
    %333 = tpu.matmul %330, %331, %cst_132 {dimension_numbers = #tpu.dot_dimension_numbers<[2], [2], [1], [1], [0, 0, 0, 1, 1, 1], [0], [0]>} : vector<2x8x16xf32>, vector<2x8x16xf32>, vector<2x8x8xf32> -> vector<2x8x8xf32>
    %cst_133 = arith.constant 0.000000e+00 : f32
    "tpu.trace_stop"() : () -> ()
    %334 = vector.broadcast %cst_133 : f32 to vector<2x1x8xf32>
    %335 = arith.cmpf oeq, %0, %334 : vector<2x1x8xf32>
    %cst_134 = arith.constant -3.40282347E+38 : f32
    %336 = vector.shape_cast %335 : vector<2x1x8xi1> to vector<2x1x8xi1>
    %337 = vector.broadcast %336 : vector<2x1x8xi1> to vector<2x8x8xi1>
    %338 = vector.broadcast %cst_134 : f32 to vector<2x8x8xf32>
    %339 = arith.select %337, %338, %333 : vector<2x8x8xi1>, vector<2x8x8xf32>
    %cst_135 = arith.constant dense<0xFF800000> : vector<2x8xf32>
    %340 = vector.multi_reduction <maximumf>, %339, %cst_135 [2] : vector<2x8x8xf32> to vector<2x8xf32>
    %341 = vector.shape_cast %340 : vector<2x8xf32> to vector<2x8x1xf32>
    %342 = vector.broadcast %341 : vector<2x8x1xf32> to vector<2x8x8xf32>
    %343 = arith.subf %339, %342 : vector<2x8x8xf32>
    %344 = math.exp %343 : vector<2x8x8xf32>
    %cst_136 = arith.constant dense<0.000000e+00> : vector<2x8xf32>
    %345 = vector.multi_reduction <add>, %344, %cst_136 [2] : vector<2x8x8xf32> to vector<2x8xf32>
    %346 = vector.shape_cast %345 : vector<2x8xf32> to vector<2x8x1xf32>
    %347 = tpu.reciprocal %346 {approx = true} : vector<2x8x1xf32> -> vector<2x8x1xf32>
    %348 = vector.broadcast %347 : vector<2x8x1xf32> to vector<2x8x8xf32>
    %349 = arith.mulf %344, %348 : vector<2x8x8xf32>
    "tpu.trace_start"() <{level = 10 : i32, message = "bqk,bkd->bqd"}> : () -> ()
    %cst_137 = arith.constant dense<0.000000e+00> : vector<2x8x16xf32>
    %350 = tpu.matmul %349, %332, %cst_137 {dimension_numbers = #tpu.dot_dimension_numbers<[2], [1], [1], [2], [0, 0, 0, 1, 1, 2], [0], [0]>} : vector<2x8x8xf32>, vector<2x8x16xf32>, vector<2x8x16xf32> -> vector<2x8x16xf32>
    "tpu.trace_stop"() : () -> ()
    %351 = vector.shape_cast %350 : vector<2x8x16xf32> to vector<16x16xf32>
    %352 = arith.truncf %351 : vector<16x16xf32> to vector<16x16xbf16>
    %353 = vector.extract_strided_slice %242 {offsets = [48, 0], sizes = [16, 64], strides = [1, 1]} : vector<64x64xbf16> to vector<16x64xbf16>
    %cst_138 = arith.constant dense<0.000000e+00> : vector<16x64xf32>
    %354 = tpu.matmul %352, %353, %cst_138 {dimension_numbers = #tpu.dot_dimension_numbers<[1], [0], [0], [1], [0, 0, 1, 1], [], []>} : vector<16x16xbf16>, vector<16x64xbf16>, vector<16x64xf32> -> vector<16x64xf32>
    %355 = arith.addf %327, %354 : vector<16x64xf32>
    %c1_139 = arith.constant 1 : index
    %c0_140 = arith.constant 0 : index
    %c0_141 = arith.constant 0 : index
    %356 = vector.load %arg8[%c1_139, %c0_140, %c0_141] : memref<2x1x64xf32, #tpu.memory_space<vmem>>, vector<1x1x64xf32>
    %357 = vector.shape_cast %356 : vector<1x1x64xf32> to vector<1x64xf32>
    %358 = vector.broadcast %357 : vector<1x64xf32> to vector<16x64xf32>
    %359 = arith.addf %355, %358 : vector<16x64xf32>
    %360 = arith.addf %359, %231 : vector<16x64xf32>
    %c1_142 = arith.constant 1 : index
    %c0_143 = arith.constant 0 : index
    %c0_144 = arith.constant 0 : index
    %361 = vector.load %arg9[%c1_142, %c0_143, %c0_144] : memref<2x1x64xf32, #tpu.memory_space<vmem>>, vector<1x1x64xf32>
    %362 = vector.shape_cast %361 : vector<1x1x64xf32> to vector<1x64xf32>
    %c1_145 = arith.constant 1 : index
    %c0_146 = arith.constant 0 : index
    %c0_147 = arith.constant 0 : index
    %363 = vector.load %arg10[%c1_145, %c0_146, %c0_147] : memref<2x1x64xf32, #tpu.memory_space<vmem>>, vector<1x1x64xf32>
    %364 = vector.shape_cast %363 : vector<1x1x64xf32> to vector<1x64xf32>
    %cst_148 = arith.constant dense<0.000000e+00> : vector<16xf32>
    %365 = vector.multi_reduction <add>, %360, %cst_148 [1] : vector<16x64xf32> to vector<16xf32>
    %366 = vector.shape_cast %365 : vector<16xf32> to vector<16x1xf32>
    %cst_149 = arith.constant 6.400000e+01 : f32
    %367 = vector.broadcast %cst_149 : f32 to vector<16x1xf32>
    %368 = arith.divf %366, %367 : vector<16x1xf32>
    %369 = vector.broadcast %368 : vector<16x1xf32> to vector<16x64xf32>
    %370 = arith.subf %360, %369 : vector<16x64xf32>
    %371 = arith.mulf %370, %370 : vector<16x64xf32>
    %cst_150 = arith.constant dense<0.000000e+00> : vector<16xf32>
    %372 = vector.multi_reduction <add>, %371, %cst_150 [1] : vector<16x64xf32> to vector<16xf32>
    %373 = vector.shape_cast %372 : vector<16xf32> to vector<16x1xf32>
    %cst_151 = arith.constant 6.400000e+01 : f32
    %374 = vector.broadcast %cst_151 : f32 to vector<16x1xf32>
    %375 = arith.divf %373, %374 : vector<16x1xf32>
    %cst_152 = arith.constant 9.99999996E-13 : f32
    %376 = vector.broadcast %cst_152 : f32 to vector<16x1xf32>
    %377 = arith.addf %375, %376 : vector<16x1xf32>
    %378 = math.rsqrt %377 : vector<16x1xf32>
    %379 = vector.broadcast %368 : vector<16x1xf32> to vector<16x64xf32>
    %380 = arith.subf %360, %379 : vector<16x64xf32>
    %381 = vector.broadcast %378 : vector<16x1xf32> to vector<16x64xf32>
    %382 = arith.mulf %380, %381 : vector<16x64xf32>
    %383 = vector.broadcast %362 : vector<1x64xf32> to vector<16x64xf32>
    %384 = arith.mulf %382, %383 : vector<16x64xf32>
    %385 = vector.broadcast %364 : vector<1x64xf32> to vector<16x64xf32>
    %386 = arith.addf %384, %385 : vector<16x64xf32>
    %387 = arith.truncf %386 : vector<16x64xf32> to vector<16x64xbf16>
    %c1_153 = arith.constant 1 : index
    %c0_154 = arith.constant 0 : index
    %c0_155 = arith.constant 0 : index
    %388 = vector.load %arg11[%c1_153, %c0_154, %c0_155] : memref<2x64x128xbf16, #tpu.memory_space<vmem>>, vector<1x64x128xbf16>
    %389 = vector.shape_cast %388 : vector<1x64x128xbf16> to vector<64x128xbf16>
    %cst_156 = arith.constant dense<0.000000e+00> : vector<16x128xf32>
    %390 = tpu.matmul %387, %389, %cst_156 {dimension_numbers = #tpu.dot_dimension_numbers<[1], [0], [0], [1], [0, 0, 1, 1], [], []>} : vector<16x64xbf16>, vector<64x128xbf16>, vector<16x128xf32> -> vector<16x128xf32>
    %c1_157 = arith.constant 1 : index
    %c0_158 = arith.constant 0 : index
    %c0_159 = arith.constant 0 : index
    %391 = vector.load %arg12[%c1_157, %c0_158, %c0_159] : memref<2x1x128xf32, #tpu.memory_space<vmem>>, vector<1x1x128xf32>
    %392 = vector.shape_cast %391 : vector<1x1x128xf32> to vector<1x128xf32>
    %393 = vector.broadcast %392 : vector<1x128xf32> to vector<16x128xf32>
    %394 = arith.addf %390, %393 : vector<16x128xf32>
    %cst_160 = arith.constant 5.000000e-01 : f32
    %395 = vector.broadcast %cst_160 : f32 to vector<16x128xf32>
    %396 = arith.mulf %395, %394 : vector<16x128xf32>
    %cst_161 = arith.constant 0.707106769 : f32
    %397 = vector.broadcast %cst_161 : f32 to vector<16x128xf32>
    %398 = arith.mulf %394, %397 : vector<16x128xf32>
    %399 = math.erf %398 : vector<16x128xf32>
    %cst_162 = arith.constant 1.000000e+00 : f32
    %400 = vector.broadcast %cst_162 : f32 to vector<16x128xf32>
    %401 = arith.addf %400, %399 : vector<16x128xf32>
    %402 = arith.mulf %396, %401 : vector<16x128xf32>
    %403 = arith.truncf %402 : vector<16x128xf32> to vector<16x128xbf16>
    %c1_163 = arith.constant 1 : index
    %c0_164 = arith.constant 0 : index
    %c0_165 = arith.constant 0 : index
    %404 = vector.load %arg13[%c1_163, %c0_164, %c0_165] : memref<2x128x64xbf16, #tpu.memory_space<vmem>>, vector<1x128x64xbf16>
    %405 = vector.shape_cast %404 : vector<1x128x64xbf16> to vector<128x64xbf16>
    %cst_166 = arith.constant dense<0.000000e+00> : vector<16x64xf32>
    %406 = tpu.matmul %403, %405, %cst_166 {dimension_numbers = #tpu.dot_dimension_numbers<[1], [0], [0], [1], [0, 0, 1, 1], [], []>} : vector<16x128xbf16>, vector<128x64xbf16>, vector<16x64xf32> -> vector<16x64xf32>
    %c1_167 = arith.constant 1 : index
    %c0_168 = arith.constant 0 : index
    %c0_169 = arith.constant 0 : index
    %407 = vector.load %arg14[%c1_167, %c0_168, %c0_169] : memref<2x1x64xf32, #tpu.memory_space<vmem>>, vector<1x1x64xf32>
    %408 = vector.shape_cast %407 : vector<1x1x64xf32> to vector<1x64xf32>
    %409 = vector.broadcast %408 : vector<1x64xf32> to vector<16x64xf32>
    %410 = arith.addf %406, %409 : vector<16x64xf32>
    %411 = arith.addf %410, %386 : vector<16x64xf32>
    %c1_170 = arith.constant 1 : index
    %c0_171 = arith.constant 0 : index
    %c0_172 = arith.constant 0 : index
    %412 = vector.load %arg15[%c1_170, %c0_171, %c0_172] : memref<2x1x64xf32, #tpu.memory_space<vmem>>, vector<1x1x64xf32>
    %413 = vector.shape_cast %412 : vector<1x1x64xf32> to vector<1x64xf32>
    %c1_173 = arith.constant 1 : index
    %c0_174 = arith.constant 0 : index
    %c0_175 = arith.constant 0 : index
    %414 = vector.load %arg16[%c1_173, %c0_174, %c0_175] : memref<2x1x64xf32, #tpu.memory_space<vmem>>, vector<1x1x64xf32>
    %415 = vector.shape_cast %414 : vector<1x1x64xf32> to vector<1x64xf32>
    %cst_176 = arith.constant dense<0.000000e+00> : vector<16xf32>
    %416 = vector.multi_reduction <add>, %411, %cst_176 [1] : vector<16x64xf32> to vector<16xf32>
    %417 = vector.shape_cast %416 : vector<16xf32> to vector<16x1xf32>
    %cst_177 = arith.constant 6.400000e+01 : f32
    %418 = vector.broadcast %cst_177 : f32 to vector<16x1xf32>
    %419 = arith.divf %417, %418 : vector<16x1xf32>
    %420 = vector.broadcast %419 : vector<16x1xf32> to vector<16x64xf32>
    %421 = arith.subf %411, %420 : vector<16x64xf32>
    %422 = arith.mulf %421, %421 : vector<16x64xf32>
    %cst_178 = arith.constant dense<0.000000e+00> : vector<16xf32>
    %423 = vector.multi_reduction <add>, %422, %cst_178 [1] : vector<16x64xf32> to vector<16xf32>
    %424 = vector.shape_cast %423 : vector<16xf32> to vector<16x1xf32>
    %cst_179 = arith.constant 6.400000e+01 : f32
    %425 = vector.broadcast %cst_179 : f32 to vector<16x1xf32>
    %426 = arith.divf %424, %425 : vector<16x1xf32>
    %cst_180 = arith.constant 9.99999996E-13 : f32
    %427 = vector.broadcast %cst_180 : f32 to vector<16x1xf32>
    %428 = arith.addf %426, %427 : vector<16x1xf32>
    %429 = math.rsqrt %428 : vector<16x1xf32>
    %430 = vector.broadcast %419 : vector<16x1xf32> to vector<16x64xf32>
    %431 = arith.subf %411, %430 : vector<16x64xf32>
    %432 = vector.broadcast %429 : vector<16x1xf32> to vector<16x64xf32>
    %433 = arith.mulf %431, %432 : vector<16x64xf32>
    %434 = vector.broadcast %413 : vector<1x64xf32> to vector<16x64xf32>
    %435 = arith.mulf %433, %434 : vector<16x64xf32>
    %436 = vector.broadcast %415 : vector<1x64xf32> to vector<16x64xf32>
    %437 = arith.addf %435, %436 : vector<16x64xf32>
    %438 = arith.truncf %437 : vector<16x64xf32> to vector<16x64xbf16>
    %c0_181 = arith.constant 0 : index
    %c0_182 = arith.constant 0 : index
    %439 = vector.load %arg17[%c0_181, %c0_182] : memref<64x128xbf16, #tpu.memory_space<vmem>>, vector<64x128xbf16>
    %cst_183 = arith.constant dense<0.000000e+00> : vector<16x128xf32>
    %440 = tpu.matmul %438, %439, %cst_183 {dimension_numbers = #tpu.dot_dimension_numbers<[1], [0], [0], [1], [0, 0, 1, 1], [], []>} : vector<16x64xbf16>, vector<64x128xbf16>, vector<16x128xf32> -> vector<16x128xf32>
    %c0_184 = arith.constant 0 : index
    %c0_185 = arith.constant 0 : index
    %441 = vector.load %arg18[%c0_184, %c0_185] : memref<1x128xf32, #tpu.memory_space<vmem>>, vector<1x128xf32>
    %442 = vector.broadcast %441 : vector<1x128xf32> to vector<16x128xf32>
    %443 = arith.addf %440, %442 : vector<16x128xf32>
    %c0_186 = arith.constant 0 : index
    %c0_187 = arith.constant 0 : index
    %444 = vector.load %arg19[%c0_186, %c0_187] : memref<16x128xf32, #tpu.memory_space<vmem>>, vector<16x128xf32>
    tpu.vector_store %arg19[%c0_186, %c0_187], %443 {strides = array<i32>} : memref<16x128xf32, #tpu.memory_space<vmem>>, vector<16x128xf32>,
    %c0_188 = arith.constant 0 : index
    %c0_189 = arith.constant 0 : index
    %445 = vector.load %arg2[%c0_188, %c0_189] : memref<16x1xi32, #tpu.memory_space<vmem>>, vector<16x1xi32>
    %446 = tpu.iota {dimensions = array<i32: 1>} : vector<16x128xi32>
    %c5_i32 = arith.constant 5 : i32
    %447 = vector.broadcast %c5_i32 : i32 to vector<16x128xi32>
    %448 = arith.cmpi slt, %446, %447 : vector<16x128xi32>
    %cst_190 = arith.constant -3.40282347E+38 : f32
    %449 = vector.broadcast %cst_190 : f32 to vector<16x128xf32>
    %450 = arith.select %448, %443, %449 : vector<16x128xi1>, vector<16x128xf32>
    %cst_191 = arith.constant dense<0xFF800000> : vector<16xf32>
    %451 = vector.multi_reduction <maximumf>, %450, %cst_191 [1] : vector<16x128xf32> to vector<16xf32>
    %452 = vector.shape_cast %451 : vector<16xf32> to vector<16x1xf32>
    %453 = vector.broadcast %452 : vector<16x1xf32> to vector<16x128xf32>
    %454 = arith.subf %450, %453 : vector<16x128xf32>
    %455 = math.exp %454 : vector<16x128xf32>
    %cst_192 = arith.constant dense<0.000000e+00> : vector<16xf32>
    %456 = vector.multi_reduction <add>, %455, %cst_192 [1] : vector<16x128xf32> to vector<16xf32>
    %457 = vector.shape_cast %456 : vector<16xf32> to vector<16x1xf32>
    %458 = math.log %457 : vector<16x1xf32>
    %459 = arith.addf %458, %452 : vector<16x1xf32>
    %460 = vector.broadcast %459 : vector<16x1xf32> to vector<16x128xf32>
    %461 = arith.subf %450, %460 : vector<16x128xf32>
    %462 = vector.broadcast %445 : vector<16x1xi32> to vector<16x128xi32>
    %463 = arith.cmpi eq, %446, %462 : vector<16x128xi32>
    %464 = arith.extui %463 : vector<16x128xi1> to vector<16x128xi32>
    %465 = arith.sitofp %464 : vector<16x128xi32> to vector<16x128xf32>
    %466 = arith.mulf %465, %461 : vector<16x128xf32>
    %cst_193 = arith.constant dense<0.000000e+00> : vector<16xf32>
    %467 = vector.multi_reduction <add>, %466, %cst_193 [1] : vector<16x128xf32> to vector<16xf32>
    %468 = vector.shape_cast %467 : vector<16xf32> to vector<16x1xf32>
    %cst_194 = arith.constant 0.000000e+00 : f32
    %469 = vector.broadcast %cst_194 : f32 to vector<16x1xf32>
    %470 = arith.subf %469, %468 : vector<16x1xf32>
    %c-100_i32 = arith.constant -100 : i32
    %471 = vector.broadcast %c-100_i32 : i32 to vector<16x1xi32>
    %472 = arith.cmpi ne, %445, %471 : vector<16x1xi32>
    %473 = arith.extui %472 : vector<16x1xi1> to vector<16x1xi32>
    %474 = arith.sitofp %473 : vector<16x1xi32> to vector<16x1xf32>
    %475 = arith.mulf %470, %474 : vector<16x1xf32>
    %476 = vector.shape_cast %475 : vector<16x1xf32> to vector<1x16x1xf32>
    %cst_195 = arith.constant dense<0.000000e+00> : vector<1xf32>
    %477 = vector.multi_reduction <add>, %476, %cst_195 [1, 2] : vector<1x16x1xf32> to vector<1xf32>
    %478 = vector.shape_cast %477 : vector<1xf32> to vector<1x1x1xf32>
    %479 = vector.extract %478[0, 0, 0] : f32 from vector<1x1x1xf32>
    %480 = vector.broadcast %479 : f32 to vector<1x1xf32>
    %481 = vector.shape_cast %474 : vector<16x1xf32> to vector<1x16x1xf32>
    %cst_196 = arith.constant dense<0.000000e+00> : vector<1xf32>
    %482 = vector.multi_reduction <add>, %481, %cst_196 [1, 2] : vector<1x16x1xf32> to vector<1xf32>
    %483 = vector.shape_cast %482 : vector<1xf32> to vector<1x1x1xf32>
    %484 = vector.extract %483[0, 0, 0] : f32 from vector<1x1x1xf32>
    %485 = vector.broadcast %484 : f32 to vector<1x1xf32>
    %cst_197 = arith.constant 1.000000e+00 : f32
    %486 = vector.broadcast %cst_197 : f32 to vector<1x1xf32>
    %487 = arith.maximumf %485, %486 : vector<1x1xf32>
    %488 = arith.divf %480, %487 : vector<1x1xf32>
    %c0_198 = arith.constant 0 : index
    %c0_199 = arith.constant 0 : index
    %489 = vector.load %arg20[%c0_198, %c0_199] : memref<1x1xf32, #tpu.memory_space<vmem>>, vector<1x1xf32>
    tpu.vector_store %arg20[%c0_198, %c0_199], %488 {strides = array<i32>} : memref<1x1xf32, #tpu.memory_space<vmem>>, vector<1x1xf32>,
    return
  }
}

</mosaic_0001>

<llo_original>
// kernel: distilbert_forward.1
$region0: #{distilbert_forward.1}
  #allocation0 [shape = 'u32[]', space=smem, size = 0x4, offset = 0x4, fixed_abs, tag = 'smem constant byte address 0x4 - core index']
  #allocation1 [shape = 'u32[72,128]{1,0:T(1,128)}', space=vmem, size = 0x9000, scoped, tag = 'internal scratch']
  %s0 = inlined_call_operand.vmem [shape: f32[16,64], index: 0, kind: input, shape index: {}]
  %s1 = inlined_call_operand.vmem [shape: f32[2,1,8], index: 1, kind: input, shape index: {}]
  %s2 = inlined_call_operand.vmem [shape: s32[16,1], index: 2, kind: input, shape index: {}]
  %s3 = inlined_call_operand.vmem [shape: f32[1,64], index: 3, kind: input, shape index: {}]
  %s4 = inlined_call_operand.vmem [shape: f32[1,64], index: 4, kind: input, shape index: {}]
  %s5 = inlined_call_operand.vmem [shape: bf16[2,64,192], index: 5, kind: input, shape index: {}]
  %s6 = inlined_call_operand.vmem [shape: f32[2,1,192], index: 6, kind: input, shape index: {}]
  %s7 = inlined_call_operand.vmem [shape: bf16[2,64,64], index: 7, kind: input, shape index: {}]
  %s8 = inlined_call_operand.vmem [shape: f32[2,1,64], index: 8, kind: input, shape index: {}]
  %s9 = inlined_call_operand.vmem [shape: f32[2,1,64], index: 9, kind: input, shape index: {}]
  %s10 = inlined_call_operand.vmem [shape: f32[2,1,64], index: 10, kind: input, shape index: {}]
  %s11 = inlined_call_operand.vmem [shape: bf16[2,64,128], index: 11, kind: input, shape index: {}]
  %s12 = inlined_call_operand.vmem [shape: f32[2,1,128], index: 12, kind: input, shape index: {}]
  %s13 = inlined_call_operand.vmem [shape: bf16[2,128,64], index: 13, kind: input, shape index: {}]
  %s14 = inlined_call_operand.vmem [shape: f32[2,1,64], index: 14, kind: input, shape index: {}]
  %s15 = inlined_call_operand.vmem [shape: f32[2,1,64], index: 15, kind: input, shape index: {}]
  %s16 = inlined_call_operand.vmem [shape: f32[2,1,64], index: 16, kind: input, shape index: {}]
  %s17 = inlined_call_operand.vmem [shape: bf16[64,128], index: 17, kind: input, shape index: {}]
  %s18 = inlined_call_operand.vmem [shape: f32[1,128], index: 18, kind: input, shape index: {}]
  %s19 = inlined_call_operand.vmem [shape: f32[16,128], index: 19, kind: output, shape index: {0}]
  %s20 = inlined_call_operand.hbm [shape: f32[1,1], index: 20, kind: output, shape index: {1}]
  %21 = xla_tuple %s19, %s20
  %s22 = sld [smem:[#allocation0]]
  $region94: #{distilbert_forward.1} parent=0
    _
  %s24 = ssub.s32 1, %s22
  %s25 = scalar_select 0, %s24, %s22
  $region1: #{distilbert_forward.1} parent=0
    #allocation2 [shape = 'u8[512]{0}', space=vmem, size = 0x400, scoped, tag = 'output window, operand 1, single buffered']
    #allocation3 [shape = 's32[1]{0}', space=sflag, size = 0x4, scoped, tag = 'scoped memory for distilbert_forward.1']
    %26 = vsyncpa [#allocation3], 0
    // Predicated region
    $region2: #{distilbert_forward.1} parent=1 // pred_check
      _
    $region3: #{distilbert_forward.1} parent=1 // pred_check_branch
      %28 = sbr.rel (0) target = $region5
    $region4: #{distilbert_forward.1} parent=1 // pred_region
      _
    $region5: #{distilbert_forward.1} parent=1 // pred_fallthru
      _
    // Predicated region
    $region6: #{distilbert_forward.1} parent=1 // pred_check
      _
    $region7: #{distilbert_forward.1} parent=1 // pred_check_branch
      %30 = sbr.rel (0) target = $region9
    $region8: #{distilbert_forward.1} parent=1 // pred_region
      _
    $region9: #{distilbert_forward.1} parent=1 // pred_fallthru
      _
    // Predicated region
    $region10: #{distilbert_forward.1} parent=1 // pred_check
      _
    $region11: #{distilbert_forward.1} parent=1 // pred_check_branch
      %32 = sbr.rel (0) target = $region13
    $region12: #{distilbert_forward.1} parent=1 // pred_region
      _
    $region13: #{distilbert_forward.1} parent=1 // pred_fallthru
      _
    // Predicated region
    $region14: #{distilbert_forward.1} parent=1 // pred_check
      _
    $region15: #{distilbert_forward.1} parent=1 // pred_check_branch
      %34 = sbr.rel (0) target = $region17
    $region16: #{distilbert_forward.1} parent=1 // pred_region
      _
    $region17: #{distilbert_forward.1} parent=1 // pred_fallthru
      _
    // Predicated region
    $region18: #{distilbert_forward.1} parent=1 // pred_check
      _
    $region19: #{distilbert_forward.1} parent=1 // pred_check_branch
      %36 = sbr.rel (0) target = $region21
    $region20: #{distilbert_forward.1} parent=1 // pred_region
      _
    $region21: #{distilbert_forward.1} parent=1 // pred_fallthru
      _
    // Predicated region
    $region22: #{distilbert_forward.1} parent=1 // pred_check
      _
    $region23: #{distilbert_forward.1} parent=1 // pred_check_branch
      %38 = sbr.rel (0) target = $region25
    $region24: #{distilbert_forward.1} parent=1 // pred_region
      _
    $region25: #{distilbert_forward.1} parent=1 // pred_fallthru
      _
    // Predicated region
    $region26: #{distilbert_forward.1} parent=1 // pred_check
      _
    $region27: #{distilbert_forward.1} parent=1 // pred_check_branch
      %40 = sbr.rel (0) target = $region29
    $region28: #{distilbert_forward.1} parent=1 // pred_region
      _
    $region29: #{distilbert_forward.1} parent=1 // pred_fallthru
      _
    // Predicated region
    $region30: #{distilbert_forward.1} parent=1 // pred_check
      _
    $region31: #{distilbert_forward.1} parent=1 // pred_check_branch
      %42 = sbr.rel (0) target = $region33
    $region32: #{distilbert_forward.1} parent=1 // pred_region
      _
    $region33: #{distilbert_forward.1} parent=1 // pred_fallthru
      _
    // Predicated region
    $region34: #{distilbert_forward.1} parent=1 // pred_check
      _
    $region35: #{distilbert_forward.1} parent=1 // pred_check_branch
      %44 = sbr.rel (0) target = $region37
    $region36: #{distilbert_forward.1} parent=1 // pred_region
      _
    $region37: #{distilbert_forward.1} parent=1 // pred_fallthru
      _
    // Predicated region
    $region38: #{distilbert_forward.1} parent=1 // pred_check
      _
    $region39: #{distilbert_forward.1} parent=1 // pred_check_branch
      %46 = sbr.rel (0) target = $region41
    $region40: #{distilbert_forward.1} parent=1 // pred_region
      _
    $region41: #{distilbert_forward.1} parent=1 // pred_fallthru
      _
    // Predicated region
    $region42: #{distilbert_forward.1} parent=1 // pred_check
      _
    $region43: #{distilbert_forward.1} parent=1 // pred_check_branch
      %48 = sbr.rel (0) target = $region45
    $region44: #{distilbert_forward.1} parent=1 // pred_region
      _
    $region45: #{distilbert_forward.1} parent=1 // pred_fallthru
      _
    // Predicated region
    $region46: #{distilbert_forward.1} parent=1 // pred_check
      _
    $region47: #{distilbert_forward.1} parent=1 // pred_check_branch
      %50 = sbr.rel (0) target = $region49
    $region48: #{distilbert_forward.1} parent=1 // pred_region
      _
    $region49: #{distilbert_forward.1} parent=1 // pred_fallthru
      _
    // Predicated region
    $region50: #{distilbert_forward.1} parent=1 // pred_check
      _
    $region51: #{distilbert_forward.1} parent=1 // pred_check_branch
      %52 = sbr.rel (0) target = $region53
    $region52: #{distilbert_forward.1} parent=1 // pred_region
      _
    $region53: #{distilbert_forward.1} parent=1 // pred_fallthru
      _
    // Predicated region
    $region54: #{distilbert_forward.1} parent=1 // pred_check
      _
    $region55: #{distilbert_forward.1} parent=1 // pred_check_branch
      %54 = sbr.rel (0) target = $region57
    $region56: #{distilbert_forward.1} parent=1 // pred_region
      _
    $region57: #{distilbert_forward.1} parent=1 // pred_fallthru
      _
    // Predicated region
    $region58: #{distilbert_forward.1} parent=1 // pred_check
      _
    $region59: #{distilbert_forward.1} parent=1 // pred_check_branch
      %56 = sbr.rel (0) target = $region61
    $region60: #{distilbert_forward.1} parent=1 // pred_region
      _
    $region61: #{distilbert_forward.1} parent=1 // pred_fallthru
      _
    // Predicated region
    $region62: #{distilbert_forward.1} parent=1 // pred_check
      _
    $region63: #{distilbert_forward.1} parent=1 // pred_check_branch
      %58 = sbr.rel (0) target = $region65
    $region64: #{distilbert_forward.1} parent=1 // pred_region
      _
    $region65: #{distilbert_forward.1} parent=1 // pred_fallthru
      _
    // Predicated region
    $region66: #{distilbert_forward.1} parent=1 // pred_check
      _
    $region67: #{distilbert_forward.1} parent=1 // pred_check_branch
      %60 = sbr.rel (0) target = $region69
    $region68: #{distilbert_forward.1} parent=1 // pred_region
      _
    $region69: #{distilbert_forward.1} parent=1 // pred_fallthru
      _
    // Predicated region
    $region70: #{distilbert_forward.1} parent=1 // pred_check
      _
    $region71: #{distilbert_forward.1} parent=1 // pred_check_branch
      %62 = sbr.rel (0) target = $region73
    $region72: #{distilbert_forward.1} parent=1 // pred_region
      _
    $region73: #{distilbert_forward.1} parent=1 // pred_fallthru
      _
    // Predicated region
    $region74: #{distilbert_forward.1} parent=1 // pred_check
      _
    $region75: #{distilbert_forward.1} parent=1 // pred_check_branch
      %64 = sbr.rel (0) target = $region77
    $region76: #{distilbert_forward.1} parent=1 // pred_region
      _
    $region77: #{distilbert_forward.1} parent=1 // pred_fallthru
      _
    %v66 = vld [vmem:[%s1] sm:$0x1]
    %v67 = vld [vmem:[%s1 + $0x1] sm:$0x1]
    %v68 = vld [vmem:[%s0] sm:$0xff]
    %v69 = vld [vmem:[%s0 + $0x8] sm:$0xff]
    %v70 = vld [vmem:[%s3] sm:$0x1]
    %v71 = vld [vmem:[%s4] sm:$0x1]
    %vm72 = vcmask 523264
    %v73 = vsel %vm72, %v68, 0.0
    %74 = vadd.xlane.f32.xlu0 %v73
    %v75 = vpop.xlane.xlu0 %74
    %v76 = vsel %vm72, %v69, 0.0
    %77 = vadd.xlane.f32.xlu0 %v76
    %v78 = vpop.xlane.xlu0 %77
    %v79 = vrcp.pop 64.0
    %v80 = vmul.f32 64.0, %v79
    %v81 = vsub.f32 1.0, %v80
    %v82 = vmul.f32 %v79, %v81
    %v83 = vadd.f32 %v79, %v82
    %vm84 = vweird.f32 %v79
    %v85 = vsel %vm84, %v79, %v83
    %v86 = vmul.f32 %v75, %v85
    %v87 = vmul.f32 %v78, %v85
    %v88 = vsub.f32 %v68, %v86
    %v89 = vsub.f32 %v69, %v87
    %v90 = vmul.f32 %v88, %v88
    %v91 = vmul.f32 %v89, %v89
    %v92 = vsel %vm72, %v90, 0.0
    %93 = vadd.xlane.f32.xlu0 %v92
    %v94 = vpop.xlane.xlu0 %93
    %v95 = vsel %vm72, %v91, 0.0
    %96 = vadd.xlane.f32.xlu0 %v95
    %v97 = vpop.xlane.xlu0 %96
    %v98 = vmul.f32 %v94, %v85
    %v99 = vmul.f32 %v97, %v85
    %v100 = vadd.f32 %v98, 1e-12
    %v101 = vadd.f32 %v99, 1e-12
    %v102 = vrsqrt.pop %v100
    %v103 = vmul.f32 %v102, %v100
    %v104 = vmul.f32 %v103, %v102
    %v105 = vmul.f32 0.5, %v104
    %v106 = vsub.f32 1.5, %v105
    %v107 = vmul.f32 %v102, %v106
    %vm108 = vweird.f32 %v100
    %vm109 = vweird.f32 %v102
    %vm110 = vmor %vm108, %vm109
    %v111 = vsel %vm110, %v102, %v107
    %v112 = vrsqrt.pop %v101
    %v113 = vmul.f32 %v112, %v101
    %v114 = vmul.f32 %v113, %v112
    %v115 = vmul.f32 0.5, %v114
    %v116 = vsub.f32 1.5, %v115
    %v117 = vmul.f32 %v112, %v116
    %vm118 = vweird.f32 %v101
    %vm119 = vweird.f32 %v112
    %vm120 = vmor %vm118, %vm119
    %v121 = vsel %vm120, %v112, %v117
    %v122 = vmul.f32 %v88, %v111
    %v123 = vmul.f32 %v89, %v121
    %v125 = vperm.slane %v70, 0
    %v127 = vmul.f32 %v122, %v125
    %v128 = vmul.f32 %v123, %v125
    %v130 = vperm.slane %v71, 0
    %v132 = vadd.f32 %v127, %v130
    %v133 = vadd.f32 %v128, %v130
    %v134 = vpack.c.bf16 %v133, %v132
    %v135 = vld [vmem:[%s5] sm:$0xff]
    %v136 = vld [vmem:[%s5 + $0x8] sm:$0xff]
    %v137 = vld [vmem:[%s5 + $0x10] sm:$0xff]
    %v138 = vld [vmem:[%s5 + $0x18] sm:$0xff]
    %v139 = vld [vmem:[%s5 + $0x20] sm:$0xff]
    %v140 = vld [vmem:[%s5 + $0x28] sm:$0xff]
    %v141 = vld [vmem:[%s5 + $0x30] sm:$0xff]
    %v142 = vld [vmem:[%s5 + $0x38] sm:$0xff]
    %v143 = vld [vmem:[%s6] sm:$0x3]
    %v145 = vperm.slane %v143, 0
    %v146 = vperm.slane %v143, 1
    %v157 = vunpack.c.l.b16 %v135
    %v158 = vunpack.c.h.b16 %v135
    %v159 = vunpack.c.l.b16 %v136
    %v160 = vunpack.c.h.b16 %v136
    %v161 = vunpack.c.l.b16 %v137
    %v162 = vunpack.c.h.b16 %v137
    %v163 = vunpack.c.l.b16 %v138
    %v164 = vunpack.c.h.b16 %v138
    %v165 = vunpack.c.l.b16 %v139
    %v166 = vunpack.c.h.b16 %v139
    %v167 = vunpack.c.l.b16 %v140
    %v168 = vunpack.c.h.b16 %v140
    %v169 = vunpack.c.l.b16 %v141
    %v170 = vunpack.c.h.b16 %v141
    %v171 = vunpack.c.l.b16 %v142
    %v172 = vunpack.c.h.b16 %v142
    %v173 = vpack.c.b16 %v159, %v157
    %v174 = vpack.c.b16 %v160, %v158
    %v175 = vpack.c.b16 %v163, %v161
    %v176 = vpack.c.b16 %v164, %v162
    %v177 = vpack.c.b16 %v167, %v165
    %v178 = vpack.c.b16 %v168, %v166
    %v179 = vpack.c.b16 %v171, %v169
    %v180 = vpack.c.b16 %v172, %v170
    %v190 = vsel %vm72, %v134, 0
    %192 = vmatpush.bf16.msra.mxu0 0
    %193 = vmatpush.bf16.msra.mxu0 0
    %194 = vmatpush.bf16.msra.mxu0 0
    %195 = vmatpush.bf16.msra.mxu0 0
    %196 = vmatpush.bf16.msra.mxu0 %v179
    %197 = vmatpush.bf16.msra.mxu0 %v177
    %198 = vmatpush.bf16.msra.mxu0 %v175
    %199 = vmatpush.bf16.msra.mxu0 %v173
    %200 = vmatmul.bf16.gmra.mxu0 %v190
    %v201 = vpop.f32.mrf.mxu0
    %v202 = vadd.f32 %v145, %v201
    %v203 = vpop.f32.mrf.mxu0
    %v204 = vadd.f32 %v145, %v203
    %205 = vdwg.mxu0
    %206 = vmatpush.bf16.msra.mxu0 0
    %207 = vmatpush.bf16.msra.mxu0 0
    %208 = vmatpush.bf16.msra.mxu0 0
    %209 = vmatpush.bf16.msra.mxu0 0
    %210 = vmatpush.bf16.msra.mxu0 %v180
    %211 = vmatpush.bf16.msra.mxu0 %v178
    %212 = vmatpush.bf16.msra.mxu0 %v176
    %213 = vmatpush.bf16.msra.mxu0 %v174
    %214 = vmatmul.bf16.gmra.mxu0 %v190
    %v215 = vpop.f32.mrf.mxu0
    %v216 = vadd.f32 %v146, %v215
    %v217 = vpop.f32.mrf.mxu0
    %v218 = vadd.f32 %v146, %v217
    %219 = vdwg.mxu0
    %v220 = vld [vmem:[%s7] sm:$0xf]
    %v221 = vld [vmem:[%s7 + $0x4] sm:$0xf]
    %v222 = vld [vmem:[%s7 + $0x8] sm:$0xf]
    %v223 = vld [vmem:[%s7 + $0xc] sm:$0xf]
    %v224 = vld [vmem:[%s7 + $0x10] sm:$0xf]
    %v225 = vld [vmem:[%s7 + $0x14] sm:$0xf]
    %v226 = vld [vmem:[%s7 + $0x18] sm:$0xf]
    %v227 = vld [vmem:[%s7 + $0x1c] sm:$0xf]
    %v228 = vmul.f32 %v202, 0.25
    %v229 = vmul.f32 %v204, 0.25
    %231 = vrot.lane.b32.xlu0 %v202, 64
    %v232 = vpop.permute.xlu0 %231
    %vm233 = vcmask 130048
    %v235 = vsel %vm233, %v228, 0
    %v237 = vsel %vm233, %v232, 0
    %239 = vmatpush.xpose.msra.mxu0 0.0
    %240 = vmatpush.xpose.msra.mxu0 0.0
    %241 = vmatpush.xpose.msra.mxu0 0.0
    %242 = vmatpush.xpose.msra.mxu0 0.0
    %243 = vmatpush.xpose.msra.mxu0 0.0
    %244 = vmatpush.xpose.msra.mxu0 0.0
    %245 = vmatpush.xpose.msra.mxu0 0.0
    %246 = vmatpush.xpose.msra.mxu0 0.0
    %247 = vmatpush.xpose.msra.mxu0 0.0
    %248 = vmatpush.xpose.msra.mxu0 0.0
    %249 = vmatpush.xpose.msra.mxu0 0.0
    %250 = vmatpush.xpose.msra.mxu0 0.0
    %251 = vmatpush.xpose.msra.mxu0 0.0
    %252 = vmatpush.xpose.msra.mxu0 0.0
    %253 = vmatpush.xpose.msra.mxu0 0.0
    %254 = vmatpush.xpose.msra.mxu0 %v237
    %255 = vmatmul.f32.gmra.mxu0 %v235
    %v256 = vpop.f32.mrf.mxu0
    %v257 = vadd.f32 0.0, %v256
    %258 = vdwg.mxu0
    %260 = vrot.lane.b32.xlu0 %v204, 64
    %v261 = vpop.permute.xlu0 %260
    %v263 = vsel %vm233, %v229, 0
    %v265 = vsel %vm233, %v261, 0
    %267 = vmatpush.xpose.msra.mxu0 0.0
    %268 = vmatpush.xpose.msra.mxu0 0.0
    %269 = vmatpush.xpose.msra.mxu0 0.0
    %270 = vmatpush.xpose.msra.mxu0 0.0
    %271 = vmatpush.xpose.msra.mxu0 0.0
    %272 = vmatpush.xpose.msra.mxu0 0.0
    %273 = vmatpush.xpose.msra.mxu0 0.0
    %274 = vmatpush.xpose.msra.mxu0 0.0
    %275 = vmatpush.xpose.msra.mxu0 0.0
    %276 = vmatpush.xpose.msra.mxu0 0.0
    %277 = vmatpush.xpose.msra.mxu0 0.0
    %278 = vmatpush.xpose.msra.mxu0 0.0
    %279 = vmatpush.xpose.msra.mxu0 0.0
    %280 = vmatpush.xpose.msra.mxu0 0.0
    %281 = vmatpush.xpose.msra.mxu0 0.0
    %282 = vmatpush.xpose.msra.mxu0 %v265
    %283 = vmatmul.f32.gmra.mxu0 %v263
    %v284 = vpop.f32.mrf.mxu0
    %v285 = vadd.f32 0.0, %v284
    %286 = vdwg.mxu0
    %vm287 = vcmp.eq.f32.partialorder %v66, 0.0
    %vm288 = vcmp.eq.f32.partialorder %v67, 0.0
    %v289 = vsel %vm287, 1, 0
    %v290 = vsel %vm288, 1, 0
    %v291 = vperm.slane %v289, 0
    %v292 = vperm.slane %v290, 0
    %vm293 = vcmp.eq.s32.totalorder %v291, 1
    %vm294 = vcmp.eq.s32.totalorder %v292, 1
    %v295 = vsel %vm293, -3.4028235e+38, %v257
    %v296 = vsel %vm294, -3.4028235e+38, %v285
    %vm297 = vcmask 64512
    %v298 = vsel %vm297, %v295, -inf
    %299 = vmax.xlane.f32.xlu0 %v298
    %v300 = vpop.xlane.xlu0 %299
    %v301 = vsel %vm297, %v296, -inf
    %302 = vmax.xlane.f32.xlu0 %v301
    %v303 = vpop.xlane.xlu0 %302
    %v304 = vsub.f32 %v295, %v300
    %v305 = vsub.f32 %v296, %v303
    %v306 = vmul.f32 %v304, 1.442695
    %v307 = vpow.pop %v306
    %v308 = vmul.f32 %v305, 1.442695
    %v309 = vpow.pop %v308
    %v310 = vsel %vm297, %v307, 0.0
    %311 = vadd.xlane.f32.xlu0 %v310
    %v312 = vpop.xlane.xlu0 %311
    %v313 = vsel %vm297, %v309, 0.0
    %314 = vadd.xlane.f32.xlu0 %v313
    %v315 = vpop.xlane.xlu0 %314
    %v316 = vrcp.pop %v312
    %v317 = vrcp.pop %v315
    %v318 = vmul.f32 %v307, %v316
    %v319 = vmul.f32 %v309, %v317
    %v321 = vsel %vm297, %v318, 0
    %323 = vmatpush.msra.mxu0 0.0
    %324 = vmatpush.msra.mxu0 0.0
    %325 = vmatpush.msra.mxu0 0.0
    %326 = vmatpush.msra.mxu0 0.0
    %327 = vmatpush.msra.mxu0 0.0
    %328 = vmatpush.msra.mxu0 0.0
    %329 = vmatpush.msra.mxu0 0.0
    %330 = vmatpush.msra.mxu0 0.0
    %331 = vmatpush.msra.mxu0 0.0
    %332 = vmatpush.msra.mxu0 0.0
    %333 = vmatpush.msra.mxu0 0.0
    %334 = vmatpush.msra.mxu0 0.0
    %335 = vmatpush.msra.mxu0 0.0
    %336 = vmatpush.msra.mxu0 0.0
    %337 = vmatpush.msra.mxu0 0.0
    %338 = vmatpush.msra.mxu0 %v216
    %339 = vmatmul.f32.gmra.mxu0 %v321
    %v340 = vpop.f32.mrf.mxu0
    %v341 = vadd.f32 0.0, %v340
    %342 = vdwg.mxu0
    %v344 = vsel %vm297, %v319, 0
    %346 = vmatpush.msra.mxu0 0.0
    %347 = vmatpush.msra.mxu0 0.0
    %348 = vmatpush.msra.mxu0 0.0
    %349 = vmatpush.msra.mxu0 0.0
    %350 = vmatpush.msra.mxu0 0.0
    %351 = vmatpush.msra.mxu0 0.0
    %352 = vmatpush.msra.mxu0 0.0
    %353 = vmatpush.msra.mxu0 0.0
    %354 = vmatpush.msra.mxu0 0.0
    %355 = vmatpush.msra.mxu0 0.0
    %356 = vmatpush.msra.mxu0 0.0
    %357 = vmatpush.msra.mxu0 0.0
    %358 = vmatpush.msra.mxu0 0.0
    %359 = vmatpush.msra.mxu0 0.0
    %360 = vmatpush.msra.mxu0 0.0
    %361 = vmatpush.msra.mxu0 %v218
    %362 = vmatmul.f32.gmra.mxu0 %v344
    %v363 = vpop.f32.mrf.mxu0
    %v364 = vadd.f32 0.0, %v363
    %365 = vdwg.mxu0
    %v366 = vpack.c.bf16 %v364, %v341
    %367 = vrot.lane.b32.xlu0 %v228, 112
    %v368 = vpop.permute.xlu0 %367
    %369 = vrot.lane.b32.xlu0 %v202, 48
    %v370 = vpop.permute.xlu0 %369
    %v371 = vsel %vm233, %v368, 0
    %v373 = vsel %vm233, %v370, 0
    %375 = vmatpush.xpose.msra.mxu0 0.0
    %376 = vmatpush.xpose.msra.mxu0 0.0
    %377 = vmatpush.xpose.msra.mxu0 0.0
    %378 = vmatpush.xpose.msra.mxu0 0.0
    %379 = vmatpush.xpose.msra.mxu0 0.0
    %380 = vmatpush.xpose.msra.mxu0 0.0
    %381 = vmatpush.xpose.msra.mxu0 0.0
    %382 = vmatpush.xpose.msra.mxu0 0.0
    %383 = vmatpush.xpose.msra.mxu0 0.0
    %384 = vmatpush.xpose.msra.mxu0 0.0
    %385 = vmatpush.xpose.msra.mxu0 0.0
    %386 = vmatpush.xpose.msra.mxu0 0.0
    %387 = vmatpush.xpose.msra.mxu0 0.0
    %388 = vmatpush.xpose.msra.mxu0 0.0
    %389 = vmatpush.xpose.msra.mxu0 0.0
    %390 = vmatpush.xpose.msra.mxu0 %v373
    %391 = vmatmul.f32.gmra.mxu0 %v371
    %v392 = vpop.f32.mrf.mxu0
    %v393 = vadd.f32 0.0, %v392
    %394 = vdwg.mxu0
    %395 = vrot.lane.b32.xlu0 %v229, 112
    %v396 = vpop.permute.xlu0 %395
    %397 = vrot.lane.b32.xlu0 %v204, 48
    %v398 = vpop.permute.xlu0 %397
    %v399 = vsel %vm233, %v396, 0
    %v401 = vsel %vm233, %v398, 0
    %403 = vmatpush.xpose.msra.mxu0 0.0
    %404 = vmatpush.xpose.msra.mxu0 0.0
    %405 = vmatpush.xpose.msra.mxu0 0.0
    %406 = vmatpush.xpose.msra.mxu0 0.0
    %407 = vmatpush.xpose.msra.mxu0 0.0
    %408 = vmatpush.xpose.msra.mxu0 0.0
    %409 = vmatpush.xpose.msra.mxu0 0.0
    %410 = vmatpush.xpose.msra.mxu0 0.0
    %411 = vmatpush.xpose.msra.mxu0 0.0
    %412 = vmatpush.xpose.msra.mxu0 0.0
    %413 = vmatpush.xpose.msra.mxu0 0.0
    %414 = vmatpush.xpose.msra.mxu0 0.0
    %415 = vmatpush.xpose.msra.mxu0 0.0
    %416 = vmatpush.xpose.msra.mxu0 0.0
    %417 = vmatpush.xpose.msra.mxu0 0.0
    %418 = vmatpush.xpose.msra.mxu0 %v401
    %419 = vmatmul.f32.gmra.mxu0 %v399
    %v420 = vpop.f32.mrf.mxu0
    %v421 = vadd.f32 0.0, %v420
    %422 = vdwg.mxu0
    %v423 = vsel %vm293, -3.4028235e+38, %v393
    %v424 = vsel %vm294, -3.4028235e+38, %v421
    %v425 = vsel %vm297, %v423, -inf
    %426 = vmax.xlane.f32.xlu0 %v425
    %v427 = vpop.xlane.xlu0 %426
    %v428 = vsel %vm297, %v424, -inf
    %429 = vmax.xlane.f32.xlu0 %v428
    %v430 = vpop.xlane.xlu0 %429
    %v431 = vsub.f32 %v423, %v427
    %v432 = vsub.f32 %v424, %v430
    %v433 = vmul.f32 %v431, 1.442695
    %v434 = vpow.pop %v433
    %v435 = vmul.f32 %v432, 1.442695
    %v436 = vpow.pop %v435
    %v437 = vsel %vm297, %v434, 0.0
    %438 = vadd.xlane.f32.xlu0 %v437
    %v439 = vpop.xlane.xlu0 %438
    %v440 = vsel %vm297, %v436, 0.0
    %441 = vadd.xlane.f32.xlu0 %v440
    %v442 = vpop.xlane.xlu0 %441
    %v443 = vrcp.pop %v439
    %v444 = vrcp.pop %v442
    %v445 = vmul.f32 %v434, %v443
    %v446 = vmul.f32 %v436, %v444
    %448 = vrot.lane.b32.xlu0 %v216, 112
    %v449 = vpop.permute.xlu0 %448
    %v452 = vsel %vm297, %v445, 0
    %454 = vmatpush.msra.mxu0 0.0
    %455 = vmatpush.msra.mxu0 0.0
    %456 = vmatpush.msra.mxu0 0.0
    %457 = vmatpush.msra.mxu0 0.0
    %458 = vmatpush.msra.mxu0 0.0
    %459 = vmatpush.msra.mxu0 0.0
    %460 = vmatpush.msra.mxu0 0.0
    %461 = vmatpush.msra.mxu0 0.0
    %462 = vmatpush.msra.mxu0 0.0
    %463 = vmatpush.msra.mxu0 0.0
    %464 = vmatpush.msra.mxu0 0.0
    %465 = vmatpush.msra.mxu0 0.0
    %466 = vmatpush.msra.mxu0 0.0
    %467 = vmatpush.msra.mxu0 0.0
    %468 = vmatpush.msra.mxu0 0.0
    %469 = vmatpush.msra.mxu0 %v449
    %470 = vmatmul.f32.gmra.mxu0 %v452
    %v471 = vpop.f32.mrf.mxu0
    %v472 = vadd.f32 0.0, %v471
    %473 = vdwg.mxu0
    %475 = vrot.lane.b32.xlu0 %v218, 112
    %v476 = vpop.permute.xlu0 %475
    %v479 = vsel %vm297, %v446, 0
    %481 = vmatpush.msra.mxu0 0.0
    %482 = vmatpush.msra.mxu0 0.0
    %483 = vmatpush.msra.mxu0 0.0
    %484 = vmatpush.msra.mxu0 0.0
    %485 = vmatpush.msra.mxu0 0.0
    %486 = vmatpush.msra.mxu0 0.0
    %487 = vmatpush.msra.mxu0 0.0
    %488 = vmatpush.msra.mxu0 0.0
    %489 = vmatpush.msra.mxu0 0.0
    %490 = vmatpush.msra.mxu0 0.0
    %491 = vmatpush.msra.mxu0 0.0
    %492 = vmatpush.msra.mxu0 0.0
    %493 = vmatpush.msra.mxu0 0.0
    %494 = vmatpush.msra.mxu0 0.0
    %495 = vmatpush.msra.mxu0 0.0
    %496 = vmatpush.msra.mxu0 %v476
    %497 = vmatmul.f32.gmra.mxu0 %v479
    %v498 = vpop.f32.mrf.mxu0
    %v499 = vadd.f32 0.0, %v498
    %500 = vdwg.mxu0
    %v501 = vpack.c.bf16 %v499, %v472
    %v504 = vunpack.c.l.b16 %v222
    %v505 = vunpack.c.l.b16 %v223
    %v506 = vpack.c.b16 %v505, %v504
    %v509 = vsel %vm233, %v501, 0
    %511 = vmatpush.bf16.msra.mxu0 0
    %512 = vmatpush.bf16.msra.mxu0 0
    %513 = vmatpush.bf16.msra.mxu0 0
    %514 = vmatpush.bf16.msra.mxu0 0
    %515 = vmatpush.bf16.msra.mxu0 0
    %516 = vmatpush.bf16.msra.mxu0 0
    %517 = vmatpush.bf16.msra.mxu0 0
    %518 = vmatpush.bf16.msra.mxu0 %v506
    %519 = vmatmul.bf16.gmra.mxu0 %v509
    %v520 = vpop.f32.mrf.mxu0
    %v521 = vadd.f32 0.0, %v520
    %v522 = vpop.f32.mrf.mxu0
    %v523 = vadd.f32 0.0, %v522
    %524 = vdwg.mxu0
    %v527 = vunpack.c.l.b16 %v220
    %v528 = vunpack.c.l.b16 %v221
    %v529 = vpack.c.b16 %v528, %v527
    %v532 = vsel %vm233, %v366, 0
    %534 = vmatpush.bf16.msra.mxu0 0
    %535 = vmatpush.bf16.msra.mxu0 0
    %536 = vmatpush.bf16.msra.mxu0 0
    %537 = vmatpush.bf16.msra.mxu0 0
    %538 = vmatpush.bf16.msra.mxu0 0
    %539 = vmatpush.bf16.msra.mxu0 0
    %540 = vmatpush.bf16.msra.mxu0 0
    %541 = vmatpush.bf16.msra.mxu0 %v529
    %542 = vmatmul.bf16.gmra.mxu0 %v532
    %v543 = vpop.f32.mrf.mxu0
    %v544 = vadd.f32 %v521, %v543
    %v545 = vpop.f32.mrf.mxu0
    %v546 = vadd.f32 %v523, %v545
    %547 = vdwg.mxu0
    %548 = vrot.lane.b32.xlu0 %v228, 96
    %v549 = vpop.permute.xlu0 %548
    %550 = vrot.lane.b32.xlu0 %v202, 32
    %v551 = vpop.permute.xlu0 %550
    %v552 = vsel %vm233, %v549, 0
    %v554 = vsel %vm233, %v551, 0
    %556 = vmatpush.xpose.msra.mxu0 0.0
    %557 = vmatpush.xpose.msra.mxu0 0.0
    %558 = vmatpush.xpose.msra.mxu0 0.0
    %559 = vmatpush.xpose.msra.mxu0 0.0
    %560 = vmatpush.xpose.msra.mxu0 0.0
    %561 = vmatpush.xpose.msra.mxu0 0.0
    %562 = vmatpush.xpose.msra.mxu0 0.0
    %563 = vmatpush.xpose.msra.mxu0 0.0
    %564 = vmatpush.xpose.msra.mxu0 0.0
    %565 = vmatpush.xpose.msra.mxu0 0.0
    %566 = vmatpush.xpose.msra.mxu0 0.0
    %567 = vmatpush.xpose.msra.mxu0 0.0
    %568 = vmatpush.xpose.msra.mxu0 0.0
    %569 = vmatpush.xpose.msra.mxu0 0.0
    %570 = vmatpush.xpose.msra.mxu0 0.0
    %571 = vmatpush.xpose.msra.mxu0 %v554
    %572 = vmatmul.f32.gmra.mxu0 %v552
    %v573 = vpop.f32.mrf.mxu0
    %v574 = vadd.f32 0.0, %v573
    %575 = vdwg.mxu0
    %576 = vrot.lane.b32.xlu0 %v229, 96
    %v577 = vpop.permute.xlu0 %576
    %578 = vrot.lane.b32.xlu0 %v204, 32
    %v579 = vpop.permute.xlu0 %578
    %v580 = vsel %vm233, %v577, 0
    %v582 = vsel %vm233, %v579, 0
    %584 = vmatpush.xpose.msra.mxu0 0.0
    %585 = vmatpush.xpose.msra.mxu0 0.0
    %586 = vmatpush.xpose.msra.mxu0 0.0
    %587 = vmatpush.xpose.msra.mxu0 0.0
    %588 = vmatpush.xpose.msra.mxu0 0.0
    %589 = vmatpush.xpose.msra.mxu0 0.0
    %590 = vmatpush.xpose.msra.mxu0 0.0
    %591 = vmatpush.xpose.msra.mxu0 0.0
    %592 = vmatpush.xpose.msra.mxu0 0.0
    %593 = vmatpush.xpose.msra.mxu0 0.0
    %594 = vmatpush.xpose.msra.mxu0 0.0
    %595 = vmatpush.xpose.msra.mxu0 0.0
    %596 = vmatpush.xpose.msra.mxu0 0.0
    %597 = vmatpush.xpose.msra.mxu0 0.0
    %598 = vmatpush.xpose.msra.mxu0 0.0
    %599 = vmatpush.xpose.msra.mxu0 %v582
    %600 = vmatmul.f32.gmra.mxu0 %v580
    %v601 = vpop.f32.mrf.mxu0
    %v602 = vadd.f32 0.0, %v601
    %603 = vdwg.mxu0
    %v604 = vsel %vm293, -3.4028235e+38, %v574
    %v605 = vsel %vm294, -3.4028235e+38, %v602
    %v606 = vsel %vm297, %v604, -inf
    %607 = vmax.xlane.f32.xlu0 %v606
    %v608 = vpop.xlane.xlu0 %607
    %v609 = vsel %vm297, %v605, -inf
    %610 = vmax.xlane.f32.xlu0 %v609
    %v611 = vpop.xlane.xlu0 %610
    %v612 = vsub.f32 %v604, %v608
    %v613 = vsub.f32 %v605, %v611
    %v614 = vmul.f32 %v612, 1.442695
    %v615 = vpow.pop %v614
    %v616 = vmul.f32 %v613, 1.442695
    %v617 = vpow.pop %v616
    %v618 = vsel %vm297, %v615, 0.0
    %619 = vadd.xlane.f32.xlu0 %v618
    %v620 = vpop.xlane.xlu0 %619
    %v621 = vsel %vm297, %v617, 0.0
    %622 = vadd.xlane.f32.xlu0 %v621
    %v623 = vpop.xlane.xlu0 %622
    %v624 = vrcp.pop %v620
    %v625 = vrcp.pop %v623
    %v626 = vmul.f32 %v615, %v624
    %v627 = vmul.f32 %v617, %v625
    %628 = vrot.lane.b32.xlu0 %v216, 96
    %v629 = vpop.permute.xlu0 %628
    %v632 = vsel %vm297, %v626, 0
    %634 = vmatpush.msra.mxu0 0.0
    %635 = vmatpush.msra.mxu0 0.0
    %636 = vmatpush.msra.mxu0 0.0
    %637 = vmatpush.msra.mxu0 0.0
    %638 = vmatpush.msra.mxu0 0.0
    %639 = vmatpush.msra.mxu0 0.0
    %640 = vmatpush.msra.mxu0 0.0
    %641 = vmatpush.msra.mxu0 0.0
    %642 = vmatpush.msra.mxu0 0.0
    %643 = vmatpush.msra.mxu0 0.0
    %644 = vmatpush.msra.mxu0 0.0
    %645 = vmatpush.msra.mxu0 0.0
    %646 = vmatpush.msra.mxu0 0.0
    %647 = vmatpush.msra.mxu0 0.0
    %648 = vmatpush.msra.mxu0 0.0
    %649 = vmatpush.msra.mxu0 %v629
    %650 = vmatmul.f32.gmra.mxu0 %v632
    %v651 = vpop.f32.mrf.mxu0
    %v652 = vadd.f32 0.0, %v651
    %653 = vdwg.mxu0
    %654 = vrot.lane.b32.xlu0 %v218, 96
    %v655 = vpop.permute.xlu0 %654
    %v658 = vsel %vm297, %v627, 0
    %660 = vmatpush.msra.mxu0 0.0
    %661 = vmatpush.msra.mxu0 0.0
    %662 = vmatpush.msra.mxu0 0.0
    %663 = vmatpush.msra.mxu0 0.0
    %664 = vmatpush.msra.mxu0 0.0
    %665 = vmatpush.msra.mxu0 0.0
    %666 = vmatpush.msra.mxu0 0.0
    %667 = vmatpush.msra.mxu0 0.0
    %668 = vmatpush.msra.mxu0 0.0
    %669 = vmatpush.msra.mxu0 0.0
    %670 = vmatpush.msra.mxu0 0.0
    %671 = vmatpush.msra.mxu0 0.0
    %672 = vmatpush.msra.mxu0 0.0
    %673 = vmatpush.msra.mxu0 0.0
    %674 = vmatpush.msra.mxu0 0.0
    %675 = vmatpush.msra.mxu0 %v655
    %676 = vmatmul.f32.gmra.mxu0 %v658
    %v677 = vpop.f32.mrf.mxu0
    %v678 = vadd.f32 0.0, %v677
    %679 = vdwg.mxu0
    %v680 = vpack.c.bf16 %v678, %v652
    %v683 = vunpack.c.l.b16 %v224
    %v684 = vunpack.c.l.b16 %v225
    %v685 = vpack.c.b16 %v684, %v683
    %v688 = vsel %vm233, %v680, 0
    %690 = vmatpush.bf16.msra.mxu0 0
    %691 = vmatpush.bf16.msra.mxu0 0
    %692 = vmatpush.bf16.msra.mxu0 0
    %693 = vmatpush.bf16.msra.mxu0 0
    %694 = vmatpush.bf16.msra.mxu0 0
    %695 = vmatpush.bf16.msra.mxu0 0
    %696 = vmatpush.bf16.msra.mxu0 0
    %697 = vmatpush.bf16.msra.mxu0 %v685
    %698 = vmatmul.bf16.gmra.mxu0 %v688
    %v699 = vpop.f32.mrf.mxu0
    %v700 = vadd.f32 0.0, %v699
    %v701 = vpop.f32.mrf.mxu0
    %v702 = vadd.f32 0.0, %v701
    %703 = vdwg.mxu0
    %v704 = vadd.f32 %v544, %v700
    %v705 = vadd.f32 %v546, %v702
    %706 = vrot.lane.b32.xlu0 %v228, 80
    %v707 = vpop.permute.xlu0 %706
    %708 = vrot.lane.b32.xlu0 %v202, 16
    %v709 = vpop.permute.xlu0 %708
    %v710 = vsel %vm233, %v707, 0
    %v712 = vsel %vm233, %v709, 0
    %714 = vmatpush.xpose.msra.mxu0 0.0
    %715 = vmatpush.xpose.msra.mxu0 0.0
    %716 = vmatpush.xpose.msra.mxu0 0.0
    %717 = vmatpush.xpose.msra.mxu0 0.0
    %718 = vmatpush.xpose.msra.mxu0 0.0
    %719 = vmatpush.xpose.msra.mxu0 0.0
    %720 = vmatpush.xpose.msra.mxu0 0.0
    %721 = vmatpush.xpose.msra.mxu0 0.0
    %722 = vmatpush.xpose.msra.mxu0 0.0
    %723 = vmatpush.xpose.msra.mxu0 0.0
    %724 = vmatpush.xpose.msra.mxu0 0.0
    %725 = vmatpush.xpose.msra.mxu0 0.0
    %726 = vmatpush.xpose.msra.mxu0 0.0
    %727 = vmatpush.xpose.msra.mxu0 0.0
    %728 = vmatpush.xpose.msra.mxu0 0.0
    %729 = vmatpush.xpose.msra.mxu0 %v712
    %730 = vmatmul.f32.gmra.mxu0 %v710
    %v731 = vpop.f32.mrf.mxu0
    %v732 = vadd.f32 0.0, %v731
    %733 = vdwg.mxu0
    %734 = vrot.lane.b32.xlu0 %v229, 80
    %v735 = vpop.permute.xlu0 %734
    %736 = vrot.lane.b32.xlu0 %v204, 16
    %v737 = vpop.permute.xlu0 %736
    %v738 = vsel %vm233, %v735, 0
    %v740 = vsel %vm233, %v737, 0
    %742 = vmatpush.xpose.msra.mxu0 0.0
    %743 = vmatpush.xpose.msra.mxu0 0.0
    %744 = vmatpush.xpose.msra.mxu0 0.0
    %745 = vmatpush.xpose.msra.mxu0 0.0
    %746 = vmatpush.xpose.msra.mxu0 0.0
    %747 = vmatpush.xpose.msra.mxu0 0.0
    %748 = vmatpush.xpose.msra.mxu0 0.0
    %749 = vmatpush.xpose.msra.mxu0 0.0
    %750 = vmatpush.xpose.msra.mxu0 0.0
    %751 = vmatpush.xpose.msra.mxu0 0.0
    %752 = vmatpush.xpose.msra.mxu0 0.0
    %753 = vmatpush.xpose.msra.mxu0 0.0
    %754 = vmatpush.xpose.msra.mxu0 0.0
    %755 = vmatpush.xpose.msra.mxu0 0.0
    %756 = vmatpush.xpose.msra.mxu0 0.0
    %757 = vmatpush.xpose.msra.mxu0 %v740
    %758 = vmatmul.f32.gmra.mxu0 %v738
    %v759 = vpop.f32.mrf.mxu0
    %v760 = vadd.f32 0.0, %v759
    %761 = vdwg.mxu0
    %v762 = vsel %vm293, -3.4028235e+38, %v732
    %v763 = vsel %vm294, -3.4028235e+38, %v760
    %v764 = vsel %vm297, %v762, -inf
    %765 = vmax.xlane.f32.xlu0 %v764
    %v766 = vpop.xlane.xlu0 %765
    %v767 = vsel %vm297, %v763, -inf
    %768 = vmax.xlane.f32.xlu0 %v767
    %v769 = vpop.xlane.xlu0 %768
    %v770 = vsub.f32 %v762, %v766
    %v771 = vsub.f32 %v763, %v769
    %v772 = vmul.f32 %v770, 1.442695
    %v773 = vpow.pop %v772
    %v774 = vmul.f32 %v771, 1.442695
    %v775 = vpow.pop %v774
    %v776 = vsel %vm297, %v773, 0.0
    %777 = vadd.xlane.f32.xlu0 %v776
    %v778 = vpop.xlane.xlu0 %777
    %v779 = vsel %vm297, %v775, 0.0
    %780 = vadd.xlane.f32.xlu0 %v779
    %v781 = vpop.xlane.xlu0 %780
    %v782 = vrcp.pop %v778
    %v783 = vrcp.pop %v781
    %v784 = vmul.f32 %v773, %v782
    %v785 = vmul.f32 %v775, %v783
    %786 = vrot.lane.b32.xlu0 %v216, 80
    %v787 = vpop.permute.xlu0 %786
    %v790 = vsel %vm297, %v784, 0
    %792 = vmatpush.msra.mxu0 0.0
    %793 = vmatpush.msra.mxu0 0.0
    %794 = vmatpush.msra.mxu0 0.0
    %795 = vmatpush.msra.mxu0 0.0
    %796 = vmatpush.msra.mxu0 0.0
    %797 = vmatpush.msra.mxu0 0.0
    %798 = vmatpush.msra.mxu0 0.0
    %799 = vmatpush.msra.mxu0 0.0
    %800 = vmatpush.msra.mxu0 0.0
    %801 = vmatpush.msra.mxu0 0.0
    %802 = vmatpush.msra.mxu0 0.0
    %803 = vmatpush.msra.mxu0 0.0
    %804 = vmatpush.msra.mxu0 0.0
    %805 = vmatpush.msra.mxu0 0.0
    %806 = vmatpush.msra.mxu0 0.0
    %807 = vmatpush.msra.mxu0 %v787
    %808 = vmatmul.f32.gmra.mxu0 %v790
    %v809 = vpop.f32.mrf.mxu0
    %v810 = vadd.f32 0.0, %v809
    %811 = vdwg.mxu0
    %812 = vrot.lane.b32.xlu0 %v218, 80
    %v813 = vpop.permute.xlu0 %812
    %v816 = vsel %vm297, %v785, 0
    %818 = vmatpush.msra.mxu0 0.0
    %819 = vmatpush.msra.mxu0 0.0
    %820 = vmatpush.msra.mxu0 0.0
    %821 = vmatpush.msra.mxu0 0.0
    %822 = vmatpush.msra.mxu0 0.0
    %823 = vmatpush.msra.mxu0 0.0
    %824 = vmatpush.msra.mxu0 0.0
    %825 = vmatpush.msra.mxu0 0.0
    %826 = vmatpush.msra.mxu0 0.0
    %827 = vmatpush.msra.mxu0 0.0
    %828 = vmatpush.msra.mxu0 0.0
    %829 = vmatpush.msra.mxu0 0.0
    %830 = vmatpush.msra.mxu0 0.0
    %831 = vmatpush.msra.mxu0 0.0
    %832 = vmatpush.msra.mxu0 0.0
    %833 = vmatpush.msra.mxu0 %v813
    %834 = vmatmul.f32.gmra.mxu0 %v816
    %v835 = vpop.f32.mrf.mxu0
    %v836 = vadd.f32 0.0, %v835
    %837 = vdwg.mxu0
    %v838 = vpack.c.bf16 %v836, %v810
    %v841 = vunpack.c.l.b16 %v226
    %v842 = vunpack.c.l.b16 %v227
    %v843 = vpack.c.b16 %v842, %v841
    %v846 = vsel %vm233, %v838, 0
    %848 = vmatpush.bf16.msra.mxu0 0
    %849 = vmatpush.bf16.msra.mxu0 0
    %850 = vmatpush.bf16.msra.mxu0 0
    %851 = vmatpush.bf16.msra.mxu0 0
    %852 = vmatpush.bf16.msra.mxu0 0
    %853 = vmatpush.bf16.msra.mxu0 0
    %854 = vmatpush.bf16.msra.mxu0 0
    %855 = vmatpush.bf16.msra.mxu0 %v843
    %856 = vmatmul.bf16.gmra.mxu0 %v846
    %v857 = vpop.f32.mrf.mxu0
    %v858 = vadd.f32 0.0, %v857
    %v859 = vpop.f32.mrf.mxu0
    %v860 = vadd.f32 0.0, %v859
    %861 = vdwg.mxu0
    %v862 = vadd.f32 %v704, %v858
    %v863 = vadd.f32 %v705, %v860
    %v864 = vld [vmem:[%s8] sm:$0x1]
    %v866 = vperm.slane %v864, 0
    %v868 = vadd.f32 %v862, %v866
    %v869 = vadd.f32 %v863, %v866
    %v870 = vadd.f32 %v868, %v132
    %v871 = vadd.f32 %v869, %v133
    %v872 = vld [vmem:[%s9] sm:$0x1]
    %v873 = vld [vmem:[%s10] sm:$0x1]
    %v874 = vsel %vm72, %v870, 0.0
    %875 = vadd.xlane.f32.xlu0 %v874
    %v876 = vpop.xlane.xlu0 %875
    %v877 = vsel %vm72, %v871, 0.0
    %878 = vadd.xlane.f32.xlu0 %v877
    %v879 = vpop.xlane.xlu0 %878
    %v880 = vmul.f32 %v876, %v85
    %v881 = vmul.f32 %v879, %v85
    %v882 = vsub.f32 %v870, %v880
    %v883 = vsub.f32 %v871, %v881
    %v884 = vmul.f32 %v882, %v882
    %v885 = vmul.f32 %v883, %v883
    %v886 = vsel %vm72, %v884, 0.0
    %887 = vadd.xlane.f32.xlu0 %v886
    %v888 = vpop.xlane.xlu0 %887
    %v889 = vsel %vm72, %v885, 0.0
    %890 = vadd.xlane.f32.xlu0 %v889
    %v891 = vpop.xlane.xlu0 %890
    %v892 = vmul.f32 %v888, %v85
    %v893 = vmul.f32 %v891, %v85
    %v894 = vadd.f32 %v892, 1e-12
    %v895 = vadd.f32 %v893, 1e-12
    %v896 = vrsqrt.pop %v894
    %v897 = vmul.f32 %v896, %v894
    %v898 = vmul.f32 %v897, %v896
    %v899 = vmul.f32 0.5, %v898
    %v900 = vsub.f32 1.5, %v899
    %v901 = vmul.f32 %v896, %v900
    %vm902 = vweird.f32 %v894
    %vm903 = vweird.f32 %v896
    %vm904 = vmor %vm902, %vm903
    %v905 = vsel %vm904, %v896, %v901
    %v906 = vrsqrt.pop %v895
    %v907 = vmul.f32 %v906, %v895
    %v908 = vmul.f32 %v907, %v906
    %v909 = vmul.f32 0.5, %v908
    %v910 = vsub.f32 1.5, %v909
    %v911 = vmul.f32 %v906, %v910
    %vm912 = vweird.f32 %v895
    %vm913 = vweird.f32 %v906
    %vm914 = vmor %vm912, %vm913
    %v915 = vsel %vm914, %v906, %v911
    %v916 = vmul.f32 %v882, %v905
    %v917 = vmul.f32 %v883, %v915
    %v919 = vperm.slane %v872, 0
    %v921 = vmul.f32 %v916, %v919
    %v922 = vmul.f32 %v917, %v919
    %v924 = vperm.slane %v873, 0
    %v926 = vadd.f32 %v921, %v924
    %v927 = vadd.f32 %v922, %v924
    %v928 = vpack.c.bf16 %v927, %v926
    %v929 = vld [vmem:[%s11] sm:$0xf]
    %v930 = vld [vmem:[%s11 + $0x4] sm:$0xf]
    %v931 = vld [vmem:[%s11 + $0x8] sm:$0xf]
    %v932 = vld [vmem:[%s11 + $0xc] sm:$0xf]
    %v933 = vld [vmem:[%s11 + $0x10] sm:$0xf]
    %v934 = vld [vmem:[%s11 + $0x14] sm:$0xf]
    %v935 = vld [vmem:[%s11 + $0x18] sm:$0xf]
    %v936 = vld [vmem:[%s11 + $0x1c] sm:$0xf]
    %v937 = vld [vmem:[%s12] sm:$0x1]
    %v939 = vperm.slane %v937, 0
    %v949 = vunpack.c.l.b16 %v929
    %v950 = vunpack.c.l.b16 %v930
    %v951 = vunpack.c.l.b16 %v931
    %v952 = vunpack.c.l.b16 %v932
    %v953 = vunpack.c.l.b16 %v933
    %v954 = vunpack.c.l.b16 %v934
    %v955 = vunpack.c.l.b16 %v935
    %v956 = vunpack.c.l.b16 %v936
    %v957 = vpack.c.b16 %v950, %v949
    %v958 = vpack.c.b16 %v952, %v951
    %v959 = vpack.c.b16 %v954, %v953
    %v960 = vpack.c.b16 %v956, %v955
    %v966 = vsel %vm72, %v928, 0
    %968 = vmatpush.bf16.msra.mxu0 0
    %969 = vmatpush.bf16.msra.mxu0 0
    %970 = vmatpush.bf16.msra.mxu0 0
    %971 = vmatpush.bf16.msra.mxu0 0
    %972 = vmatpush.bf16.msra.mxu0 %v960
    %973 = vmatpush.bf16.msra.mxu0 %v959
    %974 = vmatpush.bf16.msra.mxu0 %v958
    %975 = vmatpush.bf16.msra.mxu0 %v957
    %976 = vmatmul.bf16.gmra.mxu0 %v966
    %v977 = vpop.f32.mrf.mxu0
    %v978 = vadd.f32 %v939, %v977
    %v979 = vpop.f32.mrf.mxu0
    %v980 = vadd.f32 %v939, %v979
    %981 = vdwg.mxu0
    %v982 = vmul.f32 %v978, 0.5
    %v983 = vmul.f32 %v980, 0.5
    %v984 = vmul.f32 %v978, 0.70710677
    %v985 = vmul.f32 %v980, 0.70710677
    %v986 = vmul.f32 %v984, %v984
    %v987 = vmin.f32 16.0, %v986
    %v988 = vmul.f32 %v987, 2.1237322e-06
    %v989 = vadd.f32 %v988, 0.00028619796
    %v990 = vmul.f32 %v987, %v989
    %v991 = vadd.f32 %v990, 0.0036580483
    %v992 = vmul.f32 %v987, %v991
    %v993 = vadd.f32 %v992, 0.05243302
    %v994 = vmul.f32 %v987, %v993
    %v995 = vadd.f32 %v994, 0.18741608
    %v996 = vmul.f32 %v987, %v995
    %v997 = vadd.f32 %v996, 1.1283791
    %v998 = vmul.f32 %v984, %v997
    %v999 = vmul.f32 %v987, 3.8918573e-05
    %v1000 = vadd.f32 %v999, 0.001143296
    %v1001 = vmul.f32 %v987, %v1000
    %v1002 = vadd.f32 %v1001, 0.014752088
    %v1003 = vmul.f32 %v987, %v1002
    %v1004 = vadd.f32 %v1003, 0.112945676
    %v1005 = vmul.f32 %v987, %v1004
    %v1006 = vadd.f32 %v1005, 0.4994258
    %v1007 = vmul.f32 %v987, %v1006
    %v1008 = vadd.f32 %v1007, 1.0
    %v1009 = vrcp.pop %v1008
    %v1010 = vmul.f32 %v1008, %v1009
    %v1011 = vsub.f32 1.0, %v1010
    %v1012 = vmul.f32 %v1009, %v1011
    %v1013 = vadd.f32 %v1009, %v1012
    %vm1014 = vweird.f32 %v1008
    %vm1015 = vweird.f32 %v1009
    %vm1016 = vmor %vm1014, %vm1015
    %v1017 = vsel %vm1016, %v1009, %v1013
    %v1018 = vand.u32 2147483647, %v1008
    %vm1019 = vcmp.eq.f32.partialorder %v1018, 8.507059e+37
    %v1020 = vand.u32 %v1008, 2147483648
    %v1021 = vor.u32 1.1754944e-38, %v1020
    %v1022 = vsel %vm1019, %v1021, %v1017
    %v1023 = vmul.f32 %v998, %v1022
    %v1024 = vmin.f32 %v1023, 1.0
    %v1025 = vmax.f32 %v1024, -1.0
    %v1026 = vmul.f32 %v985, %v985
    %v1027 = vmin.f32 16.0, %v1026
    %v1028 = vmul.f32 %v1027, 2.1237322e-06
    %v1029 = vadd.f32 %v1028, 0.00028619796
    %v1030 = vmul.f32 %v1027, %v1029
    %v1031 = vadd.f32 %v1030, 0.0036580483
    %v1032 = vmul.f32 %v1027, %v1031
    %v1033 = vadd.f32 %v1032, 0.05243302
    %v1034 = vmul.f32 %v1027, %v1033
    %v1035 = vadd.f32 %v1034, 0.18741608
    %v1036 = vmul.f32 %v1027, %v1035
    %v1037 = vadd.f32 %v1036, 1.1283791
    %v1038 = vmul.f32 %v985, %v1037
    %v1039 = vmul.f32 %v1027, 3.8918573e-05
    %v1040 = vadd.f32 %v1039, 0.001143296
    %v1041 = vmul.f32 %v1027, %v1040
    %v1042 = vadd.f32 %v1041, 0.014752088
    %v1043 = vmul.f32 %v1027, %v1042
    %v1044 = vadd.f32 %v1043, 0.112945676
    %v1045 = vmul.f32 %v1027, %v1044
    %v1046 = vadd.f32 %v1045, 0.4994258
    %v1047 = vmul.f32 %v1027, %v1046
    %v1048 = vadd.f32 %v1047, 1.0
    %v1049 = vrcp.pop %v1048
    %v1050 = vmul.f32 %v1048, %v1049
    %v1051 = vsub.f32 1.0, %v1050
    %v1052 = vmul.f32 %v1049, %v1051
    %v1053 = vadd.f32 %v1049, %v1052
    %vm1054 = vweird.f32 %v1048
    %vm1055 = vweird.f32 %v1049
    %vm1056 = vmor %vm1054, %vm1055
    %v1057 = vsel %vm1056, %v1049, %v1053
    %v1058 = vand.u32 2147483647, %v1048
    %vm1059 = vcmp.eq.f32.partialorder %v1058, 8.507059e+37
    %v1060 = vand.u32 %v1048, 2147483648
    %v1061 = vor.u32 1.1754944e-38, %v1060
    %v1062 = vsel %vm1059, %v1061, %v1057
    %v1063 = vmul.f32 %v1038, %v1062
    %v1064 = vmin.f32 %v1063, 1.0
    %v1065 = vmax.f32 %v1064, -1.0
    %v1066 = vadd.f32 %v1025, 1.0
    %v1067 = vadd.f32 %v1065, 1.0
    %v1068 = vmul.f32 %v982, %v1066
    %v1069 = vmul.f32 %v983, %v1067
    %v1070 = vpack.c.bf16 %v1069, %v1068
    %v1071 = vld [vmem:[%s13] sm:$0xf]
    %v1072 = vld [vmem:[%s13 + $0x4] sm:$0xf]
    %v1073 = vld [vmem:[%s13 + $0x8] sm:$0xf]
    %v1074 = vld [vmem:[%s13 + $0xc] sm:$0xf]
    %v1075 = vld [vmem:[%s13 + $0x10] sm:$0xf]
    %v1076 = vld [vmem:[%s13 + $0x14] sm:$0xf]
    %v1077 = vld [vmem:[%s13 + $0x18] sm:$0xf]
    %v1078 = vld [vmem:[%s13 + $0x1c] sm:$0xf]
    %v1079 = vld [vmem:[%s13 + $0x20] sm:$0xf]
    %v1080 = vld [vmem:[%s13 + $0x24] sm:$0xf]
    %v1081 = vld [vmem:[%s13 + $0x28] sm:$0xf]
    %v1082 = vld [vmem:[%s13 + $0x2c] sm:$0xf]
    %v1083 = vld [vmem:[%s13 + $0x30] sm:$0xf]
    %v1084 = vld [vmem:[%s13 + $0x34] sm:$0xf]
    %v1085 = vld [vmem:[%s13 + $0x38] sm:$0xf]
    %v1086 = vld [vmem:[%s13 + $0x3c] sm:$0xf]
    %v1087 = vld [vmem:[%s14] sm:$0x1]
    %v1089 = vperm.slane %v1087, 0
    %v1107 = vunpack.c.l.b16 %v1071
    %v1108 = vunpack.c.l.b16 %v1072
    %v1109 = vunpack.c.l.b16 %v1073
    %v1110 = vunpack.c.l.b16 %v1074
    %v1111 = vunpack.c.l.b16 %v1075
    %v1112 = vunpack.c.l.b16 %v1076
    %v1113 = vunpack.c.l.b16 %v1077
    %v1114 = vunpack.c.l.b16 %v1078
    %v1115 = vunpack.c.l.b16 %v1079
    %v1116 = vunpack.c.l.b16 %v1080
    %v1117 = vunpack.c.l.b16 %v1081
    %v1118 = vunpack.c.l.b16 %v1082
    %v1119 = vunpack.c.l.b16 %v1083
    %v1120 = vunpack.c.l.b16 %v1084
    %v1121 = vunpack.c.l.b16 %v1085
    %v1122 = vunpack.c.l.b16 %v1086
    %v1123 = vpack.c.b16 %v1108, %v1107
    %v1124 = vpack.c.b16 %v1110, %v1109
    %v1125 = vpack.c.b16 %v1112, %v1111
    %v1126 = vpack.c.b16 %v1114, %v1113
    %v1127 = vpack.c.b16 %v1116, %v1115
    %v1128 = vpack.c.b16 %v1118, %v1117
    %v1129 = vpack.c.b16 %v1120, %v1119
    %v1130 = vpack.c.b16 %v1122, %v1121
    %1139 = vmatpush.bf16.msra.mxu0 %v1130
    %1140 = vmatpush.bf16.msra.mxu0 %v1129
    %1141 = vmatpush.bf16.msra.mxu0 %v1128
    %1142 = vmatpush.bf16.msra.mxu0 %v1127
    %1143 = vmatpush.bf16.msra.mxu0 %v1126
    %1144 = vmatpush.bf16.msra.mxu0 %v1125
    %1145 = vmatpush.bf16.msra.mxu0 %v1124
    %1146 = vmatpush.bf16.msra.mxu0 %v1123
    %1147 = vmatmul.bf16.gmra.mxu0 %v1070
    %v1148 = vpop.f32.mrf.mxu0
    %v1149 = vadd.f32 %v1089, %v1148
    %v1150 = vpop.f32.mrf.mxu0
    %v1151 = vadd.f32 %v1089, %v1150
    %1152 = vdwg.mxu0
    %v1153 = vadd.f32 %v1149, %v926
    %v1154 = vadd.f32 %v1151, %v927
    %v1155 = vld [vmem:[%s15] sm:$0x1]
    %v1156 = vld [vmem:[%s16] sm:$0x1]
    %v1157 = vsel %vm72, %v1153, 0.0
    %1158 = vadd.xlane.f32.xlu0 %v1157
    %v1159 = vpop.xlane.xlu0 %1158
    %v1160 = vsel %vm72, %v1154, 0.0
    %1161 = vadd.xlane.f32.xlu0 %v1160
    %v1162 = vpop.xlane.xlu0 %1161
    %v1163 = vmul.f32 %v1159, %v85
    %v1164 = vmul.f32 %v1162, %v85
    %v1165 = vsub.f32 %v1153, %v1163
    %v1166 = vsub.f32 %v1154, %v1164
    %v1167 = vmul.f32 %v1165, %v1165
    %v1168 = vmul.f32 %v1166, %v1166
    %v1169 = vsel %vm72, %v1167, 0.0
    %1170 = vadd.xlane.f32.xlu0 %v1169
    %v1171 = vpop.xlane.xlu0 %1170
    %v1172 = vsel %vm72, %v1168, 0.0
    %1173 = vadd.xlane.f32.xlu0 %v1172
    %v1174 = vpop.xlane.xlu0 %1173
    %v1175 = vmul.f32 %v1171, %v85
    %v1176 = vmul.f32 %v1174, %v85
    %v1177 = vadd.f32 %v1175, 1e-12
    %v1178 = vadd.f32 %v1176, 1e-12
    %v1179 = vrsqrt.pop %v1177
    %v1180 = vmul.f32 %v1179, %v1177
    %v1181 = vmul.f32 %v1180, %v1179
    %v1182 = vmul.f32 0.5, %v1181
    %v1183 = vsub.f32 1.5, %v1182
    %v1184 = vmul.f32 %v1179, %v1183
    %vm1185 = vweird.f32 %v1177
    %vm1186 = vweird.f32 %v1179
    %vm1187 = vmor %vm1185, %vm1186
    %v1188 = vsel %vm1187, %v1179, %v1184
    %v1189 = vrsqrt.pop %v1178
    %v1190 = vmul.f32 %v1189, %v1178
    %v1191 = vmul.f32 %v1190, %v1189
    %v1192 = vmul.f32 0.5, %v1191
    %v1193 = vsub.f32 1.5, %v1192
    %v1194 = vmul.f32 %v1189, %v1193
    %vm1195 = vweird.f32 %v1178
    %vm1196 = vweird.f32 %v1189
    %vm1197 = vmor %vm1195, %vm1196
    %v1198 = vsel %vm1197, %v1189, %v1194
    %v1199 = vmul.f32 %v1165, %v1188
    %v1200 = vmul.f32 %v1166, %v1198
    %v1202 = vperm.slane %v1155, 0
    %v1204 = vmul.f32 %v1199, %v1202
    %v1205 = vmul.f32 %v1200, %v1202
    %v1207 = vperm.slane %v1156, 0
    %v1209 = vadd.f32 %v1204, %v1207
    %v1210 = vadd.f32 %v1205, %v1207
    %v1211 = vpack.c.bf16 %v1210, %v1209
    %s1212 = scalar_lea.vmem %s5, 64
    %v1213 = vld [vmem:[%s1212] sm:$0xff]
    %v1214 = vld [vmem:[%s1212 + $0x8] sm:$0xff]
    %v1215 = vld [vmem:[%s1212 + $0x10] sm:$0xff]
    %v1216 = vld [vmem:[%s1212 + $0x18] sm:$0xff]
    %v1217 = vld [vmem:[%s1212 + $0x20] sm:$0xff]
    %v1218 = vld [vmem:[%s1212 + $0x28] sm:$0xff]
    %v1219 = vld [vmem:[%s1212 + $0x30] sm:$0xff]
    %v1220 = vld [vmem:[%s1212 + $0x38] sm:$0xff]
    %s1221 = scalar_lea.vmem %s6, 2
    %v1222 = vld [vmem:[%s1221] sm:$0x3]
    %v1224 = vperm.slane %v1222, 0
    %v1225 = vperm.slane %v1222, 1
    %v1236 = vunpack.c.l.b16 %v1213
    %v1237 = vunpack.c.h.b16 %v1213
    %v1238 = vunpack.c.l.b16 %v1214
    %v1239 = vunpack.c.h.b16 %v1214
    %v1240 = vunpack.c.l.b16 %v1215
    %v1241 = vunpack.c.h.b16 %v1215
    %v1242 = vunpack.c.l.b16 %v1216
    %v1243 = vunpack.c.h.b16 %v1216
    %v1244 = vunpack.c.l.b16 %v1217
    %v1245 = vunpack.c.h.b16 %v1217
    %v1246 = vunpack.c.l.b16 %v1218
    %v1247 = vunpack.c.h.b16 %v1218
    %v1248 = vunpack.c.l.b16 %v1219
    %v1249 = vunpack.c.h.b16 %v1219
    %v1250 = vunpack.c.l.b16 %v1220
    %v1251 = vunpack.c.h.b16 %v1220
    %v1252 = vpack.c.b16 %v1238, %v1236
    %v1253 = vpack.c.b16 %v1239, %v1237
    %v1254 = vpack.c.b16 %v1242, %v1240
    %v1255 = vpack.c.b16 %v1243, %v1241
    %v1256 = vpack.c.b16 %v1246, %v1244
    %v1257 = vpack.c.b16 %v1247, %v1245
    %v1258 = vpack.c.b16 %v1250, %v1248
    %v1259 = vpack.c.b16 %v1251, %v1249
    %v1269 = vsel %vm72, %v1211, 0
    %1271 = vmatpush.bf16.msra.mxu0 0
    %1272 = vmatpush.bf16.msra.mxu0 0
    %1273 = vmatpush.bf16.msra.mxu0 0
    %1274 = vmatpush.bf16.msra.mxu0 0
    %1275 = vmatpush.bf16.msra.mxu0 %v1258
    %1276 = vmatpush.bf16.msra.mxu0 %v1256
    %1277 = vmatpush.bf16.msra.mxu0 %v1254
    %1278 = vmatpush.bf16.msra.mxu0 %v1252
    %1279 = vmatmul.bf16.gmra.mxu0 %v1269
    %v1280 = vpop.f32.mrf.mxu0
    %v1281 = vadd.f32 %v1224, %v1280
    %v1282 = vpop.f32.mrf.mxu0
    %v1283 = vadd.f32 %v1224, %v1282
    %1284 = vdwg.mxu0
    %1285 = vmatpush.bf16.msra.mxu0 0
    %1286 = vmatpush.bf16.msra.mxu0 0
    %1287 = vmatpush.bf16.msra.mxu0 0
    %1288 = vmatpush.bf16.msra.mxu0 0
    %1289 = vmatpush.bf16.msra.mxu0 %v1259
    %1290 = vmatpush.bf16.msra.mxu0 %v1257
    %1291 = vmatpush.bf16.msra.mxu0 %v1255
    %1292 = vmatpush.bf16.msra.mxu0 %v1253
    %1293 = vmatmul.bf16.gmra.mxu0 %v1269
    %v1294 = vpop.f32.mrf.mxu0
    %v1295 = vadd.f32 %v1225, %v1294
    %v1296 = vpop.f32.mrf.mxu0
    %v1297 = vadd.f32 %v1225, %v1296
    %1298 = vdwg.mxu0
    %s1299 = scalar_lea.vmem %s7, 32
    %v1300 = vld [vmem:[%s1299] sm:$0xf]
    %v1301 = vld [vmem:[%s1299 + $0x4] sm:$0xf]
    %v1302 = vld [vmem:[%s1299 + $0x8] sm:$0xf]
    %v1303 = vld [vmem:[%s1299 + $0xc] sm:$0xf]
    %v1304 = vld [vmem:[%s1299 + $0x10] sm:$0xf]
    %v1305 = vld [vmem:[%s1299 + $0x14] sm:$0xf]
    %v1306 = vld [vmem:[%s1299 + $0x18] sm:$0xf]
    %v1307 = vld [vmem:[%s1299 + $0x1c] sm:$0xf]
    %v1308 = vmul.f32 %v1281, 0.25
    %v1309 = vmul.f32 %v1283, 0.25
    %1311 = vrot.lane.b32.xlu0 %v1281, 64
    %v1312 = vpop.permute.xlu0 %1311
    %v1314 = vsel %vm233, %v1308, 0
    %v1316 = vsel %vm233, %v1312, 0
    %1318 = vmatpush.xpose.msra.mxu0 0.0
    %1319 = vmatpush.xpose.msra.mxu0 0.0
    %1320 = vmatpush.xpose.msra.mxu0 0.0
    %1321 = vmatpush.xpose.msra.mxu0 0.0
    %1322 = vmatpush.xpose.msra.mxu0 0.0
    %1323 = vmatpush.xpose.msra.mxu0 0.0
    %1324 = vmatpush.xpose.msra.mxu0 0.0
    %1325 = vmatpush.xpose.msra.mxu0 0.0
    %1326 = vmatpush.xpose.msra.mxu0 0.0
    %1327 = vmatpush.xpose.msra.mxu0 0.0
    %1328 = vmatpush.xpose.msra.mxu0 0.0
    %1329 = vmatpush.xpose.msra.mxu0 0.0
    %1330 = vmatpush.xpose.msra.mxu0 0.0
    %1331 = vmatpush.xpose.msra.mxu0 0.0
    %1332 = vmatpush.xpose.msra.mxu0 0.0
    %1333 = vmatpush.xpose.msra.mxu0 %v1316
    %1334 = vmatmul.f32.gmra.mxu0 %v1314
    %v1335 = vpop.f32.mrf.mxu0
    %v1336 = vadd.f32 0.0, %v1335
    %1337 = vdwg.mxu0
    %1339 = vrot.lane.b32.xlu0 %v1283, 64
    %v1340 = vpop.permute.xlu0 %1339
    %v1342 = vsel %vm233, %v1309, 0
    %v1344 = vsel %vm233, %v1340, 0
    %1346 = vmatpush.xpose.msra.mxu0 0.0
    %1347 = vmatpush.xpose.msra.mxu0 0.0
    %1348 = vmatpush.xpose.msra.mxu0 0.0
    %1349 = vmatpush.xpose.msra.mxu0 0.0
    %1350 = vmatpush.xpose.msra.mxu0 0.0
    %1351 = vmatpush.xpose.msra.mxu0 0.0
    %1352 = vmatpush.xpose.msra.mxu0 0.0
    %1353 = vmatpush.xpose.msra.mxu0 0.0
    %1354 = vmatpush.xpose.msra.mxu0 0.0
    %1355 = vmatpush.xpose.msra.mxu0 0.0
    %1356 = vmatpush.xpose.msra.mxu0 0.0
    %1357 = vmatpush.xpose.msra.mxu0 0.0
    %1358 = vmatpush.xpose.msra.mxu0 0.0
    %1359 = vmatpush.xpose.msra.mxu0 0.0
    %1360 = vmatpush.xpose.msra.mxu0 0.0
    %1361 = vmatpush.xpose.msra.mxu0 %v1344
    %1362 = vmatmul.f32.gmra.mxu0 %v1342
    %v1363 = vpop.f32.mrf.mxu0
    %v1364 = vadd.f32 0.0, %v1363
    %1365 = vdwg.mxu0
    %v1366 = vsel %vm293, -3.4028235e+38, %v1336
    %v1367 = vsel %vm294, -3.4028235e+38, %v1364
    %v1368 = vsel %vm297, %v1366, -inf
    %1369 = vmax.xlane.f32.xlu0 %v1368
    %v1370 = vpop.xlane.xlu0 %1369
    %v1371 = vsel %vm297, %v1367, -inf
    %1372 = vmax.xlane.f32.xlu0 %v1371
    %v1373 = vpop.xlane.xlu0 %1372
    %v1374 = vsub.f32 %v1366, %v1370
    %v1375 = vsub.f32 %v1367, %v1373
    %v1376 = vmul.f32 %v1374, 1.442695
    %v1377 = vpow.pop %v1376
    %v1378 = vmul.f32 %v1375, 1.442695
    %v1379 = vpow.pop %v1378
    %v1380 = vsel %vm297, %v1377, 0.0
    %1381 = vadd.xlane.f32.xlu0 %v1380
    %v1382 = vpop.xlane.xlu0 %1381
    %v1383 = vsel %vm297, %v1379, 0.0
    %1384 = vadd.xlane.f32.xlu0 %v1383
    %v1385 = vpop.xlane.xlu0 %1384
    %v1386 = vrcp.pop %v1382
    %v1387 = vrcp.pop %v1385
    %v1388 = vmul.f32 %v1377, %v1386
    %v1389 = vmul.f32 %v1379, %v1387
    %v1391 = vsel %vm297, %v1388, 0
    %1393 = vmatpush.msra.mxu0 0.0
    %1394 = vmatpush.msra.mxu0 0.0
    %1395 = vmatpush.msra.mxu0 0.0
    %1396 = vmatpush.msra.mxu0 0.0
    %1397 = vmatpush.msra.mxu0 0.0
    %1398 = vmatpush.msra.mxu0 0.0
    %1399 = vmatpush.msra.mxu0 0.0
    %1400 = vmatpush.msra.mxu0 0.0
    %1401 = vmatpush.msra.mxu0 0.0
    %1402 = vmatpush.msra.mxu0 0.0
    %1403 = vmatpush.msra.mxu0 0.0
    %1404 = vmatpush.msra.mxu0 0.0
    %1405 = vmatpush.msra.mxu0 0.0
    %1406 = vmatpush.msra.mxu0 0.0
    %1407 = vmatpush.msra.mxu0 0.0
    %1408 = vmatpush.msra.mxu0 %v1295
    %1409 = vmatmul.f32.gmra.mxu0 %v1391
    %v1410 = vpop.f32.mrf.mxu0
    %v1411 = vadd.f32 0.0, %v1410
    %1412 = vdwg.mxu0
    %v1414 = vsel %vm297, %v1389, 0
    %1416 = vmatpush.msra.mxu0 0.0
    %1417 = vmatpush.msra.mxu0 0.0
    %1418 = vmatpush.msra.mxu0 0.0
    %1419 = vmatpush.msra.mxu0 0.0
    %1420 = vmatpush.msra.mxu0 0.0
    %1421 = vmatpush.msra.mxu0 0.0
    %1422 = vmatpush.msra.mxu0 0.0
    %1423 = vmatpush.msra.mxu0 0.0
    %1424 = vmatpush.msra.mxu0 0.0
    %1425 = vmatpush.msra.mxu0 0.0
    %1426 = vmatpush.msra.mxu0 0.0
    %1427 = vmatpush.msra.mxu0 0.0
    %1428 = vmatpush.msra.mxu0 0.0
    %1429 = vmatpush.msra.mxu0 0.0
    %1430 = vmatpush.msra.mxu0 0.0
    %1431 = vmatpush.msra.mxu0 %v1297
    %1432 = vmatmul.f32.gmra.mxu0 %v1414
    %v1433 = vpop.f32.mrf.mxu0
    %v1434 = vadd.f32 0.0, %v1433
    %1435 = vdwg.mxu0
    %v1436 = vpack.c.bf16 %v1434, %v1411
    %1437 = vrot.lane.b32.xlu0 %v1308, 112
    %v1438 = vpop.permute.xlu0 %1437
    %1439 = vrot.lane.b32.xlu0 %v1281, 48
    %v1440 = vpop.permute.xlu0 %1439
    %v1441 = vsel %vm233, %v1438, 0
    %v1443 = vsel %vm233, %v1440, 0
    %1445 = vmatpush.xpose.msra.mxu0 0.0
    %1446 = vmatpush.xpose.msra.mxu0 0.0
    %1447 = vmatpush.xpose.msra.mxu0 0.0
    %1448 = vmatpush.xpose.msra.mxu0 0.0
    %1449 = vmatpush.xpose.msra.mxu0 0.0
    %1450 = vmatpush.xpose.msra.mxu0 0.0
    %1451 = vmatpush.xpose.msra.mxu0 0.0
    %1452 = vmatpush.xpose.msra.mxu0 0.0
    %1453 = vmatpush.xpose.msra.mxu0 0.0
    %1454 = vmatpush.xpose.msra.mxu0 0.0
    %1455 = vmatpush.xpose.msra.mxu0 0.0
    %1456 = vmatpush.xpose.msra.mxu0 0.0
    %1457 = vmatpush.xpose.msra.mxu0 0.0
    %1458 = vmatpush.xpose.msra.mxu0 0.0
    %1459 = vmatpush.xpose.msra.mxu0 0.0
    %1460 = vmatpush.xpose.msra.mxu0 %v1443
    %1461 = vmatmul.f32.gmra.mxu0 %v1441
    %v1462 = vpop.f32.mrf.mxu0
    %v1463 = vadd.f32 0.0, %v1462
    %1464 = vdwg.mxu0
    %1465 = vrot.lane.b32.xlu0 %v1309, 112
    %v1466 = vpop.permute.xlu0 %1465
    %1467 = vrot.lane.b32.xlu0 %v1283, 48
    %v1468 = vpop.permute.xlu0 %1467
    %v1469 = vsel %vm233, %v1466, 0
    %v1471 = vsel %vm233, %v1468, 0
    %1473 = vmatpush.xpose.msra.mxu0 0.0
    %1474 = vmatpush.xpose.msra.mxu0 0.0
    %1475 = vmatpush.xpose.msra.mxu0 0.0
    %1476 = vmatpush.xpose.msra.mxu0 0.0
    %1477 = vmatpush.xpose.msra.mxu0 0.0
    %1478 = vmatpush.xpose.msra.mxu0 0.0
    %1479 = vmatpush.xpose.msra.mxu0 0.0
    %1480 = vmatpush.xpose.msra.mxu0 0.0
    %1481 = vmatpush.xpose.msra.mxu0 0.0
    %1482 = vmatpush.xpose.msra.mxu0 0.0
    %1483 = vmatpush.xpose.msra.mxu0 0.0
    %1484 = vmatpush.xpose.msra.mxu0 0.0
    %1485 = vmatpush.xpose.msra.mxu0 0.0
    %1486 = vmatpush.xpose.msra.mxu0 0.0
    %1487 = vmatpush.xpose.msra.mxu0 0.0
    %1488 = vmatpush.xpose.msra.mxu0 %v1471
    %1489 = vmatmul.f32.gmra.mxu0 %v1469
    %v1490 = vpop.f32.mrf.mxu0
    %v1491 = vadd.f32 0.0, %v1490
    %1492 = vdwg.mxu0
    %v1493 = vsel %vm293, -3.4028235e+38, %v1463
    %v1494 = vsel %vm294, -3.4028235e+38, %v1491
    %v1495 = vsel %vm297, %v1493, -inf
    %1496 = vmax.xlane.f32.xlu0 %v1495
    %v1497 = vpop.xlane.xlu0 %1496
    %v1498 = vsel %vm297, %v1494, -inf
    %1499 = vmax.xlane.f32.xlu0 %v1498
    %v1500 = vpop.xlane.xlu0 %1499
    %v1501 = vsub.f32 %v1493, %v1497
    %v1502 = vsub.f32 %v1494, %v1500
    %v1503 = vmul.f32 %v1501, 1.442695
    %v1504 = vpow.pop %v1503
    %v1505 = vmul.f32 %v1502, 1.442695
    %v1506 = vpow.pop %v1505
    %v1507 = vsel %vm297, %v1504, 0.0
    %1508 = vadd.xlane.f32.xlu0 %v1507
    %v1509 = vpop.xlane.xlu0 %1508
    %v1510 = vsel %vm297, %v1506, 0.0
    %1511 = vadd.xlane.f32.xlu0 %v1510
    %v1512 = vpop.xlane.xlu0 %1511
    %v1513 = vrcp.pop %v1509
    %v1514 = vrcp.pop %v1512
    %v1515 = vmul.f32 %v1504, %v1513
    %v1516 = vmul.f32 %v1506, %v1514
    %1518 = vrot.lane.b32.xlu0 %v1295, 112
    %v1519 = vpop.permute.xlu0 %1518
    %v1522 = vsel %vm297, %v1515, 0
    %1524 = vmatpush.msra.mxu0 0.0
    %1525 = vmatpush.msra.mxu0 0.0
    %1526 = vmatpush.msra.mxu0 0.0
    %1527 = vmatpush.msra.mxu0 0.0
    %1528 = vmatpush.msra.mxu0 0.0
    %1529 = vmatpush.msra.mxu0 0.0
    %1530 = vmatpush.msra.mxu0 0.0
    %1531 = vmatpush.msra.mxu0 0.0
    %1532 = vmatpush.msra.mxu0 0.0
    %1533 = vmatpush.msra.mxu0 0.0
    %1534 = vmatpush.msra.mxu0 0.0
    %1535 = vmatpush.msra.mxu0 0.0
    %1536 = vmatpush.msra.mxu0 0.0
    %1537 = vmatpush.msra.mxu0 0.0
    %1538 = vmatpush.msra.mxu0 0.0
    %1539 = vmatpush.msra.mxu0 %v1519
    %1540 = vmatmul.f32.gmra.mxu0 %v1522
    %v1541 = vpop.f32.mrf.mxu0
    %v1542 = vadd.f32 0.0, %v1541
    %1543 = vdwg.mxu0
    %1545 = vrot.lane.b32.xlu0 %v1297, 112
    %v1546 = vpop.permute.xlu0 %1545
    %v1549 = vsel %vm297, %v1516, 0
    %1551 = vmatpush.msra.mxu0 0.0
    %1552 = vmatpush.msra.mxu0 0.0
    %1553 = vmatpush.msra.mxu0 0.0
    %1554 = vmatpush.msra.mxu0 0.0
    %1555 = vmatpush.msra.mxu0 0.0
    %1556 = vmatpush.msra.mxu0 0.0
    %1557 = vmatpush.msra.mxu0 0.0
    %1558 = vmatpush.msra.mxu0 0.0
    %1559 = vmatpush.msra.mxu0 0.0
    %1560 = vmatpush.msra.mxu0 0.0
    %1561 = vmatpush.msra.mxu0 0.0
    %1562 = vmatpush.msra.mxu0 0.0
    %1563 = vmatpush.msra.mxu0 0.0
    %1564 = vmatpush.msra.mxu0 0.0
    %1565 = vmatpush.msra.mxu0 0.0
    %1566 = vmatpush.msra.mxu0 %v1546
    %1567 = vmatmul.f32.gmra.mxu0 %v1549
    %v1568 = vpop.f32.mrf.mxu0
    %v1569 = vadd.f32 0.0, %v1568
    %1570 = vdwg.mxu0
    %v1571 = vpack.c.bf16 %v1569, %v1542
    %v1574 = vunpack.c.l.b16 %v1302
    %v1575 = vunpack.c.l.b16 %v1303
    %v1576 = vpack.c.b16 %v1575, %v1574
    %v1579 = vsel %vm233, %v1571, 0
    %1581 = vmatpush.bf16.msra.mxu0 0
    %1582 = vmatpush.bf16.msra.mxu0 0
    %1583 = vmatpush.bf16.msra.mxu0 0
    %1584 = vmatpush.bf16.msra.mxu0 0
    %1585 = vmatpush.bf16.msra.mxu0 0
    %1586 = vmatpush.bf16.msra.mxu0 0
    %1587 = vmatpush.bf16.msra.mxu0 0
    %1588 = vmatpush.bf16.msra.mxu0 %v1576
    %1589 = vmatmul.bf16.gmra.mxu0 %v1579
    %v1590 = vpop.f32.mrf.mxu0
    %v1591 = vadd.f32 0.0, %v1590
    %v1592 = vpop.f32.mrf.mxu0
    %v1593 = vadd.f32 0.0, %v1592
    %1594 = vdwg.mxu0
    %v1597 = vunpack.c.l.b16 %v1300
    %v1598 = vunpack.c.l.b16 %v1301
    %v1599 = vpack.c.b16 %v1598, %v1597
    %v1602 = vsel %vm233, %v1436, 0
    %1604 = vmatpush.bf16.msra.mxu0 0
    %1605 = vmatpush.bf16.msra.mxu0 0
    %1606 = vmatpush.bf16.msra.mxu0 0
    %1607 = vmatpush.bf16.msra.mxu0 0
    %1608 = vmatpush.bf16.msra.mxu0 0
    %1609 = vmatpush.bf16.msra.mxu0 0
    %1610 = vmatpush.bf16.msra.mxu0 0
    %1611 = vmatpush.bf16.msra.mxu0 %v1599
    %1612 = vmatmul.bf16.gmra.mxu0 %v1602
    %v1613 = vpop.f32.mrf.mxu0
    %v1614 = vadd.f32 %v1591, %v1613
    %v1615 = vpop.f32.mrf.mxu0
    %v1616 = vadd.f32 %v1593, %v1615
    %1617 = vdwg.mxu0
    %1618 = vrot.lane.b32.xlu0 %v1308, 96
    %v1619 = vpop.permute.xlu0 %1618
    %1620 = vrot.lane.b32.xlu0 %v1281, 32
    %v1621 = vpop.permute.xlu0 %1620
    %v1622 = vsel %vm233, %v1619, 0
    %v1624 = vsel %vm233, %v1621, 0
    %1626 = vmatpush.xpose.msra.mxu0 0.0
    %1627 = vmatpush.xpose.msra.mxu0 0.0
    %1628 = vmatpush.xpose.msra.mxu0 0.0
    %1629 = vmatpush.xpose.msra.mxu0 0.0
    %1630 = vmatpush.xpose.msra.mxu0 0.0
    %1631 = vmatpush.xpose.msra.mxu0 0.0
    %1632 = vmatpush.xpose.msra.mxu0 0.0
    %1633 = vmatpush.xpose.msra.mxu0 0.0
    %1634 = vmatpush.xpose.msra.mxu0 0.0
    %1635 = vmatpush.xpose.msra.mxu0 0.0
    %1636 = vmatpush.xpose.msra.mxu0 0.0
    %1637 = vmatpush.xpose.msra.mxu0 0.0
    %1638 = vmatpush.xpose.msra.mxu0 0.0
    %1639 = vmatpush.xpose.msra.mxu0 0.0
    %1640 = vmatpush.xpose.msra.mxu0 0.0
    %1641 = vmatpush.xpose.msra.mxu0 %v1624
    %1642 = vmatmul.f32.gmra.mxu0 %v1622
    %v1643 = vpop.f32.mrf.mxu0
    %v1644 = vadd.f32 0.0, %v1643
    %1645 = vdwg.mxu0
    %1646 = vrot.lane.b32.xlu0 %v1309, 96
    %v1647 = vpop.permute.xlu0 %1646
    %1648 = vrot.lane.b32.xlu0 %v1283, 32
    %v1649 = vpop.permute.xlu0 %1648
    %v1650 = vsel %vm233, %v1647, 0
    %v1652 = vsel %vm233, %v1649, 0
    %1654 = vmatpush.xpose.msra.mxu0 0.0
    %1655 = vmatpush.xpose.msra.mxu0 0.0
    %1656 = vmatpush.xpose.msra.mxu0 0.0
    %1657 = vmatpush.xpose.msra.mxu0 0.0
    %1658 = vmatpush.xpose.msra.mxu0 0.0
    %1659 = vmatpush.xpose.msra.mxu0 0.0
    %1660 = vmatpush.xpose.msra.mxu0 0.0
    %1661 = vmatpush.xpose.msra.mxu0 0.0
    %1662 = vmatpush.xpose.msra.mxu0 0.0
    %1663 = vmatpush.xpose.msra.mxu0 0.0
    %1664 = vmatpush.xpose.msra.mxu0 0.0
    %1665 = vmatpush.xpose.msra.mxu0 0.0
    %1666 = vmatpush.xpose.msra.mxu0 0.0
    %1667 = vmatpush.xpose.msra.mxu0 0.0
    %1668 = vmatpush.xpose.msra.mxu0 0.0
    %1669 = vmatpush.xpose.msra.mxu0 %v1652
    %1670 = vmatmul.f32.gmra.mxu0 %v1650
    %v1671 = vpop.f32.mrf.mxu0
    %v1672 = vadd.f32 0.0, %v1671
    %1673 = vdwg.mxu0
    %v1674 = vsel %vm293, -3.4028235e+38, %v1644
    %v1675 = vsel %vm294, -3.4028235e+38, %v1672
    %v1676 = vsel %vm297, %v1674, -inf
    %1677 = vmax.xlane.f32.xlu0 %v1676
    %v1678 = vpop.xlane.xlu0 %1677
    %v1679 = vsel %vm297, %v1675, -inf
    %1680 = vmax.xlane.f32.xlu0 %v1679
    %v1681 = vpop.xlane.xlu0 %1680
    %v1682 = vsub.f32 %v1674, %v1678
    %v1683 = vsub.f32 %v1675, %v1681
    %v1684 = vmul.f32 %v1682, 1.442695
    %v1685 = vpow.pop %v1684
    %v1686 = vmul.f32 %v1683, 1.442695
    %v1687 = vpow.pop %v1686
    %v1688 = vsel %vm297, %v1685, 0.0
    %1689 = vadd.xlane.f32.xlu0 %v1688
    %v1690 = vpop.xlane.xlu0 %1689
    %v1691 = vsel %vm297, %v1687, 0.0
    %1692 = vadd.xlane.f32.xlu0 %v1691
    %v1693 = vpop.xlane.xlu0 %1692
    %v1694 = vrcp.pop %v1690
    %v1695 = vrcp.pop %v1693
    %v1696 = vmul.f32 %v1685, %v1694
    %v1697 = vmul.f32 %v1687, %v1695
    %1698 = vrot.lane.b32.xlu0 %v1295, 96
    %v1699 = vpop.permute.xlu0 %1698
    %v1702 = vsel %vm297, %v1696, 0
    %1704 = vmatpush.msra.mxu0 0.0
    %1705 = vmatpush.msra.mxu0 0.0
    %1706 = vmatpush.msra.mxu0 0.0
    %1707 = vmatpush.msra.mxu0 0.0
    %1708 = vmatpush.msra.mxu0 0.0
    %1709 = vmatpush.msra.mxu0 0.0
    %1710 = vmatpush.msra.mxu0 0.0
    %1711 = vmatpush.msra.mxu0 0.0
    %1712 = vmatpush.msra.mxu0 0.0
    %1713 = vmatpush.msra.mxu0 0.0
    %1714 = vmatpush.msra.mxu0 0.0
    %1715 = vmatpush.msra.mxu0 0.0
    %1716 = vmatpush.msra.mxu0 0.0
    %1717 = vmatpush.msra.mxu0 0.0
    %1718 = vmatpush.msra.mxu0 0.0
    %1719 = vmatpush.msra.mxu0 %v1699
    %1720 = vmatmul.f32.gmra.mxu0 %v1702
    %v1721 = vpop.f32.mrf.mxu0
    %v1722 = vadd.f32 0.0, %v1721
    %1723 = vdwg.mxu0
    %1724 = vrot.lane.b32.xlu0 %v1297, 96
    %v1725 = vpop.permute.xlu0 %1724
    %v1728 = vsel %vm297, %v1697, 0
    %1730 = vmatpush.msra.mxu0 0.0
    %1731 = vmatpush.msra.mxu0 0.0
    %1732 = vmatpush.msra.mxu0 0.0
    %1733 = vmatpush.msra.mxu0 0.0
    %1734 = vmatpush.msra.mxu0 0.0
    %1735 = vmatpush.msra.mxu0 0.0
    %1736 = vmatpush.msra.mxu0 0.0
    %1737 = vmatpush.msra.mxu0 0.0
    %1738 = vmatpush.msra.mxu0 0.0
    %1739 = vmatpush.msra.mxu0 0.0
    %1740 = vmatpush.msra.mxu0 0.0
    %1741 = vmatpush.msra.mxu0 0.0
    %1742 = vmatpush.msra.mxu0 0.0
    %1743 = vmatpush.msra.mxu0 0.0
    %1744 = vmatpush.msra.mxu0 0.0
    %1745 = vmatpush.msra.mxu0 %v1725
    %1746 = vmatmul.f32.gmra.mxu0 %v1728
    %v1747 = vpop.f32.mrf.mxu0
    %v1748 = vadd.f32 0.0, %v1747
    %1749 = vdwg.mxu0
    %v1750 = vpack.c.bf16 %v1748, %v1722
    %v1753 = vunpack.c.l.b16 %v1304
    %v1754 = vunpack.c.l.b16 %v1305
    %v1755 = vpack.c.b16 %v1754, %v1753
    %v1758 = vsel %vm233, %v1750, 0
    %1760 = vmatpush.bf16.msra.mxu0 0
    %1761 = vmatpush.bf16.msra.mxu0 0
    %1762 = vmatpush.bf16.msra.mxu0 0
    %1763 = vmatpush.bf16.msra.mxu0 0
    %1764 = vmatpush.bf16.msra.mxu0 0
    %1765 = vmatpush.bf16.msra.mxu0 0
    %1766 = vmatpush.bf16.msra.mxu0 0
    %1767 = vmatpush.bf16.msra.mxu0 %v1755
    %1768 = vmatmul.bf16.gmra.mxu0 %v1758
    %v1769 = vpop.f32.mrf.mxu0
    %v1770 = vadd.f32 0.0, %v1769
    %v1771 = vpop.f32.mrf.mxu0
    %v1772 = vadd.f32 0.0, %v1771
    %1773 = vdwg.mxu0
    %v1774 = vadd.f32 %v1614, %v1770
    %v1775 = vadd.f32 %v1616, %v1772
    %1776 = vrot.lane.b32.xlu0 %v1308, 80
    %v1777 = vpop.permute.xlu0 %1776
    %1778 = vrot.lane.b32.xlu0 %v1281, 16
    %v1779 = vpop.permute.xlu0 %1778
    %v1780 = vsel %vm233, %v1777, 0
    %v1782 = vsel %vm233, %v1779, 0
    %1784 = vmatpush.xpose.msra.mxu0 0.0
    %1785 = vmatpush.xpose.msra.mxu0 0.0
    %1786 = vmatpush.xpose.msra.mxu0 0.0
    %1787 = vmatpush.xpose.msra.mxu0 0.0
    %1788 = vmatpush.xpose.msra.mxu0 0.0
    %1789 = vmatpush.xpose.msra.mxu0 0.0
    %1790 = vmatpush.xpose.msra.mxu0 0.0
    %1791 = vmatpush.xpose.msra.mxu0 0.0
    %1792 = vmatpush.xpose.msra.mxu0 0.0
    %1793 = vmatpush.xpose.msra.mxu0 0.0
    %1794 = vmatpush.xpose.msra.mxu0 0.0
    %1795 = vmatpush.xpose.msra.mxu0 0.0
    %1796 = vmatpush.xpose.msra.mxu0 0.0
    %1797 = vmatpush.xpose.msra.mxu0 0.0
    %1798 = vmatpush.xpose.msra.mxu0 0.0
    %1799 = vmatpush.xpose.msra.mxu0 %v1782
    %1800 = vmatmul.f32.gmra.mxu0 %v1780
    %v1801 = vpop.f32.mrf.mxu0
    %v1802 = vadd.f32 0.0, %v1801
    %1803 = vdwg.mxu0
    %1804 = vrot.lane.b32.xlu0 %v1309, 80
    %v1805 = vpop.permute.xlu0 %1804
    %1806 = vrot.lane.b32.xlu0 %v1283, 16
    %v1807 = vpop.permute.xlu0 %1806
    %v1808 = vsel %vm233, %v1805, 0
    %v1810 = vsel %vm233, %v1807, 0
    %1812 = vmatpush.xpose.msra.mxu0 0.0
    %1813 = vmatpush.xpose.msra.mxu0 0.0
    %1814 = vmatpush.xpose.msra.mxu0 0.0
    %1815 = vmatpush.xpose.msra.mxu0 0.0
    %1816 = vmatpush.xpose.msra.mxu0 0.0
    %1817 = vmatpush.xpose.msra.mxu0 0.0
    %1818 = vmatpush.xpose.msra.mxu0 0.0
    %1819 = vmatpush.xpose.msra.mxu0 0.0
    %1820 = vmatpush.xpose.msra.mxu0 0.0
    %1821 = vmatpush.xpose.msra.mxu0 0.0
    %1822 = vmatpush.xpose.msra.mxu0 0.0
    %1823 = vmatpush.xpose.msra.mxu0 0.0
    %1824 = vmatpush.xpose.msra.mxu0 0.0
    %1825 = vmatpush.xpose.msra.mxu0 0.0
    %1826 = vmatpush.xpose.msra.mxu0 0.0
    %1827 = vmatpush.xpose.msra.mxu0 %v1810
    %1828 = vmatmul.f32.gmra.mxu0 %v1808
    %v1829 = vpop.f32.mrf.mxu0
    %v1830 = vadd.f32 0.0, %v1829
    %1831 = vdwg.mxu0
    %v1832 = vsel %vm293, -3.4028235e+38, %v1802
    %v1833 = vsel %vm294, -3.4028235e+38, %v1830
    %v1834 = vsel %vm297, %v1832, -inf
    %1835 = vmax.xlane.f32.xlu0 %v1834
    %v1836 = vpop.xlane.xlu0 %1835
    %v1837 = vsel %vm297, %v1833, -inf
    %1838 = vmax.xlane.f32.xlu0 %v1837
    %v1839 = vpop.xlane.xlu0 %1838
    %v1840 = vsub.f32 %v1832, %v1836
    %v1841 = vsub.f32 %v1833, %v1839
    %v1842 = vmul.f32 %v1840, 1.442695
    %v1843 = vpow.pop %v1842
    %v1844 = vmul.f32 %v1841, 1.442695
    %v1845 = vpow.pop %v1844
    %v1846 = vsel %vm297, %v1843, 0.0
    %1847 = vadd.xlane.f32.xlu0 %v1846
    %v1848 = vpop.xlane.xlu0 %1847
    %v1849 = vsel %vm297, %v1845, 0.0
    %1850 = vadd.xlane.f32.xlu0 %v1849
    %v1851 = vpop.xlane.xlu0 %1850
    %v1852 = vrcp.pop %v1848
    %v1853 = vrcp.pop %v1851
    %v1854 = vmul.f32 %v1843, %v1852
    %v1855 = vmul.f32 %v1845, %v1853
    %1856 = vrot.lane.b32.xlu0 %v1295, 80
    %v1857 = vpop.permute.xlu0 %1856
    %v1860 = vsel %vm297, %v1854, 0
    %1862 = vmatpush.msra.mxu0 0.0
    %1863 = vmatpush.msra.mxu0 0.0
    %1864 = vmatpush.msra.mxu0 0.0
    %1865 = vmatpush.msra.mxu0 0.0
    %1866 = vmatpush.msra.mxu0 0.0
    %1867 = vmatpush.msra.mxu0 0.0
    %1868 = vmatpush.msra.mxu0 0.0
    %1869 = vmatpush.msra.mxu0 0.0
    %1870 = vmatpush.msra.mxu0 0.0
    %1871 = vmatpush.msra.mxu0 0.0
    %1872 = vmatpush.msra.mxu0 0.0
    %1873 = vmatpush.msra.mxu0 0.0
    %1874 = vmatpush.msra.mxu0 0.0
    %1875 = vmatpush.msra.mxu0 0.0
    %1876 = vmatpush.msra.mxu0 0.0
    %1877 = vmatpush.msra.mxu0 %v1857
    %1878 = vmatmul.f32.gmra.mxu0 %v1860
    %v1879 = vpop.f32.mrf.mxu0
    %v1880 = vadd.f32 0.0, %v1879
    %1881 = vdwg.mxu0
    %1882 = vrot.lane.b32.xlu0 %v1297, 80
    %v1883 = vpop.permute.xlu0 %1882
    %v1886 = vsel %vm297, %v1855, 0
    %1888 = vmatpush.msra.mxu0 0.0
    %1889 = vmatpush.msra.mxu0 0.0
    %1890 = vmatpush.msra.mxu0 0.0
    %1891 = vmatpush.msra.mxu0 0.0
    %1892 = vmatpush.msra.mxu0 0.0
    %1893 = vmatpush.msra.mxu0 0.0
    %1894 = vmatpush.msra.mxu0 0.0
    %1895 = vmatpush.msra.mxu0 0.0
    %1896 = vmatpush.msra.mxu0 0.0
    %1897 = vmatpush.msra.mxu0 0.0
    %1898 = vmatpush.msra.mxu0 0.0
    %1899 = vmatpush.msra.mxu0 0.0
    %1900 = vmatpush.msra.mxu0 0.0
    %1901 = vmatpush.msra.mxu0 0.0
    %1902 = vmatpush.msra.mxu0 0.0
    %1903 = vmatpush.msra.mxu0 %v1883
    %1904 = vmatmul.f32.gmra.mxu0 %v1886
    %v1905 = vpop.f32.mrf.mxu0
    %v1906 = vadd.f32 0.0, %v1905
    %1907 = vdwg.mxu0
    %v1908 = vpack.c.bf16 %v1906, %v1880
    %v1911 = vunpack.c.l.b16 %v1306
    %v1912 = vunpack.c.l.b16 %v1307
    %v1913 = vpack.c.b16 %v1912, %v1911
    %v1916 = vsel %vm233, %v1908, 0
    %1918 = vmatpush.bf16.msra.mxu0 0
    %1919 = vmatpush.bf16.msra.mxu0 0
    %1920 = vmatpush.bf16.msra.mxu0 0
    %1921 = vmatpush.bf16.msra.mxu0 0
    %1922 = vmatpush.bf16.msra.mxu0 0
    %1923 = vmatpush.bf16.msra.mxu0 0
    %1924 = vmatpush.bf16.msra.mxu0 0
    %1925 = vmatpush.bf16.msra.mxu0 %v1913
    %1926 = vmatmul.bf16.gmra.mxu0 %v1916
    %v1927 = vpop.f32.mrf.mxu0
    %v1928 = vadd.f32 0.0, %v1927
    %v1929 = vpop.f32.mrf.mxu0
    %v1930 = vadd.f32 0.0, %v1929
    %1931 = vdwg.mxu0
    %v1932 = vadd.f32 %v1774, %v1928
    %v1933 = vadd.f32 %v1775, %v1930
    %s1934 = scalar_lea.vmem %s8, 1
    %v1935 = vld [vmem:[%s1934] sm:$0x1]
    %v1937 = vperm.slane %v1935, 0
    %v1939 = vadd.f32 %v1932, %v1937
    %v1940 = vadd.f32 %v1933, %v1937
    %v1941 = vadd.f32 %v1939, %v1209
    %v1942 = vadd.f32 %v1940, %v1210
    %s1943 = scalar_lea.vmem %s9, 1
    %v1944 = vld [vmem:[%s1943] sm:$0x1]
    %s1945 = scalar_lea.vmem %s10, 1
    %v1946 = vld [vmem:[%s1945] sm:$0x1]
    %v1947 = vsel %vm72, %v1941, 0.0
    %1948 = vadd.xlane.f32.xlu0 %v1947
    %v1949 = vpop.xlane.xlu0 %1948
    %v1950 = vsel %vm72, %v1942, 0.0
    %1951 = vadd.xlane.f32.xlu0 %v1950
    %v1952 = vpop.xlane.xlu0 %1951
    %v1953 = vmul.f32 %v1949, %v85
    %v1954 = vmul.f32 %v1952, %v85
    %v1955 = vsub.f32 %v1941, %v1953
    %v1956 = vsub.f32 %v1942, %v1954
    %v1957 = vmul.f32 %v1955, %v1955
    %v1958 = vmul.f32 %v1956, %v1956
    %v1959 = vsel %vm72, %v1957, 0.0
    %1960 = vadd.xlane.f32.xlu0 %v1959
    %v1961 = vpop.xlane.xlu0 %1960
    %v1962 = vsel %vm72, %v1958, 0.0
    %1963 = vadd.xlane.f32.xlu0 %v1962
    %v1964 = vpop.xlane.xlu0 %1963
    %v1965 = vmul.f32 %v1961, %v85
    %v1966 = vmul.f32 %v1964, %v85
    %v1967 = vadd.f32 %v1965, 1e-12
    %v1968 = vadd.f32 %v1966, 1e-12
    %v1969 = vrsqrt.pop %v1967
    %v1970 = vmul.f32 %v1969, %v1967
    %v1971 = vmul.f32 %v1970, %v1969
    %v1972 = vmul.f32 0.5, %v1971
    %v1973 = vsub.f32 1.5, %v1972
    %v1974 = vmul.f32 %v1969, %v1973
    %vm1975 = vweird.f32 %v1967
    %vm1976 = vweird.f32 %v1969
    %vm1977 = vmor %vm1975, %vm1976
    %v1978 = vsel %vm1977, %v1969, %v1974
    %v1979 = vrsqrt.pop %v1968
    %v1980 = vmul.f32 %v1979, %v1968
    %v1981 = vmul.f32 %v1980, %v1979
    %v1982 = vmul.f32 0.5, %v1981
    %v1983 = vsub.f32 1.5, %v1982
    %v1984 = vmul.f32 %v1979, %v1983
    %vm1985 = vweird.f32 %v1968
    %vm1986 = vweird.f32 %v1979
    %vm1987 = vmor %vm1985, %vm1986
    %v1988 = vsel %vm1987, %v1979, %v1984
    %v1989 = vmul.f32 %v1955, %v1978
    %v1990 = vmul.f32 %v1956, %v1988
    %v1992 = vperm.slane %v1944, 0
    %v1994 = vmul.f32 %v1989, %v1992
    %v1995 = vmul.f32 %v1990, %v1992
    %v1997 = vperm.slane %v1946, 0
    %v1999 = vadd.f32 %v1994, %v1997
    %v2000 = vadd.f32 %v1995, %v1997
    %v2001 = vpack.c.bf16 %v2000, %v1999
    %s2002 = scalar_lea.vmem %s11, 32
    %v2003 = vld [vmem:[%s2002] sm:$0xf]
    %v2004 = vld [vmem:[%s2002 + $0x4] sm:$0xf]
    %v2005 = vld [vmem:[%s2002 + $0x8] sm:$0xf]
    %v2006 = vld [vmem:[%s2002 + $0xc] sm:$0xf]
    %v2007 = vld [vmem:[%s2002 + $0x10] sm:$0xf]
    %v2008 = vld [vmem:[%s2002 + $0x14] sm:$0xf]
    %v2009 = vld [vmem:[%s2002 + $0x18] sm:$0xf]
    %v2010 = vld [vmem:[%s2002 + $0x1c] sm:$0xf]
    %s2011 = scalar_lea.vmem %s12, 1
    %v2012 = vld [vmem:[%s2011] sm:$0x1]
    %v2014 = vperm.slane %v2012, 0
    %v2024 = vunpack.c.l.b16 %v2003
    %v2025 = vunpack.c.l.b16 %v2004
    %v2026 = vunpack.c.l.b16 %v2005
    %v2027 = vunpack.c.l.b16 %v2006
    %v2028 = vunpack.c.l.b16 %v2007
    %v2029 = vunpack.c.l.b16 %v2008
    %v2030 = vunpack.c.l.b16 %v2009
    %v2031 = vunpack.c.l.b16 %v2010
    %v2032 = vpack.c.b16 %v2025, %v2024
    %v2033 = vpack.c.b16 %v2027, %v2026
    %v2034 = vpack.c.b16 %v2029, %v2028
    %v2035 = vpack.c.b16 %v2031, %v2030
    %v2041 = vsel %vm72, %v2001, 0
    %2043 = vmatpush.bf16.msra.mxu0 0
    %2044 = vmatpush.bf16.msra.mxu0 0
    %2045 = vmatpush.bf16.msra.mxu0 0
    %2046 = vmatpush.bf16.msra.mxu0 0
    %2047 = vmatpush.bf16.msra.mxu0 %v2035
    %2048 = vmatpush.bf16.msra.mxu0 %v2034
    %2049 = vmatpush.bf16.msra.mxu0 %v2033
    %2050 = vmatpush.bf16.msra.mxu0 %v2032
    %2051 = vmatmul.bf16.gmra.mxu0 %v2041
    %v2052 = vpop.f32.mrf.mxu0
    %v2053 = vadd.f32 %v2014, %v2052
    %v2054 = vpop.f32.mrf.mxu0
    %v2055 = vadd.f32 %v2014, %v2054
    %2056 = vdwg.mxu0
    %v2057 = vmul.f32 %v2053, 0.5
    %v2058 = vmul.f32 %v2055, 0.5
    %v2059 = vmul.f32 %v2053, 0.70710677
    %v2060 = vmul.f32 %v2055, 0.70710677
    %v2061 = vmul.f32 %v2059, %v2059
    %v2062 = vmin.f32 16.0, %v2061
    %v2063 = vmul.f32 %v2062, 2.1237322e-06
    %v2064 = vadd.f32 %v2063, 0.00028619796
    %v2065 = vmul.f32 %v2062, %v2064
    %v2066 = vadd.f32 %v2065, 0.0036580483
    %v2067 = vmul.f32 %v2062, %v2066
    %v2068 = vadd.f32 %v2067, 0.05243302
    %v2069 = vmul.f32 %v2062, %v2068
    %v2070 = vadd.f32 %v2069, 0.18741608
    %v2071 = vmul.f32 %v2062, %v2070
    %v2072 = vadd.f32 %v2071, 1.1283791
    %v2073 = vmul.f32 %v2059, %v2072
    %v2074 = vmul.f32 %v2062, 3.8918573e-05
    %v2075 = vadd.f32 %v2074, 0.001143296
    %v2076 = vmul.f32 %v2062, %v2075
    %v2077 = vadd.f32 %v2076, 0.014752088
    %v2078 = vmul.f32 %v2062, %v2077
    %v2079 = vadd.f32 %v2078, 0.112945676
    %v2080 = vmul.f32 %v2062, %v2079
    %v2081 = vadd.f32 %v2080, 0.4994258
    %v2082 = vmul.f32 %v2062, %v2081
    %v2083 = vadd.f32 %v2082, 1.0
    %v2084 = vrcp.pop %v2083
    %v2085 = vmul.f32 %v2083, %v2084
    %v2086 = vsub.f32 1.0, %v2085
    %v2087 = vmul.f32 %v2084, %v2086
    %v2088 = vadd.f32 %v2084, %v2087
    %vm2089 = vweird.f32 %v2083
    %vm2090 = vweird.f32 %v2084
    %vm2091 = vmor %vm2089, %vm2090
    %v2092 = vsel %vm2091, %v2084, %v2088
    %v2093 = vand.u32 2147483647, %v2083
    %vm2094 = vcmp.eq.f32.partialorder %v2093, 8.507059e+37
    %v2095 = vand.u32 %v2083, 2147483648
    %v2096 = vor.u32 1.1754944e-38, %v2095
    %v2097 = vsel %vm2094, %v2096, %v2092
    %v2098 = vmul.f32 %v2073, %v2097
    %v2099 = vmin.f32 %v2098, 1.0
    %v2100 = vmax.f32 %v2099, -1.0
    %v2101 = vmul.f32 %v2060, %v2060
    %v2102 = vmin.f32 16.0, %v2101
    %v2103 = vmul.f32 %v2102, 2.1237322e-06
    %v2104 = vadd.f32 %v2103, 0.00028619796
    %v2105 = vmul.f32 %v2102, %v2104
    %v2106 = vadd.f32 %v2105, 0.0036580483
    %v2107 = vmul.f32 %v2102, %v2106
    %v2108 = vadd.f32 %v2107, 0.05243302
    %v2109 = vmul.f32 %v2102, %v2108
    %v2110 = vadd.f32 %v2109, 0.18741608
    %v2111 = vmul.f32 %v2102, %v2110
    %v2112 = vadd.f32 %v2111, 1.1283791
    %v2113 = vmul.f32 %v2060, %v2112
    %v2114 = vmul.f32 %v2102, 3.8918573e-05
    %v2115 = vadd.f32 %v2114, 0.001143296
    %v2116 = vmul.f32 %v2102, %v2115
    %v2117 = vadd.f32 %v2116, 0.014752088
    %v2118 = vmul.f32 %v2102, %v2117
    %v2119 = vadd.f32 %v2118, 0.112945676
    %v2120 = vmul.f32 %v2102, %v2119
    %v2121 = vadd.f32 %v2120, 0.4994258
    %v2122 = vmul.f32 %v2102, %v2121
    %v2123 = vadd.f32 %v2122, 1.0
    %v2124 = vrcp.pop %v2123
    %v2125 = vmul.f32 %v2123, %v2124
    %v2126 = vsub.f32 1.0, %v2125
    %v2127 = vmul.f32 %v2124, %v2126
    %v2128 = vadd.f32 %v2124, %v2127
    %vm2129 = vweird.f32 %v2123
    %vm2130 = vweird.f32 %v2124
    %vm2131 = vmor %vm2129, %vm2130
    %v2132 = vsel %vm2131, %v2124, %v2128
    %v2133 = vand.u32 2147483647, %v2123
    %vm2134 = vcmp.eq.f32.partialorder %v2133, 8.507059e+37
    %v2135 = vand.u32 %v2123, 2147483648
    %v2136 = vor.u32 1.1754944e-38, %v2135
    %v2137 = vsel %vm2134, %v2136, %v2132
    %v2138 = vmul.f32 %v2113, %v2137
    %v2139 = vmin.f32 %v2138, 1.0
    %v2140 = vmax.f32 %v2139, -1.0
    %v2141 = vadd.f32 %v2100, 1.0
    %v2142 = vadd.f32 %v2140, 1.0
    %v2143 = vmul.f32 %v2057, %v2141
    %v2144 = vmul.f32 %v2058, %v2142
    %v2145 = vpack.c.bf16 %v2144, %v2143
    %s2146 = scalar_lea.vmem %s13, 64
    %v2147 = vld [vmem:[%s2146] sm:$0xf]
    %v2148 = vld [vmem:[%s2146 + $0x4] sm:$0xf]
    %v2149 = vld [vmem:[%s2146 + $0x8] sm:$0xf]
    %v2150 = vld [vmem:[%s2146 + $0xc] sm:$0xf]
    %v2151 = vld [vmem:[%s2146 + $0x10] sm:$0xf]
    %v2152 = vld [vmem:[%s2146 + $0x14] sm:$0xf]
    %v2153 = vld [vmem:[%s2146 + $0x18] sm:$0xf]
    %v2154 = vld [vmem:[%s2146 + $0x1c] sm:$0xf]
    %v2155 = vld [vmem:[%s2146 + $0x20] sm:$0xf]
    %v2156 = vld [vmem:[%s2146 + $0x24] sm:$0xf]
    %v2157 = vld [vmem:[%s2146 + $0x28] sm:$0xf]
    %v2158 = vld [vmem:[%s2146 + $0x2c] sm:$0xf]
    %v2159 = vld [vmem:[%s2146 + $0x30] sm:$0xf]
    %v2160 = vld [vmem:[%s2146 + $0x34] sm:$0xf]
    %v2161 = vld [vmem:[%s2146 + $0x38] sm:$0xf]
    %v2162 = vld [vmem:[%s2146 + $0x3c] sm:$0xf]
    %s2163 = scalar_lea.vmem %s14, 1
    %v2164 = vld [vmem:[%s2163] sm:$0x1]
    %v2166 = vperm.slane %v2164, 0
    %v2184 = vunpack.c.l.b16 %v2147
    %v2185 = vunpack.c.l.b16 %v2148
    %v2186 = vunpack.c.l.b16 %v2149
    %v2187 = vunpack.c.l.b16 %v2150
    %v2188 = vunpack.c.l.b16 %v2151
    %v2189 = vunpack.c.l.b16 %v2152
    %v2190 = vunpack.c.l.b16 %v2153
    %v2191 = vunpack.c.l.b16 %v2154
    %v2192 = vunpack.c.l.b16 %v2155
    %v2193 = vunpack.c.l.b16 %v2156
    %v2194 = vunpack.c.l.b16 %v2157
    %v2195 = vunpack.c.l.b16 %v2158
    %v2196 = vunpack.c.l.b16 %v2159
    %v2197 = vunpack.c.l.b16 %v2160
    %v2198 = vunpack.c.l.b16 %v2161
    %v2199 = vunpack.c.l.b16 %v2162
    %v2200 = vpack.c.b16 %v2185, %v2184
    %v2201 = vpack.c.b16 %v2187, %v2186
    %v2202 = vpack.c.b16 %v2189, %v2188
    %v2203 = vpack.c.b16 %v2191, %v2190
    %v2204 = vpack.c.b16 %v2193, %v2192
    %v2205 = vpack.c.b16 %v2195, %v2194
    %v2206 = vpack.c.b16 %v2197, %v2196
    %v2207 = vpack.c.b16 %v2199, %v2198
    %2216 = vmatpush.bf16.msra.mxu0 %v2207
    %2217 = vmatpush.bf16.msra.mxu0 %v2206
    %2218 = vmatpush.bf16.msra.mxu0 %v2205
    %2219 = vmatpush.bf16.msra.mxu0 %v2204
    %2220 = vmatpush.bf16.msra.mxu0 %v2203
    %2221 = vmatpush.bf16.msra.mxu0 %v2202
    %2222 = vmatpush.bf16.msra.mxu0 %v2201
    %2223 = vmatpush.bf16.msra.mxu0 %v2200
    %2224 = vmatmul.bf16.gmra.mxu0 %v2145
    %v2225 = vpop.f32.mrf.mxu0
    %v2226 = vadd.f32 %v2166, %v2225
    %v2227 = vpop.f32.mrf.mxu0
    %v2228 = vadd.f32 %v2166, %v2227
    %2229 = vdwg.mxu0
    %v2230 = vadd.f32 %v2226, %v1999
    %v2231 = vadd.f32 %v2228, %v2000
    %s2232 = scalar_lea.vmem %s15, 1
    %v2233 = vld [vmem:[%s2232] sm:$0x1]
    %s2234 = scalar_lea.vmem %s16, 1
    %v2235 = vld [vmem:[%s2234] sm:$0x1]
    %v2236 = vsel %vm72, %v2230, 0.0
    %2237 = vadd.xlane.f32.xlu0 %v2236
    %v2238 = vpop.xlane.xlu0 %2237
    %v2239 = vsel %vm72, %v2231, 0.0
    %2240 = vadd.xlane.f32.xlu0 %v2239
    %v2241 = vpop.xlane.xlu0 %2240
    %v2242 = vmul.f32 %v2238, %v85
    %v2243 = vmul.f32 %v2241, %v85
    %v2244 = vsub.f32 %v2230, %v2242
    %v2245 = vsub.f32 %v2231, %v2243
    %v2246 = vmul.f32 %v2244, %v2244
    %v2247 = vmul.f32 %v2245, %v2245
    %v2248 = vsel %vm72, %v2246, 0.0
    %2249 = vadd.xlane.f32.xlu0 %v2248
    %v2250 = vpop.xlane.xlu0 %2249
    %v2251 = vsel %vm72, %v2247, 0.0
    %2252 = vadd.xlane.f32.xlu0 %v2251
    %v2253 = vpop.xlane.xlu0 %2252
    %v2254 = vmul.f32 %v2250, %v85
    %v2255 = vmul.f32 %v2253, %v85
    %v2256 = vadd.f32 %v2254, 1e-12
    %v2257 = vadd.f32 %v2255, 1e-12
    %v2258 = vrsqrt.pop %v2256
    %v2259 = vmul.f32 %v2258, %v2256
    %v2260 = vmul.f32 %v2259, %v2258
    %v2261 = vmul.f32 0.5, %v2260
    %v2262 = vsub.f32 1.5, %v2261
    %v2263 = vmul.f32 %v2258, %v2262
    %vm2264 = vweird.f32 %v2256
    %vm2265 = vweird.f32 %v2258
    %vm2266 = vmor %vm2264, %vm2265
    %v2267 = vsel %vm2266, %v2258, %v2263
    %v2268 = vrsqrt.pop %v2257
    %v2269 = vmul.f32 %v2268, %v2257
    %v2270 = vmul.f32 %v2269, %v2268
    %v2271 = vmul.f32 0.5, %v2270
    %v2272 = vsub.f32 1.5, %v2271
    %v2273 = vmul.f32 %v2268, %v2272
    %vm2274 = vweird.f32 %v2257
    %vm2275 = vweird.f32 %v2268
    %vm2276 = vmor %vm2274, %vm2275
    %v2277 = vsel %vm2276, %v2268, %v2273
    %v2278 = vmul.f32 %v2244, %v2267
    %v2279 = vmul.f32 %v2245, %v2277
    %v2281 = vperm.slane %v2233, 0
    %v2283 = vmul.f32 %v2278, %v2281
    %v2284 = vmul.f32 %v2279, %v2281
    %v2286 = vperm.slane %v2235, 0
    %v2288 = vadd.f32 %v2283, %v2286
    %v2289 = vadd.f32 %v2284, %v2286
    %v2290 = vpack.c.bf16 %v2289, %v2288
    %v2291 = vld [vmem:[%s17] sm:$0xf]
    %v2292 = vld [vmem:[%s17 + $0x4] sm:$0xf]
    %v2293 = vld [vmem:[%s17 + $0x8] sm:$0xf]
    %v2294 = vld [vmem:[%s17 + $0xc] sm:$0xf]
    %v2295 = vld [vmem:[%s17 + $0x10] sm:$0xf]
    %v2296 = vld [vmem:[%s17 + $0x14] sm:$0xf]
    %v2297 = vld [vmem:[%s17 + $0x18] sm:$0xf]
    %v2298 = vld [vmem:[%s17 + $0x1c] sm:$0xf]
    %v2299 = vld [vmem:[%s18] sm:$0x1]
    %v2301 = vperm.slane %v2299, 0
    %v2311 = vunpack.c.l.b16 %v2291
    %v2312 = vunpack.c.l.b16 %v2292
    %v2313 = vunpack.c.l.b16 %v2293
    %v2314 = vunpack.c.l.b16 %v2294
    %v2315 = vunpack.c.l.b16 %v2295
    %v2316 = vunpack.c.l.b16 %v2296
    %v2317 = vunpack.c.l.b16 %v2297
    %v2318 = vunpack.c.l.b16 %v2298
    %v2319 = vpack.c.b16 %v2312, %v2311
    %v2320 = vpack.c.b16 %v2314, %v2313
    %v2321 = vpack.c.b16 %v2316, %v2315
    %v2322 = vpack.c.b16 %v2318, %v2317
    %v2328 = vsel %vm72, %v2290, 0
    %2330 = vmatpush.bf16.msra.mxu0 0
    %2331 = vmatpush.bf16.msra.mxu0 0
    %2332 = vmatpush.bf16.msra.mxu0 0
    %2333 = vmatpush.bf16.msra.mxu0 0
    %2334 = vmatpush.bf16.msra.mxu0 %v2322
    %2335 = vmatpush.bf16.msra.mxu0 %v2321
    %2336 = vmatpush.bf16.msra.mxu0 %v2320
    %2337 = vmatpush.bf16.msra.mxu0 %v2319
    %2338 = vmatmul.bf16.gmra.mxu0 %v2328
    %v2339 = vpop.f32.mrf.mxu0
    %v2340 = vadd.f32 %v2301, %v2339
    %v2341 = vpop.f32.mrf.mxu0
    %v2342 = vadd.f32 %v2301, %v2341
    %2343 = vdwg.mxu0
    %2344 = vst [vmem:[%s19] sm:$0xff] %v2340
    %2345 = vst [vmem:[%s19 + $0x8] sm:$0xff] %v2342
    %v2346 = vld [vmem:[%s2] sm:$0xff]
    %v2347 = vld [vmem:[%s2 + $0x8] sm:$0xff]
    %v2348 = vlaneseq
    %v2349 = vand.u32 %v2348, 127
    %vm2350 = vcmp.lt.s32.totalorder %v2349, 5
    %v2351 = vsel %vm2350, %v2340, -3.4028235e+38
    %v2352 = vsel %vm2350, %v2342, -3.4028235e+38
    %2353 = vmax.xlane.f32.xlu0 %v2351
    %v2354 = vpop.xlane.xlu0 %2353
    %2355 = vmax.xlane.f32.xlu0 %v2352
    %v2356 = vpop.xlane.xlu0 %2355
    %v2357 = vsub.f32 %v2351, %v2354
    %v2358 = vsub.f32 %v2352, %v2356
    %v2359 = vmul.f32 %v2357, 1.442695
    %v2360 = vpow.pop %v2359
    %v2361 = vmul.f32 %v2358, 1.442695
    %v2362 = vpow.pop %v2361
    %2363 = vadd.xlane.f32.xlu0 %v2360
    %v2364 = vpop.xlane.xlu0 %2363
    %2365 = vadd.xlane.f32.xlu0 %v2362
    %v2366 = vpop.xlane.xlu0 %2365
    %v2367 = vlog2.pop %v2364
    %v2368 = vmul.f32 %v2367, 0.6931472
    %v2369 = vlog2.pop %v2366
    %v2370 = vmul.f32 %v2369, 0.6931472
    %v2371 = vadd.f32 %v2368, %v2354
    %v2372 = vadd.f32 %v2370, %v2356
    %v2373 = vsub.f32 %v2351, %v2371
    %v2374 = vsub.f32 %v2352, %v2372
    %2375 = vset.pattern.permute.xlu0 0
    %2376 = vperm.xlu0 %2375, %v2346
    %v2377 = vpop.permute.xlu0 %2376
    %2378 = vset.pattern.permute.xlu0 0
    %2379 = vperm.xlu0 %2378, %v2347
    %v2380 = vpop.permute.xlu0 %2379
    %vm2381 = vcmp.eq.s32.totalorder %v2349, %v2377
    %vm2382 = vcmp.eq.s32.totalorder %v2349, %v2380
    %v2383 = vsel %vm2381, 1, 0
    %v2384 = vsel %vm2382, 1, 0
    %v2385 = vcvt.s32.f32 %v2383
    %v2386 = vcvt.s32.f32 %v2384
    %v2387 = vmul.f32 %v2385, %v2373
    %v2388 = vmul.f32 %v2386, %v2374
    %2389 = vadd.xlane.f32.xlu0 %v2387
    %v2390 = vpop.xlane.xlu0 %2389
    %2391 = vadd.xlane.f32.xlu0 %v2388
    %v2392 = vpop.xlane.xlu0 %2391
    %v2393 = vsub.f32 0.0, %v2390
    %v2394 = vsub.f32 0.0, %v2392
    %vm2395 = vcmp.ne.s32.totalorder %v2346, 4294967196
    %vm2396 = vcmp.ne.s32.totalorder %v2347, 4294967196
    %v2397 = vsel %vm2395, 1, 0
    %v2398 = vsel %vm2396, 1, 0
    %v2399 = vcvt.s32.f32 %v2397
    %v2400 = vcvt.s32.f32 %v2398
    %v2401 = vmul.f32 %v2393, %v2399
    %v2402 = vmul.f32 %v2394, %v2400
    %vm2403 = vcmask 7168
    %v2404 = vsel %vm2403, %v2401, 0.0
    %v2405 = vsel %vm2403, %v2402, 0.0
    %v2406 = vadd.f32 %v2404, %v2405
    %2407 = vadd.xlane.f32.xlu0 %v2406
    %v2408 = vpop.xlane.xlu0 %2407
    %v2409 = vrot.slane %v2408, 4
    %v2410 = vadd.f32 %v2408, %v2409
    %v2411 = vrot.slane %v2410, 2
    %v2412 = vadd.f32 %v2410, %v2411
    %v2413 = vrot.slane %v2412, 1
    %v2414 = vadd.f32 %v2412, %v2413
    %s2415 = vtos %v2414
    %v2416 = vstv %s2415
    %v2417 = vsel %vm2403, %v2399, 0.0
    %v2418 = vsel %vm2403, %v2400, 0.0
    %v2419 = vadd.f32 %v2417, %v2418
    %2420 = vadd.xlane.f32.xlu0 %v2419
    %v2421 = vpop.xlane.xlu0 %2420
    %v2422 = vrot.slane %v2421, 4
    %v2423 = vadd.f32 %v2421, %v2422
    %v2424 = vrot.slane %v2423, 2
    %v2425 = vadd.f32 %v2423, %v2424
    %v2426 = vrot.slane %v2425, 1
    %v2427 = vadd.f32 %v2425, %v2426
    %s2428 = vtos %v2427
    %v2429 = vstv %s2428
    %v2430 = vmax.f32 %v2429, 1.0
    %v2431 = vrcp.pop %v2430
    %v2432 = vmul.f32 %v2430, %v2431
    %v2433 = vsub.f32 1.0, %v2432
    %v2434 = vmul.f32 %v2431, %v2433
    %v2435 = vadd.f32 %v2431, %v2434
    %vm2436 = vweird.f32 %v2430
    %vm2437 = vweird.f32 %v2431
    %vm2438 = vmor %vm2436, %vm2437
    %v2439 = vsel %vm2438, %v2431, %v2435
    %v2440 = vand.u32 2147483647, %v2430
    %vm2441 = vcmp.eq.f32.partialorder %v2440, 8.507059e+37
    %v2442 = vand.u32 %v2430, 2147483648
    %v2443 = vor.u32 1.1754944e-38, %v2442
    %v2444 = vsel %vm2441, %v2443, %v2439
    %v2445 = vmul.f32 %v2416, %v2444
    %vm2446 = vcmask 0
    %2447 = vst.msk [vmem:[#allocation2] sm:$0x1] %vm2446, %v2445
    // Predicated region
    $region78: #{distilbert_forward.1} parent=1 // pred_check
      _
    $region79: #{distilbert_forward.1} parent=1 // pred_check_branch
      %2449 = sbr.rel (0) target = $region81
    $region80: #{distilbert_forward.1} parent=1 // pred_region
      _
    $region81: #{distilbert_forward.1} parent=1 // pred_fallthru
      _
    // Predicated region
    $region82: #{distilbert_forward.1} parent=1 // pred_check
      _
    $region83: #{distilbert_forward.1} parent=1 // pred_check_branch
      %2451 = sbr.rel (0) target = $region85
    $region84: #{distilbert_forward.1} parent=1 // pred_region
      %2453 = vsyncadd [#allocation3], 0
      %s2455 = sshll.u32 [#allocation2], 4
      %s2456 = int_to_ptr.vmem [resolvable:$true] %s2455
      %s2457 = sshll.u32 %s20, 4
      %s2458 = int_to_ptr.hbm [resolvable:$true] %s2457
      %2460 = dma.vmem_to_hbm [thread:$0]  %s2456, 16, %s2458, [#allocation3]
    $region85: #{distilbert_forward.1} parent=1 // pred_fallthru
      _
    // Predicated region
    $region86: #{distilbert_forward.1} parent=1 // pred_check
      _
    $region87: #{distilbert_forward.1} parent=1 // pred_check_branch
      %2462 = sbr.rel (0) target = $region89
    $region88: #{distilbert_forward.1} parent=1 // pred_region
      _
    $region89: #{distilbert_forward.1} parent=1 // pred_fallthru
      _
    // Predicated region
    $region90: #{distilbert_forward.1} parent=1 // pred_check
      _
    $region91: #{distilbert_forward.1} parent=1 // pred_check_branch
      %2464 = sbr.rel (0) target = $region93
    $region92: #{distilbert_forward.1} parent=1 // pred_region
      %2466 = dma.done [#allocation3], 16
    $region93: #{distilbert_forward.1} parent=1 // pred_fallthru
      _
    %2467 = vsyncpa [#allocation3], 1

</llo_original>
